<compile_context>
chip_gen: v7x
topology: tpu7x:2x2x1
jax: 0.10.0
libtpu: 0.0.40
codegen_flags: <defaults>
</compile_context>

<pallas_src>
import jax
import jax.numpy as jnp
from jax.experimental import pallas as pl
from jax.experimental.pallas import tpu as pltpu

_LANE = 128
_SUBLANE = 8


def _make_kernel(inv_hw):
    """inv_hw: static python float = 1 / (H*W)."""

    def kernel(x_ref, w_ref, b_ref, o_ref, acc_ref):
        # x_ref: (tb, C, th)  -- C on sublanes, spatial (th) on lanes
        # w_ref: (C, Np)   b_ref: (1, Np)   o_ref: (tb, Np)
        # acc_ref: (tb, C) f32 pooled-sum accumulator (persists over the HW axis)
        h = pl.program_id(1)

        @pl.when(h == 0)
        def _init():
            acc_ref[...] = jnp.zeros_like(acc_ref)

        # Partial spatial sum for this tile, accumulated in f32.  The lane-axis
        # reduce lowers to vreg adds (VALU) plus one in-vreg lane tree per
        # 128-lane strip; at HBM-roofline stream rates this is hidden slack.
        acc_ref[...] += jnp.sum(x_ref[...], axis=2, dtype=jnp.float32)

        @pl.when(h == pl.num_programs(1) - 1)
        def _finalize():
            # Scale the pooled sum (mean) in f32 *before* any cast to the
            # weight dtype -> preserves bf16 mantissa when weights are bf16.
            pooled = acc_ref[...] * inv_hw                    # (tb, C) f32
            w = w_ref[...]
            logits = jnp.dot(pooled.astype(w.dtype), w,
                             preferred_element_type=jnp.float32)
            o_ref[...] = (logits + b_ref[...]).astype(o_ref.dtype)

    return kernel


def prepare_fc_params(weight, bias):
    """One-time parameter prep (do at init, NOT per forward call).

    weight: (nclasses, 512) PyTorch nn.Linear layout; bias: (nclasses,).
    Returns (w_t, b2): weight transposed to (512, Npad) and bias as (1, Npad)
    with the class dim zero-padded to a multiple of 128 (lane-dense output).
    """
    n, c = weight.shape
    n_pad = max(((n + _LANE - 1) // _LANE) * _LANE, _LANE)
    w_t = jnp.zeros((c, n_pad), dtype=weight.dtype).at[:, :n].set(weight.T)
    b2 = jnp.zeros((1, n_pad), dtype=jnp.float32).at[:, :n].set(
        bias.astype(jnp.float32))
    return w_t, b2


def _vmem_budgets():
    """(x_stream_budget_bytes, vmem_limit_bytes) per TPU generation."""
    phys = None
    try:
        phys = pltpu.get_tpu_info().vmem_capacity_bytes
    except Exception:
        phys = None
    if phys is None or phys <= (64 << 20):
        # v7x-class (64 MiB physical VMEM per TC) or unknown: stay conservative.
        return 32 << 20, 48 << 20
    # v5e / v6e: 128 MiB physical VMEM.
    return 40 << 20, 64 << 20


def _batch_tile_candidates(b, cap=256):
    """Multiple-of-8 divisors of b (<= cap), largest first; b itself as fallback."""
    cands = [t for t in range(_SUBLANE, min(b, cap) + 1, _SUBLANE) if b % t == 0]
    cands.sort(reverse=True)
    if b not in cands:
        cands.append(b)   # full-dim block is always layout-legal
    return cands


def _hw_tile_candidates(hw):
    """Multiple-of-128 divisors of hw, largest first; hw itself as fallback."""
    cands = [t for t in range(_LANE, hw + 1, _LANE) if hw % t == 0]
    cands.sort(reverse=True)
    if hw not in cands:
        cands.append(hw)   # full-extent lane block (e.g. HW = 49 or 64)
    return cands


def _choose_tiles(b, hw, c, esize, stream_budget, tile_b=None, tile_hw=None):
    """Pick (tb, th) so the double-buffered x stream fits stream_budget."""
    tb_c = [tile_b] if tile_b is not None else _batch_tile_candidates(b)
    if tile_b is None and b >= 16:
        # Prefer >= 2 steps on the parallel (batch) grid axis -> both v7x TCs busy.
        tb_c = ([t for t in tb_c if t <= b // 2] +
                [t for t in tb_c if t > b // 2])
    hw_c = [tile_hw] if tile_hw is not None else _hw_tile_candidates(hw)
    per_buf = max(1, stream_budget // 2)        # x stream is double-buffered
    for tb in tb_c:
        for th in hw_c:
            if tb * c * th * esize <= per_buf:
                return tb, th
    # Nothing fits the budget (awkward HW factorization): take the smallest
    # legal combination; correctness first, vmem_limit is raised to match.
    return tb_c[-1], hw_c[-1]


def std_classifier_forward(x_nchw, w_t, b2, nclasses, *, tile_b=None, tile_hw=None):
    """x_nchw: (B, 512, H, W) in any float dtype; (w_t, b2) from prepare_fc_params."""
    B, C, H, W = x_nchw.shape
    HW = H * W
    Np = w_t.shape[1]
    esize = jnp.dtype(x_nchw.dtype).itemsize
    w_esize = jnp.dtype(w_t.dtype).itemsize

    # Free reshape only -- no transpose pass through HBM.
    x = x_nchw.reshape(B, C, HW)                              # (B, C, HW)

    stream_budget, vmem_limit = _vmem_budgets()
    tb, th = _choose_tiles(B, HW, C, esize, stream_budget, tile_b, tile_hw)
    assert B % tb == 0 and HW % th == 0, "tile sizes must divide B / H*W"
    grid = (B // tb, HW // th)

    # Make sure the limit covers the chosen blocks (fallback paths included).
    need = (2 * tb * C * th * esize        # double-buffered x stream
            + 2 * C * Np * w_esize         # weight blocks
            + 2 * Np * 4                   # bias blocks
            + 2 * tb * Np * 4              # output blocks
            + tb * C * 4)                  # f32 accumulator scratch
    vmem_limit = max(vmem_limit, need + (2 << 20))

    kernel = _make_kernel(1.0 / float(HW))

    out = pl.pallas_call(
        kernel,
        out_shape=jax.ShapeDtypeStruct((B, Np), jnp.float32),
        grid_spec=pltpu.PrefetchScalarGridSpec(
            num_scalar_prefetch=0,
            grid=grid,
            in_specs=[
                pl.BlockSpec((tb, C, th), lambda b, h: (b, 0, h)),   # x stream
                pl.BlockSpec((C, Np), lambda b, h: (0, 0)),          # weight
                pl.BlockSpec((1, Np), lambda b, h: (0, 0)),          # bias
            ],
            out_specs=pl.BlockSpec((tb, Np), lambda b, h: (b, 0)),
            scratch_shapes=[pltpu.VMEM((tb, C), jnp.float32)],       # pooled acc
        ),
        compiler_params=pltpu.CompilerParams(
            dimension_semantics=("parallel", "arbitrary"),
            vmem_limit_bytes=int(vmem_limit),
        ),
        cost_estimate=pl.CostEstimate(
            flops=2 * B * C * Np + B * C * HW,
            transcendentals=0,
            bytes_accessed=(B * HW * C * esize + C * Np * w_esize
                            + B * Np * 4 + Np * 4),
        ),
    )(x, w_t, b2)

    return out[:, :nclasses]


def _reference(x_nchw, weight, bias):
    pooled = jnp.mean(x_nchw.astype(jnp.float32), axis=(2, 3))   # (B, C)
    return pooled @ weight.T + bias


if __name__ == "__main__":
    key = jax.random.PRNGKey(0)
    k_x, k_w, k_b = jax.random.split(key, 3)

    # fc is Linear(512, nclasses) -> C must be 512; small batch/spatial demo.
    B, C, H, W = 8, 512, 16, 16
    nclasses = 10

    x = jax.random.normal(k_x, (B, C, H, W), dtype=jnp.float32)
    # deterministic nn.Linear-style init: U(-1/sqrt(512), 1/sqrt(512))
    bound = 1.0 / jnp.sqrt(jnp.float32(C))
    weight = jax.random.uniform(k_w, (nclasses, C), jnp.float32, -bound, bound)
    bias = jax.random.uniform(k_b, (nclasses,), jnp.float32, -bound, bound)

    # Parameter prep happens once (not per forward).
    w_t, b2 = prepare_fc_params(weight, bias)
    ref = _reference(x, weight, bias)

    # f32 path; tile_hw=128 forces 2 spatial grid steps, exercising the
    # accumulator init/accumulate/finalize path.
    logits = std_classifier_forward(x, w_t, b2, nclasses, tile_hw=128)
    logits = jax.block_until_ready(logits)
    assert logits.shape == (B, nclasses)
    assert jnp.allclose(logits, ref, atol=1e-4, rtol=1e-4), "f32 mismatch vs reference"

    # bf16 activation streaming path (halves HBM bytes; f32 accumulation kept).
    logits_bf16 = std_classifier_forward(x.astype(jnp.bfloat16), w_t, b2, nclasses)
    logits_bf16 = jax.block_until_ready(logits_bf16)
    assert jnp.allclose(logits_bf16, ref, atol=5e-2, rtol=5e-2), "bf16 mismatch vs reference"

    print("KERNEL_OK")
</pallas_src>

<mosaic_0001>
module attributes {stable_mosaic.version = 11 : i64} {
  func.func @kernel(%arg0: i32, %arg1: i32, %arg2: memref<8x512x128xf32, #tpu.memory_space<vmem>>, %arg3: memref<512x128xf32, #tpu.memory_space<vmem>>, %arg4: memref<1x128xf32, #tpu.memory_space<vmem>>, %arg5: memref<8x128xf32, #tpu.memory_space<vmem>>, %arg6: memref<8x512xf32, #tpu.memory_space<vmem>>) attributes {dimension_semantics = [#tpu.dimension_semantics<parallel>, #tpu.dimension_semantics<arbitrary>], iteration_bounds = array<i64: 1, 2>, scalar_prefetch = 0 : i64, scratch_operands = 1 : i64, tpu.core_type = #tpu.core_type<tc>, window_params = [{transform_indices = @transform_0, window_bounds = array<i64: 8, 512, 128>}, {pipeline_mode = #tpu.pipeline_mode<synchronous>, transform_indices = @transform_1, window_bounds = array<i64: 512, 128>}, {pipeline_mode = #tpu.pipeline_mode<synchronous>, transform_indices = @transform_2, window_bounds = array<i64: 1, 128>}, {transform_indices = @transform_3, window_bounds = array<i64: 8, 128>}]} {
    %c0_i32 = arith.constant 0 : i32
    %0 = arith.cmpi eq, %arg1, %c0_i32 : i32
    %1 = arith.extui %0 : i1 to i32
    %c0_i32_0 = arith.constant 0 : i32
    %2 = arith.cmpi ne, %1, %c0_i32_0 : i32
    scf.if %2 {
      %cst_8 = arith.constant 0.000000e+00 : f32
      %11 = vector.broadcast %cst_8 : f32 to vector<8x512xf32>
      %c0_9 = arith.constant 0 : index
      %c0_10 = arith.constant 0 : index
      %12 = vector.load %arg6[%c0_9, %c0_10] : memref<8x512xf32, #tpu.memory_space<vmem>>, vector<8x512xf32>
      tpu.vector_store %arg6[%c0_9, %c0_10], %11 {strides = array<i32>} : memref<8x512xf32, #tpu.memory_space<vmem>>, vector<8x512xf32>,
    } else {
    }
    %c0 = arith.constant 0 : index
    %c0_1 = arith.constant 0 : index
    %3 = vector.load %arg6[%c0, %c0_1] : memref<8x512xf32, #tpu.memory_space<vmem>>, vector<8x512xf32>
    %c0_2 = arith.constant 0 : index
    %c0_3 = arith.constant 0 : index
    %c0_4 = arith.constant 0 : index
    %4 = vector.load %arg2[%c0_2, %c0_3, %c0_4] : memref<8x512x128xf32, #tpu.memory_space<vmem>>, vector<8x512x128xf32>
    %cst = arith.constant dense<0.000000e+00> : vector<8x512xf32>
    %5 = vector.multi_reduction <add>, %4, %cst [2] : vector<8x512x128xf32> to vector<8x512xf32>
    %6 = arith.addf %3, %5 : vector<8x512xf32>
    %c0_5 = arith.constant 0 : index
    %c0_6 = arith.constant 0 : index
    %7 = vector.load %arg6[%c0_5, %c0_6] : memref<8x512xf32, #tpu.memory_space<vmem>>, vector<8x512xf32>
    tpu.vector_store %arg6[%c0_5, %c0_6], %6 {strides = array<i32>} : memref<8x512xf32, #tpu.memory_space<vmem>>, vector<8x512xf32>,
    %c1_i32 = arith.constant 1 : i32
    %8 = arith.cmpi eq, %arg1, %c1_i32 : i32
    %9 = arith.extui %8 : i1 to i32
    %c0_i32_7 = arith.constant 0 : i32
    %10 = arith.cmpi ne, %9, %c0_i32_7 : i32
    scf.if %10 {
      %c0_8 = arith.constant 0 : index
      %c0_9 = arith.constant 0 : index
      %11 = vector.load %arg6[%c0_8, %c0_9] : memref<8x512xf32, #tpu.memory_space<vmem>>, vector<8x512xf32>
      %cst_10 = arith.constant 3.906250e-03 : f32
      %12 = vector.broadcast %cst_10 : f32 to vector<8x512xf32>
      %13 = arith.mulf %11, %12 : vector<8x512xf32>
      %c0_11 = arith.constant 0 : index
      %c0_12 = arith.constant 0 : index
      %14 = vector.load %arg3[%c0_11, %c0_12] : memref<512x128xf32, #tpu.memory_space<vmem>>, vector<512x128xf32>
      %cst_13 = arith.constant dense<0.000000e+00> : vector<8x128xf32>
      %15 = tpu.matmul %13, %14, %cst_13 {dimension_numbers = #tpu.dot_dimension_numbers<[1], [0], [0], [1], [0, 0, 1, 1], [], []>} : vector<8x512xf32>, vector<512x128xf32>, vector<8x128xf32> -> vector<8x128xf32>
      %c0_14 = arith.constant 0 : index
      %c0_15 = arith.constant 0 : index
      %16 = vector.load %arg4[%c0_14, %c0_15] : memref<1x128xf32, #tpu.memory_space<vmem>>, vector<1x128xf32>
      %17 = vector.broadcast %16 : vector<1x128xf32> to vector<8x128xf32>
      %18 = arith.addf %15, %17 : vector<8x128xf32>
      %c0_16 = arith.constant 0 : index
      %c0_17 = arith.constant 0 : index
      %19 = vector.load %arg5[%c0_16, %c0_17] : memref<8x128xf32, #tpu.memory_space<vmem>>, vector<8x128xf32>
      tpu.vector_store %arg5[%c0_16, %c0_17], %18 {strides = array<i32>} : memref<8x128xf32, #tpu.memory_space<vmem>>, vector<8x128xf32>,
    } else {
    }
    return
  }
  func.func @transform_0(%arg0: i32, %arg1: i32) -> (i32, i32, i32) {
    %c0_i32 = arith.constant 0 : i32
    %c0_i32_0 = arith.constant 0 : i32
    return %arg0, %c0_i32, %arg1 : i32, i32, i32
  }
  func.func @transform_1(%arg0: i32, %arg1: i32) -> (i32, i32) {
    %c0_i32 = arith.constant 0 : i32
    %c0_i32_0 = arith.constant 0 : i32
    %c0_i32_1 = arith.constant 0 : i32
    return %c0_i32, %c0_i32_0 : i32, i32
  }
  func.func @transform_2(%arg0: i32, %arg1: i32) -> (i32, i32) {
    %c0_i32 = arith.constant 0 : i32
    %c0_i32_0 = arith.constant 0 : i32
    %c0_i32_1 = arith.constant 0 : i32
    return %c0_i32, %c0_i32_0 : i32, i32
  }
  func.func @transform_3(%arg0: i32, %arg1: i32) -> (i32, i32) {
    %c0_i32 = arith.constant 0 : i32
    %c0_i32_0 = arith.constant 0 : i32
    return %arg0, %c0_i32 : i32, i32
  }
}

</mosaic_0001>

<llo_original>
// kernel: tpu_custom_call.1
$region0: #{tpu_custom_call.1}
  #allocation0 [shape = 'u32[]', space=smem, size = 0x4, offset = 0x4, fixed_abs, tag = 'smem constant byte address 0x4 - core index']
  #allocation1 [shape = 'u32[144,128]{1,0:T(1,128)}', space=vmem, size = 0x12000, scoped, tag = 'internal scratch']
  #allocation2 [shape = 'f32[8,512]{1,0:T(8,128)}', space=vmem, size = 0x4000, scoped, tag = 'scratch operand']
  %s0 = inlined_call_operand.hbm [shape: f32[8,512,256], index: 0, kind: input, shape index: {}]
  %s1 = inlined_call_operand.hbm [shape: f32[512,128], index: 1, kind: input, shape index: {}]
  %s2 = inlined_call_operand.hbm [shape: f32[1,128], index: 2, kind: input, shape index: {}]
  %s3 = inlined_call_operand.hbm [shape: f32[8,128], index: 3, kind: output, shape index: {}]
  %s4 = sld [smem:[#allocation0]]
  $region65: #{tpu_custom_call.1} parent=0
    _
  %s6 = ssub.s32 1, %s4
  %s7 = scalar_select 0, %s6, %s4
  $region1: #{tpu_custom_call.1} parent=0
    #allocation3 [shape = 'u8[4194304]{0}', space=vmem, size = 0x400000, scoped, tag = 'input window, operand 0']
    #allocation4 [shape = 's32[2]{0}', space=sflag, size = 0x8, scoped, tag = 'scoped memory for tpu_custom_call.1']
    #allocation5 [shape = 's32[2]{0}', space=sflag, size = 0x8, scoped, tag = 'scoped memory for tpu_custom_call.1']
    #allocation6 [shape = 'u8[262144]{0}', space=vmem, size = 0x40000, scoped, tag = 'input window, operand 1, single buffered']
    #allocation7 [shape = 's32[1]{0}', space=sflag, size = 0x4, scoped, tag = 'scoped memory for tpu_custom_call.1']
    #allocation8 [shape = 'u8[512]{0}', space=vmem, size = 0x400, scoped, tag = 'input window, operand 2, single buffered']
    #allocation9 [shape = 'u8[4096]{0}', space=vmem, size = 0x1000, scoped, tag = 'output window, operand 0, single buffered']
    %8 = vsyncpa [#allocation4], 0
    %s9 = scalar_lea.sflag [#allocation4], 1
    %10 = vsyncpa %s9, 0
    %11 = vsyncpa [#allocation7], 0
    %12 = vsyncpa [#allocation5], 0
    loop: start=0, step=1, limit=4
    $region2: #{tpu_custom_call.1} parent=1 // loop_pre_header
      _
    $region3: #{tpu_custom_call.1} parent=1 // loop_header
      %s14 = sphi 0, %s18
      %p15 = scmp.ge.s32.totalorder %s14, 4
      %s21 = sphi 0, %s33
      %s22 = sphi 0, %s29
      %s23 = sphi 0, %s21
      %s24 = sphi 0, %s22
      %s25 = sphi 0, %s23
      %s26 = sphi 0, %s24
      %s38 = sphi 0, %s40
      %s41 = sphi 0, %s38
      %s42 = sphi 0, %s41
      %s58 = sphi 0, %s42
      %s62 = sphi 0, %s62
      %s64 = sphi 0, %s62
      %s65 = sphi 0, %s64
      %s79 = sphi 0, %s65
      %s83 = sphi 0, %s83
      %s85 = sphi 0, %s83
      %s86 = sphi 0, %s85
      %s100 = sphi 0, %s86
      %s106 = sphi 0, %s108
      %s109 = sphi 0, %s106
      %s110 = sphi 0, %s109
      %s126 = sphi 0, %s110
    $region4: #{tpu_custom_call.1} parent=1 // loop_header_branch
      %17 = sbr.rel (%p15) target = $region8
    $region5: #{tpu_custom_call.1} parent=1 // loop_body
      %s19 = ssub.s32 %s14, 1
      %s20 = ssub.s32 %s14, 2
      %s27 = sadd.s32 1, %s22
      %p28 = scmp.ge.s32.totalorder %s27, 2
      %s29 = scalar_select %p28, 0, %s27
      %s30 = sadd.s32 1, %s21
      %s31 = scalar_select %p28, %s30, %s21
      %p32 = scmp.ge.s32.totalorder %s31, 1
      %s33 = scalar_select %p32, 0, %s31
      %s34 = ssub.s32 %s21, %s33
      %s35 = ssub.s32 %s22, %s29
      %s36 = sor.u32 %s34, %s35
      %p37 = scmp.eq.s32.totalorder %s36, 0
      %s39 = sadd.s32 %s38, 1
      %s40 = scalar_select %p37, %s38, %s39
      %p43 = pneg %p37
      %p44 = scmp.eq.s32.totalorder %s14, 1
      %p45 = por %p43, %p44
      %p46 = scmp.ne.s32.totalorder %s38, %s41
      %p47 = scmp.eq.s32.totalorder %s14, 0
      %p48 = por %p46, %p47
      %p49 = scmp.ne.s32.totalorder %s38, %s41
      %p50 = scmp.eq.s32.totalorder %s19, 1
      %p51 = por %p49, %p50
      %p52 = scmp.ne.s32.totalorder %s41, %s42
      %p53 = scmp.eq.s32.totalorder %s19, 0
      %p54 = por %p52, %p53
      %p55 = scmp.ne.s32.totalorder %s41, %s42
      %p56 = scmp.eq.s32.totalorder %s20, 1
      %p57 = por %p55, %p56
      %p59 = scmp.ne.s32.totalorder %s42, %s58
      %p60 = scmp.eq.s32.totalorder %s20, 0
      %p61 = por %p59, %p60
      %s63 = sadd.s32 %s62, 1
      %p66 = scmp.eq.s32.totalorder %s14, 1
      %p67 = scmp.ne.s32.totalorder %s62, %s64
      %p68 = scmp.eq.s32.totalorder %s14, 0
      %p69 = por %p67, %p68
      %p70 = scmp.ne.s32.totalorder %s62, %s64
      %p71 = scmp.eq.s32.totalorder %s19, 1
      %p72 = por %p70, %p71
      %p73 = scmp.ne.s32.totalorder %s64, %s65
      %p74 = scmp.eq.s32.totalorder %s19, 0
      %p75 = por %p73, %p74
      %p76 = scmp.ne.s32.totalorder %s64, %s65
      %p77 = scmp.eq.s32.totalorder %s20, 1
      %p78 = por %p76, %p77
      %p80 = scmp.ne.s32.totalorder %s65, %s79
      %p81 = scmp.eq.s32.totalorder %s20, 0
      %p82 = por %p80, %p81
      %s84 = sadd.s32 %s83, 1
      %p87 = scmp.eq.s32.totalorder %s14, 1
      %p88 = scmp.ne.s32.totalorder %s83, %s85
      %p89 = scmp.eq.s32.totalorder %s14, 0
      %p90 = por %p88, %p89
      %p91 = scmp.ne.s32.totalorder %s83, %s85
      %p92 = scmp.eq.s32.totalorder %s19, 1
      %p93 = por %p91, %p92
      %p94 = scmp.ne.s32.totalorder %s85, %s86
      %p95 = scmp.eq.s32.totalorder %s19, 0
      %p96 = por %p94, %p95
      %p97 = scmp.ne.s32.totalorder %s85, %s86
      %p98 = scmp.eq.s32.totalorder %s20, 1
      %p99 = por %p97, %p98
      %p101 = scmp.ne.s32.totalorder %s86, %s100
      %p102 = scmp.eq.s32.totalorder %s20, 0
      %p103 = por %p101, %p102
      %s104 = ssub.s32 %s21, %s33
      %p105 = scmp.eq.s32.totalorder %s104, 0
      %s107 = sadd.s32 %s106, 1
      %s108 = scalar_select %p105, %s106, %s107
      %p111 = pneg %p105
      %p112 = scmp.eq.s32.totalorder %s14, 1
      %p113 = por %p111, %p112
      %p114 = scmp.ne.s32.totalorder %s106, %s109
      %p115 = scmp.eq.s32.totalorder %s14, 0
      %p116 = por %p114, %p115
      %p117 = scmp.ne.s32.totalorder %s106, %s109
      %p118 = scmp.eq.s32.totalorder %s19, 1
      %p119 = por %p117, %p118
      %p120 = scmp.ne.s32.totalorder %s109, %s110
      %p121 = scmp.eq.s32.totalorder %s19, 0
      %p122 = por %p120, %p121
      %p123 = scmp.ne.s32.totalorder %s109, %s110
      %p124 = scmp.eq.s32.totalorder %s20, 1
      %p125 = por %p123, %p124
      %p127 = scmp.ne.s32.totalorder %s110, %s126
      %p128 = scmp.eq.s32.totalorder %s20, 0
      %p129 = por %p127, %p128
      %p130 = scmp.le.s32.totalorder 1, %s14
      %p131 = scmp.lt.s32.totalorder %s14, 3
      %p132 = pnand %p130, %p131
      %p133 = pneg %p132
      // Predicated region
      $region9: #{tpu_custom_call.1} parent=5 // pred_check
        _
      $region10: #{tpu_custom_call.1} parent=5 // pred_check_branch
        %135 = sbr.rel (%p132) target = $region12
      $region11: #{tpu_custom_call.1} parent=5 // pred_region
        %s136 = ssub.s32 %s14, 1
        // Predicated region
        $region13: #{tpu_custom_call.1} parent=11 // pred_check
          %p137 = pneg %p75
        $region14: #{tpu_custom_call.1} parent=11 // pred_check_branch
          %139 = sbr.rel (%p137) target = $region16
        $region15: #{tpu_custom_call.1} parent=11 // pred_region
          %s141 = ssub.s32 8192, 8192
          %142 = vsyncadd [#allocation7], %s141
          %s143 = sshll.u32 [#allocation6], 4
          %s144 = int_to_ptr.vmem [resolvable:$true] %s143
          %149 = dma.hbm_to_vmem [thread:$0]  %s1, 8192, %s144, [#allocation7], 128, 128, 8
        $region16: #{tpu_custom_call.1} parent=11 // pred_fallthru
          _
        // Predicated region
        $region17: #{tpu_custom_call.1} parent=11 // pred_check
          %p150 = pneg %p96
        $region18: #{tpu_custom_call.1} parent=11 // pred_check_branch
          %152 = sbr.rel (%p150) target = $region20
        $region19: #{tpu_custom_call.1} parent=11 // pred_region
          %s154 = ssub.s32 16, 16
          %155 = vsyncadd [#allocation7], %s154
          %s157 = sshll.u32 [#allocation8], 4
          %s158 = int_to_ptr.vmem [resolvable:$true] %s157
          %160 = dma.hbm_to_vmem [thread:$0]  %s2, 16, %s158, [#allocation7]
        $region20: #{tpu_custom_call.1} parent=11 // pred_fallthru
          _
      $region12: #{tpu_custom_call.1} parent=5 // pred_fallthru
        _
      %p161 = scmp.lt.s32.totalorder %s14, 2
      // Predicated region
      $region21: #{tpu_custom_call.1} parent=5 // pred_check
        %p162 = pneg %p161
      $region22: #{tpu_custom_call.1} parent=5 // pred_check_branch
        %164 = sbr.rel (%p162) target = $region24
      $region23: #{tpu_custom_call.1} parent=5 // pred_region
        // Predicated region
        $region25: #{tpu_custom_call.1} parent=23 // pred_check
          %p165 = pneg %p48
        $region26: #{tpu_custom_call.1} parent=23 // pred_check_branch
          %167 = sbr.rel (%p165) target = $region28
        $region27: #{tpu_custom_call.1} parent=23 // pred_region
          %s168 = sand.u32 %s38, 1
          %s169 = scalar_lea.sflag [#allocation4], %s168
          %s170 = sand.u32 %s38, 1
          %s171 = smul.addr %s170, 4096
          %s172 = scalar_lea.vmem [#allocation3], %s171
          %s173 = smul.u32 8, %s21
          %s175 = ssub.s32 65536, 65536
          %176 = vsyncadd %s169, %s175
          %s177 = smul.addr %s173, 128
          %s178 = sadd.s32 %s22, %s177
          %s179 = smul.addr %s178, 128
          %s180 = scalar_lea.hbm %s0, %s179
          %s181 = sshll.u32 %s172, 4
          %s182 = int_to_ptr.vmem [resolvable:$true] %s181
          %187 = dma.hbm_to_vmem [thread:$0]  %s180, 65536, %s182, %s169, 256, 128, 8
        $region28: #{tpu_custom_call.1} parent=23 // pred_fallthru
          _
      $region24: #{tpu_custom_call.1} parent=5 // pred_fallthru
        _
      %p188 = scmp.le.s32.totalorder 1, %s14
      %p189 = scmp.lt.s32.totalorder %s14, 3
      %p190 = pnand %p188, %p189
      %p191 = pneg %p190
      // Predicated region
      $region29: #{tpu_custom_call.1} parent=5 // pred_check
        _
      $region30: #{tpu_custom_call.1} parent=5 // pred_check_branch
        %193 = sbr.rel (%p190) target = $region32
      $region31: #{tpu_custom_call.1} parent=5 // pred_region
        %s194 = ssub.s32 %s14, 1
        %s195 = sand.u32 %s41, 1
        %s196 = scalar_lea.sflag [#allocation4], %s195
        %s197 = sand.u32 %s41, 1
        %s198 = smul.addr %s197, 4096
        %s199 = scalar_lea.vmem [#allocation3], %s198
        // Predicated region
        $region33: #{tpu_custom_call.1} parent=31 // pred_check
          %p200 = pneg %p54
        $region34: #{tpu_custom_call.1} parent=31 // pred_check_branch
          %202 = sbr.rel (%p200) target = $region36
        $region35: #{tpu_custom_call.1} parent=31 // pred_region
          %203 = dma.done %s196, 65536
        $region36: #{tpu_custom_call.1} parent=31 // pred_fallthru
          _
        // Predicated region
        $region37: #{tpu_custom_call.1} parent=31 // pred_check
          %p204 = pneg %p75
        $region38: #{tpu_custom_call.1} parent=31 // pred_check_branch
          %206 = sbr.rel (%p204) target = $region40
        $region39: #{tpu_custom_call.1} parent=31 // pred_region
          %207 = dma.done [#allocation7], 8192
        $region40: #{tpu_custom_call.1} parent=31 // pred_fallthru
          _
        // Predicated region
        $region41: #{tpu_custom_call.1} parent=31 // pred_check
          %p208 = pneg %p96
        $region42: #{tpu_custom_call.1} parent=31 // pred_check_branch
          %210 = sbr.rel (%p208) target = $region44
        $region43: #{tpu_custom_call.1} parent=31 // pred_region
          %211 = dma.done [#allocation7], 16
        $region44: #{tpu_custom_call.1} parent=31 // pred_fallthru
          _
        %s212 = sand.u32 %s41, 1
        %s213 = scalar_lea.sflag [#allocation4], %s212
        %s214 = sand.u32 %s41, 1
        %s215 = smul.addr %s214, 4096
        %s216 = scalar_lea.vmem [#allocation3], %s215
        %p217 = pneg %p54
        %p218 = pneg %p51
        %p219 = pneg %p75
        %p220 = pneg %p72
        %p221 = pneg %p96
        %p222 = pneg %p93
        %p223 = pneg %p122
        %p224 = pneg %p119
        %s225 = smul.u32 8, %s23
        %p226 = scmp.eq.s32.totalorder %s24, 0
        // Predicated region
        $region45: #{tpu_custom_call.1} parent=31 // pred_check
          %p227 = pneg %p226
        $region46: #{tpu_custom_call.1} parent=31 // pred_check_branch
          %229 = sbr.rel (%p227) target = $region48
        $region47: #{tpu_custom_call.1} parent=31 // pred_region
          %230 = vst [vmem:[#allocation2] sm:$0xff] 0.0
          %231 = vst [vmem:[#allocation2 + $0x8] sm:$0xff] 0.0
          %232 = vst [vmem:[#allocation2 + $0x10] sm:$0xff] 0.0
          %233 = vst [vmem:[#allocation2 + $0x18] sm:$0xff] 0.0
        $region48: #{tpu_custom_call.1} parent=31 // pred_fallthru
          _
        %v234 = vld [vmem:[#allocation2] sm:$0xff]
        %v235 = vld [vmem:[#allocation2 + $0x8] sm:$0xff]
        %v236 = vld [vmem:[#allocation2 + $0x10] sm:$0xff]
        %v237 = vld [vmem:[#allocation2 + $0x18] sm:$0xff]
        %v238 = vld [vmem:[%s199] sm:$0xff]
        %v239 = vld [vmem:[%s199 + $0x8] sm:$0xff]
        %v240 = vld [vmem:[%s199 + $0x10] sm:$0xff]
        %v241 = vld [vmem:[%s199 + $0x18] sm:$0xff]
        %v242 = vld [vmem:[%s199 + $0x20] sm:$0xff]
        %v243 = vld [vmem:[%s199 + $0x28] sm:$0xff]
        %v244 = vld [vmem:[%s199 + $0x30] sm:$0xff]
        %v245 = vld [vmem:[%s199 + $0x38] sm:$0xff]
        %v246 = vld [vmem:[%s199 + $0x40] sm:$0xff]
        %v247 = vld [vmem:[%s199 + $0x48] sm:$0xff]
        %v248 = vld [vmem:[%s199 + $0x50] sm:$0xff]
        %v249 = vld [vmem:[%s199 + $0x58] sm:$0xff]
        %v250 = vld [vmem:[%s199 + $0x60] sm:$0xff]
        %v251 = vld [vmem:[%s199 + $0x68] sm:$0xff]
        %v252 = vld [vmem:[%s199 + $0x70] sm:$0xff]
        %v253 = vld [vmem:[%s199 + $0x78] sm:$0xff]
        %v254 = vld [vmem:[%s199 + $0x80] sm:$0xff]
        %v255 = vld [vmem:[%s199 + $0x88] sm:$0xff]
        %v256 = vld [vmem:[%s199 + $0x90] sm:$0xff]
        %v257 = vld [vmem:[%s199 + $0x98] sm:$0xff]
        %v258 = vld [vmem:[%s199 + $0xa0] sm:$0xff]
        %v259 = vld [vmem:[%s199 + $0xa8] sm:$0xff]
        %v260 = vld [vmem:[%s199 + $0xb0] sm:$0xff]
        %v261 = vld [vmem:[%s199 + $0xb8] sm:$0xff]
        %v262 = vld [vmem:[%s199 + $0xc0] sm:$0xff]
        %v263 = vld [vmem:[%s199 + $0xc8] sm:$0xff]
        %v264 = vld [vmem:[%s199 + $0xd0] sm:$0xff]
        %v265 = vld [vmem:[%s199 + $0xd8] sm:$0xff]
        %v266 = vld [vmem:[%s199 + $0xe0] sm:$0xff]
        %v267 = vld [vmem:[%s199 + $0xe8] sm:$0xff]
        %v268 = vld [vmem:[%s199 + $0xf0] sm:$0xff]
        %v269 = vld [vmem:[%s199 + $0xf8] sm:$0xff]
        %v270 = vld [vmem:[%s199 + $0x100] sm:$0xff]
        %v271 = vld [vmem:[%s199 + $0x108] sm:$0xff]
        %v272 = vld [vmem:[%s199 + $0x110] sm:$0xff]
        %v273 = vld [vmem:[%s199 + $0x118] sm:$0xff]
        %v274 = vld [vmem:[%s199 + $0x120] sm:$0xff]
        %v275 = vld [vmem:[%s199 + $0x128] sm:$0xff]
        %v276 = vld [vmem:[%s199 + $0x130] sm:$0xff]
        %v277 = vld [vmem:[%s199 + $0x138] sm:$0xff]
        %v278 = vld [vmem:[%s199 + $0x140] sm:$0xff]
        %v279 = vld [vmem:[%s199 + $0x148] sm:$0xff]
        %v280 = vld [vmem:[%s199 + $0x150] sm:$0xff]
        %v281 = vld [vmem:[%s199 + $0x158] sm:$0xff]
        %v282 = vld [vmem:[%s199 + $0x160] sm:$0xff]
        %v283 = vld [vmem:[%s199 + $0x168] sm:$0xff]
        %v284 = vld [vmem:[%s199 + $0x170] sm:$0xff]
        %v285 = vld [vmem:[%s199 + $0x178] sm:$0xff]
        %v286 = vld [vmem:[%s199 + $0x180] sm:$0xff]
        %v287 = vld [vmem:[%s199 + $0x188] sm:$0xff]
        %v288 = vld [vmem:[%s199 + $0x190] sm:$0xff]
        %v289 = vld [vmem:[%s199 + $0x198] sm:$0xff]
        %v290 = vld [vmem:[%s199 + $0x1a0] sm:$0xff]
        %v291 = vld [vmem:[%s199 + $0x1a8] sm:$0xff]
        %v292 = vld [vmem:[%s199 + $0x1b0] sm:$0xff]
        %v293 = vld [vmem:[%s199 + $0x1b8] sm:$0xff]
        %v294 = vld [vmem:[%s199 + $0x1c0] sm:$0xff]
        %v295 = vld [vmem:[%s199 + $0x1c8] sm:$0xff]
        %v296 = vld [vmem:[%s199 + $0x1d0] sm:$0xff]
        %v297 = vld [vmem:[%s199 + $0x1d8] sm:$0xff]
        %v298 = vld [vmem:[%s199 + $0x1e0] sm:$0xff]
        %v299 = vld [vmem:[%s199 + $0x1e8] sm:$0xff]
        %v300 = vld [vmem:[%s199 + $0x1f0] sm:$0xff]
        %v301 = vld [vmem:[%s199 + $0x1f8] sm:$0xff]
        %v302 = vld [vmem:[%s199 + $0x200] sm:$0xff]
        %v303 = vld [vmem:[%s199 + $0x208] sm:$0xff]
        %v304 = vld [vmem:[%s199 + $0x210] sm:$0xff]
        %v305 = vld [vmem:[%s199 + $0x218] sm:$0xff]
        %v306 = vld [vmem:[%s199 + $0x220] sm:$0xff]
        %v307 = vld [vmem:[%s199 + $0x228] sm:$0xff]
        %v308 = vld [vmem:[%s199 + $0x230] sm:$0xff]
        %v309 = vld [vmem:[%s199 + $0x238] sm:$0xff]
        %v310 = vld [vmem:[%s199 + $0x240] sm:$0xff]
        %v311 = vld [vmem:[%s199 + $0x248] sm:$0xff]
        %v312 = vld [vmem:[%s199 + $0x250] sm:$0xff]
        %v313 = vld [vmem:[%s199 + $0x258] sm:$0xff]
        %v314 = vld [vmem:[%s199 + $0x260] sm:$0xff]
        %v315 = vld [vmem:[%s199 + $0x268] sm:$0xff]
        %v316 = vld [vmem:[%s199 + $0x270] sm:$0xff]
        %v317 = vld [vmem:[%s199 + $0x278] sm:$0xff]
        %v318 = vld [vmem:[%s199 + $0x280] sm:$0xff]
        %v319 = vld [vmem:[%s199 + $0x288] sm:$0xff]
        %v320 = vld [vmem:[%s199 + $0x290] sm:$0xff]
        %v321 = vld [vmem:[%s199 + $0x298] sm:$0xff]
        %v322 = vld [vmem:[%s199 + $0x2a0] sm:$0xff]
        %v323 = vld [vmem:[%s199 + $0x2a8] sm:$0xff]
        %v324 = vld [vmem:[%s199 + $0x2b0] sm:$0xff]
        %v325 = vld [vmem:[%s199 + $0x2b8] sm:$0xff]
        %v326 = vld [vmem:[%s199 + $0x2c0] sm:$0xff]
        %v327 = vld [vmem:[%s199 + $0x2c8] sm:$0xff]
        %v328 = vld [vmem:[%s199 + $0x2d0] sm:$0xff]
        %v329 = vld [vmem:[%s199 + $0x2d8] sm:$0xff]
        %v330 = vld [vmem:[%s199 + $0x2e0] sm:$0xff]
        %v331 = vld [vmem:[%s199 + $0x2e8] sm:$0xff]
        %v332 = vld [vmem:[%s199 + $0x2f0] sm:$0xff]
        %v333 = vld [vmem:[%s199 + $0x2f8] sm:$0xff]
        %v334 = vld [vmem:[%s199 + $0x300] sm:$0xff]
        %v335 = vld [vmem:[%s199 + $0x308] sm:$0xff]
        %v336 = vld [vmem:[%s199 + $0x310] sm:$0xff]
        %v337 = vld [vmem:[%s199 + $0x318] sm:$0xff]
        %v338 = vld [vmem:[%s199 + $0x320] sm:$0xff]
        %v339 = vld [vmem:[%s199 + $0x328] sm:$0xff]
        %v340 = vld [vmem:[%s199 + $0x330] sm:$0xff]
        %v341 = vld [vmem:[%s199 + $0x338] sm:$0xff]
        %v342 = vld [vmem:[%s199 + $0x340] sm:$0xff]
        %v343 = vld [vmem:[%s199 + $0x348] sm:$0xff]
        %v344 = vld [vmem:[%s199 + $0x350] sm:$0xff]
        %v345 = vld [vmem:[%s199 + $0x358] sm:$0xff]
        %v346 = vld [vmem:[%s199 + $0x360] sm:$0xff]
        %v347 = vld [vmem:[%s199 + $0x368] sm:$0xff]
        %v348 = vld [vmem:[%s199 + $0x370] sm:$0xff]
        %v349 = vld [vmem:[%s199 + $0x378] sm:$0xff]
        %v350 = vld [vmem:[%s199 + $0x380] sm:$0xff]
        %v351 = vld [vmem:[%s199 + $0x388] sm:$0xff]
        %v352 = vld [vmem:[%s199 + $0x390] sm:$0xff]
        %v353 = vld [vmem:[%s199 + $0x398] sm:$0xff]
        %v354 = vld [vmem:[%s199 + $0x3a0] sm:$0xff]
        %v355 = vld [vmem:[%s199 + $0x3a8] sm:$0xff]
        %v356 = vld [vmem:[%s199 + $0x3b0] sm:$0xff]
        %v357 = vld [vmem:[%s199 + $0x3b8] sm:$0xff]
        %v358 = vld [vmem:[%s199 + $0x3c0] sm:$0xff]
        %v359 = vld [vmem:[%s199 + $0x3c8] sm:$0xff]
        %v360 = vld [vmem:[%s199 + $0x3d0] sm:$0xff]
        %v361 = vld [vmem:[%s199 + $0x3d8] sm:$0xff]
        %v362 = vld [vmem:[%s199 + $0x3e0] sm:$0xff]
        %v363 = vld [vmem:[%s199 + $0x3e8] sm:$0xff]
        %v364 = vld [vmem:[%s199 + $0x3f0] sm:$0xff]
        %v365 = vld [vmem:[%s199 + $0x3f8] sm:$0xff]
        %v366 = vld [vmem:[%s199 + $0x400] sm:$0xff]
        %v367 = vld [vmem:[%s199 + $0x408] sm:$0xff]
        %v368 = vld [vmem:[%s199 + $0x410] sm:$0xff]
        %v369 = vld [vmem:[%s199 + $0x418] sm:$0xff]
        %v370 = vld [vmem:[%s199 + $0x420] sm:$0xff]
        %v371 = vld [vmem:[%s199 + $0x428] sm:$0xff]
        %v372 = vld [vmem:[%s199 + $0x430] sm:$0xff]
        %v373 = vld [vmem:[%s199 + $0x438] sm:$0xff]
        %v374 = vld [vmem:[%s199 + $0x440] sm:$0xff]
        %v375 = vld [vmem:[%s199 + $0x448] sm:$0xff]
        %v376 = vld [vmem:[%s199 + $0x450] sm:$0xff]
        %v377 = vld [vmem:[%s199 + $0x458] sm:$0xff]
        %v378 = vld [vmem:[%s199 + $0x460] sm:$0xff]
        %v379 = vld [vmem:[%s199 + $0x468] sm:$0xff]
        %v380 = vld [vmem:[%s199 + $0x470] sm:$0xff]
        %v381 = vld [vmem:[%s199 + $0x478] sm:$0xff]
        %v382 = vld [vmem:[%s199 + $0x480] sm:$0xff]
        %v383 = vld [vmem:[%s199 + $0x488] sm:$0xff]
        %v384 = vld [vmem:[%s199 + $0x490] sm:$0xff]
        %v385 = vld [vmem:[%s199 + $0x498] sm:$0xff]
        %v386 = vld [vmem:[%s199 + $0x4a0] sm:$0xff]
        %v387 = vld [vmem:[%s199 + $0x4a8] sm:$0xff]
        %v388 = vld [vmem:[%s199 + $0x4b0] sm:$0xff]
        %v389 = vld [vmem:[%s199 + $0x4b8] sm:$0xff]
        %v390 = vld [vmem:[%s199 + $0x4c0] sm:$0xff]
        %v391 = vld [vmem:[%s199 + $0x4c8] sm:$0xff]
        %v392 = vld [vmem:[%s199 + $0x4d0] sm:$0xff]
        %v393 = vld [vmem:[%s199 + $0x4d8] sm:$0xff]
        %v394 = vld [vmem:[%s199 + $0x4e0] sm:$0xff]
        %v395 = vld [vmem:[%s199 + $0x4e8] sm:$0xff]
        %v396 = vld [vmem:[%s199 + $0x4f0] sm:$0xff]
        %v397 = vld [vmem:[%s199 + $0x4f8] sm:$0xff]
        %v398 = vld [vmem:[%s199 + $0x500] sm:$0xff]
        %v399 = vld [vmem:[%s199 + $0x508] sm:$0xff]
        %v400 = vld [vmem:[%s199 + $0x510] sm:$0xff]
        %v401 = vld [vmem:[%s199 + $0x518] sm:$0xff]
        %v402 = vld [vmem:[%s199 + $0x520] sm:$0xff]
        %v403 = vld [vmem:[%s199 + $0x528] sm:$0xff]
        %v404 = vld [vmem:[%s199 + $0x530] sm:$0xff]
        %v405 = vld [vmem:[%s199 + $0x538] sm:$0xff]
        %v406 = vld [vmem:[%s199 + $0x540] sm:$0xff]
        %v407 = vld [vmem:[%s199 + $0x548] sm:$0xff]
        %v408 = vld [vmem:[%s199 + $0x550] sm:$0xff]
        %v409 = vld [vmem:[%s199 + $0x558] sm:$0xff]
        %v410 = vld [vmem:[%s199 + $0x560] sm:$0xff]
        %v411 = vld [vmem:[%s199 + $0x568] sm:$0xff]
        %v412 = vld [vmem:[%s199 + $0x570] sm:$0xff]
        %v413 = vld [vmem:[%s199 + $0x578] sm:$0xff]
        %v414 = vld [vmem:[%s199 + $0x580] sm:$0xff]
        %v415 = vld [vmem:[%s199 + $0x588] sm:$0xff]
        %v416 = vld [vmem:[%s199 + $0x590] sm:$0xff]
        %v417 = vld [vmem:[%s199 + $0x598] sm:$0xff]
        %v418 = vld [vmem:[%s199 + $0x5a0] sm:$0xff]
        %v419 = vld [vmem:[%s199 + $0x5a8] sm:$0xff]
        %v420 = vld [vmem:[%s199 + $0x5b0] sm:$0xff]
        %v421 = vld [vmem:[%s199 + $0x5b8] sm:$0xff]
        %v422 = vld [vmem:[%s199 + $0x5c0] sm:$0xff]
        %v423 = vld [vmem:[%s199 + $0x5c8] sm:$0xff]
        %v424 = vld [vmem:[%s199 + $0x5d0] sm:$0xff]
        %v425 = vld [vmem:[%s199 + $0x5d8] sm:$0xff]
        %v426 = vld [vmem:[%s199 + $0x5e0] sm:$0xff]
        %v427 = vld [vmem:[%s199 + $0x5e8] sm:$0xff]
        %v428 = vld [vmem:[%s199 + $0x5f0] sm:$0xff]
        %v429 = vld [vmem:[%s199 + $0x5f8] sm:$0xff]
        %v430 = vld [vmem:[%s199 + $0x600] sm:$0xff]
        %v431 = vld [vmem:[%s199 + $0x608] sm:$0xff]
        %v432 = vld [vmem:[%s199 + $0x610] sm:$0xff]
        %v433 = vld [vmem:[%s199 + $0x618] sm:$0xff]
        %v434 = vld [vmem:[%s199 + $0x620] sm:$0xff]
        %v435 = vld [vmem:[%s199 + $0x628] sm:$0xff]
        %v436 = vld [vmem:[%s199 + $0x630] sm:$0xff]
        %v437 = vld [vmem:[%s199 + $0x638] sm:$0xff]
        %v438 = vld [vmem:[%s199 + $0x640] sm:$0xff]
        %v439 = vld [vmem:[%s199 + $0x648] sm:$0xff]
        %v440 = vld [vmem:[%s199 + $0x650] sm:$0xff]
        %v441 = vld [vmem:[%s199 + $0x658] sm:$0xff]
        %v442 = vld [vmem:[%s199 + $0x660] sm:$0xff]
        %v443 = vld [vmem:[%s199 + $0x668] sm:$0xff]
        %v444 = vld [vmem:[%s199 + $0x670] sm:$0xff]
        %v445 = vld [vmem:[%s199 + $0x678] sm:$0xff]
        %v446 = vld [vmem:[%s199 + $0x680] sm:$0xff]
        %v447 = vld [vmem:[%s199 + $0x688] sm:$0xff]
        %v448 = vld [vmem:[%s199 + $0x690] sm:$0xff]
        %v449 = vld [vmem:[%s199 + $0x698] sm:$0xff]
        %v450 = vld [vmem:[%s199 + $0x6a0] sm:$0xff]
        %v451 = vld [vmem:[%s199 + $0x6a8] sm:$0xff]
        %v452 = vld [vmem:[%s199 + $0x6b0] sm:$0xff]
        %v453 = vld [vmem:[%s199 + $0x6b8] sm:$0xff]
        %v454 = vld [vmem:[%s199 + $0x6c0] sm:$0xff]
        %v455 = vld [vmem:[%s199 + $0x6c8] sm:$0xff]
        %v456 = vld [vmem:[%s199 + $0x6d0] sm:$0xff]
        %v457 = vld [vmem:[%s199 + $0x6d8] sm:$0xff]
        %v458 = vld [vmem:[%s199 + $0x6e0] sm:$0xff]
        %v459 = vld [vmem:[%s199 + $0x6e8] sm:$0xff]
        %v460 = vld [vmem:[%s199 + $0x6f0] sm:$0xff]
        %v461 = vld [vmem:[%s199 + $0x6f8] sm:$0xff]
        %v462 = vld [vmem:[%s199 + $0x700] sm:$0xff]
        %v463 = vld [vmem:[%s199 + $0x708] sm:$0xff]
        %v464 = vld [vmem:[%s199 + $0x710] sm:$0xff]
        %v465 = vld [vmem:[%s199 + $0x718] sm:$0xff]
        %v466 = vld [vmem:[%s199 + $0x720] sm:$0xff]
        %v467 = vld [vmem:[%s199 + $0x728] sm:$0xff]
        %v468 = vld [vmem:[%s199 + $0x730] sm:$0xff]
        %v469 = vld [vmem:[%s199 + $0x738] sm:$0xff]
        %v470 = vld [vmem:[%s199 + $0x740] sm:$0xff]
        %v471 = vld [vmem:[%s199 + $0x748] sm:$0xff]
        %v472 = vld [vmem:[%s199 + $0x750] sm:$0xff]
        %v473 = vld [vmem:[%s199 + $0x758] sm:$0xff]
        %v474 = vld [vmem:[%s199 + $0x760] sm:$0xff]
        %v475 = vld [vmem:[%s199 + $0x768] sm:$0xff]
        %v476 = vld [vmem:[%s199 + $0x770] sm:$0xff]
        %v477 = vld [vmem:[%s199 + $0x778] sm:$0xff]
        %v478 = vld [vmem:[%s199 + $0x780] sm:$0xff]
        %v479 = vld [vmem:[%s199 + $0x788] sm:$0xff]
        %v480 = vld [vmem:[%s199 + $0x790] sm:$0xff]
        %v481 = vld [vmem:[%s199 + $0x798] sm:$0xff]
        %v482 = vld [vmem:[%s199 + $0x7a0] sm:$0xff]
        %v483 = vld [vmem:[%s199 + $0x7a8] sm:$0xff]
        %v484 = vld [vmem:[%s199 + $0x7b0] sm:$0xff]
        %v485 = vld [vmem:[%s199 + $0x7b8] sm:$0xff]
        %v486 = vld [vmem:[%s199 + $0x7c0] sm:$0xff]
        %v487 = vld [vmem:[%s199 + $0x7c8] sm:$0xff]
        %v488 = vld [vmem:[%s199 + $0x7d0] sm:$0xff]
        %v489 = vld [vmem:[%s199 + $0x7d8] sm:$0xff]
        %v490 = vld [vmem:[%s199 + $0x7e0] sm:$0xff]
        %v491 = vld [vmem:[%s199 + $0x7e8] sm:$0xff]
        %v492 = vld [vmem:[%s199 + $0x7f0] sm:$0xff]
        %v493 = vld [vmem:[%s199 + $0x7f8] sm:$0xff]
        %v494 = vld [vmem:[%s199 + $0x800] sm:$0xff]
        %v495 = vld [vmem:[%s199 + $0x808] sm:$0xff]
        %v496 = vld [vmem:[%s199 + $0x810] sm:$0xff]
        %v497 = vld [vmem:[%s199 + $0x818] sm:$0xff]
        %v498 = vld [vmem:[%s199 + $0x820] sm:$0xff]
        %v499 = vld [vmem:[%s199 + $0x828] sm:$0xff]
        %v500 = vld [vmem:[%s199 + $0x830] sm:$0xff]
        %v501 = vld [vmem:[%s199 + $0x838] sm:$0xff]
        %v502 = vld [vmem:[%s199 + $0x840] sm:$0xff]
        %v503 = vld [vmem:[%s199 + $0x848] sm:$0xff]
        %v504 = vld [vmem:[%s199 + $0x850] sm:$0xff]
        %v505 = vld [vmem:[%s199 + $0x858] sm:$0xff]
        %v506 = vld [vmem:[%s199 + $0x860] sm:$0xff]
        %v507 = vld [vmem:[%s199 + $0x868] sm:$0xff]
        %v508 = vld [vmem:[%s199 + $0x870] sm:$0xff]
        %v509 = vld [vmem:[%s199 + $0x878] sm:$0xff]
        %v510 = vld [vmem:[%s199 + $0x880] sm:$0xff]
        %v511 = vld [vmem:[%s199 + $0x888] sm:$0xff]
        %v512 = vld [vmem:[%s199 + $0x890] sm:$0xff]
        %v513 = vld [vmem:[%s199 + $0x898] sm:$0xff]
        %v514 = vld [vmem:[%s199 + $0x8a0] sm:$0xff]
        %v515 = vld [vmem:[%s199 + $0x8a8] sm:$0xff]
        %v516 = vld [vmem:[%s199 + $0x8b0] sm:$0xff]
        %v517 = vld [vmem:[%s199 + $0x8b8] sm:$0xff]
        %v518 = vld [vmem:[%s199 + $0x8c0] sm:$0xff]
        %v519 = vld [vmem:[%s199 + $0x8c8] sm:$0xff]
        %v520 = vld [vmem:[%s199 + $0x8d0] sm:$0xff]
        %v521 = vld [vmem:[%s199 + $0x8d8] sm:$0xff]
        %v522 = vld [vmem:[%s199 + $0x8e0] sm:$0xff]
        %v523 = vld [vmem:[%s199 + $0x8e8] sm:$0xff]
        %v524 = vld [vmem:[%s199 + $0x8f0] sm:$0xff]
        %v525 = vld [vmem:[%s199 + $0x8f8] sm:$0xff]
        %v526 = vld [vmem:[%s199 + $0x900] sm:$0xff]
        %v527 = vld [vmem:[%s199 + $0x908] sm:$0xff]
        %v528 = vld [vmem:[%s199 + $0x910] sm:$0xff]
        %v529 = vld [vmem:[%s199 + $0x918] sm:$0xff]
        %v530 = vld [vmem:[%s199 + $0x920] sm:$0xff]
        %v531 = vld [vmem:[%s199 + $0x928] sm:$0xff]
        %v532 = vld [vmem:[%s199 + $0x930] sm:$0xff]
        %v533 = vld [vmem:[%s199 + $0x938] sm:$0xff]
        %v534 = vld [vmem:[%s199 + $0x940] sm:$0xff]
        %v535 = vld [vmem:[%s199 + $0x948] sm:$0xff]
        %v536 = vld [vmem:[%s199 + $0x950] sm:$0xff]
        %v537 = vld [vmem:[%s199 + $0x958] sm:$0xff]
        %v538 = vld [vmem:[%s199 + $0x960] sm:$0xff]
        %v539 = vld [vmem:[%s199 + $0x968] sm:$0xff]
        %v540 = vld [vmem:[%s199 + $0x970] sm:$0xff]
        %v541 = vld [vmem:[%s199 + $0x978] sm:$0xff]
        %v542 = vld [vmem:[%s199 + $0x980] sm:$0xff]
        %v543 = vld [vmem:[%s199 + $0x988] sm:$0xff]
        %v544 = vld [vmem:[%s199 + $0x990] sm:$0xff]
        %v545 = vld [vmem:[%s199 + $0x998] sm:$0xff]
        %v546 = vld [vmem:[%s199 + $0x9a0] sm:$0xff]
        %v547 = vld [vmem:[%s199 + $0x9a8] sm:$0xff]
        %v548 = vld [vmem:[%s199 + $0x9b0] sm:$0xff]
        %v549 = vld [vmem:[%s199 + $0x9b8] sm:$0xff]
        %v550 = vld [vmem:[%s199 + $0x9c0] sm:$0xff]
        %v551 = vld [vmem:[%s199 + $0x9c8] sm:$0xff]
        %v552 = vld [vmem:[%s199 + $0x9d0] sm:$0xff]
        %v553 = vld [vmem:[%s199 + $0x9d8] sm:$0xff]
        %v554 = vld [vmem:[%s199 + $0x9e0] sm:$0xff]
        %v555 = vld [vmem:[%s199 + $0x9e8] sm:$0xff]
        %v556 = vld [vmem:[%s199 + $0x9f0] sm:$0xff]
        %v557 = vld [vmem:[%s199 + $0x9f8] sm:$0xff]
        %v558 = vld [vmem:[%s199 + $0xa00] sm:$0xff]
        %v559 = vld [vmem:[%s199 + $0xa08] sm:$0xff]
        %v560 = vld [vmem:[%s199 + $0xa10] sm:$0xff]
        %v561 = vld [vmem:[%s199 + $0xa18] sm:$0xff]
        %v562 = vld [vmem:[%s199 + $0xa20] sm:$0xff]
        %v563 = vld [vmem:[%s199 + $0xa28] sm:$0xff]
        %v564 = vld [vmem:[%s199 + $0xa30] sm:$0xff]
        %v565 = vld [vmem:[%s199 + $0xa38] sm:$0xff]
        %v566 = vld [vmem:[%s199 + $0xa40] sm:$0xff]
        %v567 = vld [vmem:[%s199 + $0xa48] sm:$0xff]
        %v568 = vld [vmem:[%s199 + $0xa50] sm:$0xff]
        %v569 = vld [vmem:[%s199 + $0xa58] sm:$0xff]
        %v570 = vld [vmem:[%s199 + $0xa60] sm:$0xff]
        %v571 = vld [vmem:[%s199 + $0xa68] sm:$0xff]
        %v572 = vld [vmem:[%s199 + $0xa70] sm:$0xff]
        %v573 = vld [vmem:[%s199 + $0xa78] sm:$0xff]
        %v574 = vld [vmem:[%s199 + $0xa80] sm:$0xff]
        %v575 = vld [vmem:[%s199 + $0xa88] sm:$0xff]
        %v576 = vld [vmem:[%s199 + $0xa90] sm:$0xff]
        %v577 = vld [vmem:[%s199 + $0xa98] sm:$0xff]
        %v578 = vld [vmem:[%s199 + $0xaa0] sm:$0xff]
        %v579 = vld [vmem:[%s199 + $0xaa8] sm:$0xff]
        %v580 = vld [vmem:[%s199 + $0xab0] sm:$0xff]
        %v581 = vld [vmem:[%s199 + $0xab8] sm:$0xff]
        %v582 = vld [vmem:[%s199 + $0xac0] sm:$0xff]
        %v583 = vld [vmem:[%s199 + $0xac8] sm:$0xff]
        %v584 = vld [vmem:[%s199 + $0xad0] sm:$0xff]
        %v585 = vld [vmem:[%s199 + $0xad8] sm:$0xff]
        %v586 = vld [vmem:[%s199 + $0xae0] sm:$0xff]
        %v587 = vld [vmem:[%s199 + $0xae8] sm:$0xff]
        %v588 = vld [vmem:[%s199 + $0xaf0] sm:$0xff]
        %v589 = vld [vmem:[%s199 + $0xaf8] sm:$0xff]
        %v590 = vld [vmem:[%s199 + $0xb00] sm:$0xff]
        %v591 = vld [vmem:[%s199 + $0xb08] sm:$0xff]
        %v592 = vld [vmem:[%s199 + $0xb10] sm:$0xff]
        %v593 = vld [vmem:[%s199 + $0xb18] sm:$0xff]
        %v594 = vld [vmem:[%s199 + $0xb20] sm:$0xff]
        %v595 = vld [vmem:[%s199 + $0xb28] sm:$0xff]
        %v596 = vld [vmem:[%s199 + $0xb30] sm:$0xff]
        %v597 = vld [vmem:[%s199 + $0xb38] sm:$0xff]
        %v598 = vld [vmem:[%s199 + $0xb40] sm:$0xff]
        %v599 = vld [vmem:[%s199 + $0xb48] sm:$0xff]
        %v600 = vld [vmem:[%s199 + $0xb50] sm:$0xff]
        %v601 = vld [vmem:[%s199 + $0xb58] sm:$0xff]
        %v602 = vld [vmem:[%s199 + $0xb60] sm:$0xff]
        %v603 = vld [vmem:[%s199 + $0xb68] sm:$0xff]
        %v604 = vld [vmem:[%s199 + $0xb70] sm:$0xff]
        %v605 = vld [vmem:[%s199 + $0xb78] sm:$0xff]
        %v606 = vld [vmem:[%s199 + $0xb80] sm:$0xff]
        %v607 = vld [vmem:[%s199 + $0xb88] sm:$0xff]
        %v608 = vld [vmem:[%s199 + $0xb90] sm:$0xff]
        %v609 = vld [vmem:[%s199 + $0xb98] sm:$0xff]
        %v610 = vld [vmem:[%s199 + $0xba0] sm:$0xff]
        %v611 = vld [vmem:[%s199 + $0xba8] sm:$0xff]
        %v612 = vld [vmem:[%s199 + $0xbb0] sm:$0xff]
        %v613 = vld [vmem:[%s199 + $0xbb8] sm:$0xff]
        %v614 = vld [vmem:[%s199 + $0xbc0] sm:$0xff]
        %v615 = vld [vmem:[%s199 + $0xbc8] sm:$0xff]
        %v616 = vld [vmem:[%s199 + $0xbd0] sm:$0xff]
        %v617 = vld [vmem:[%s199 + $0xbd8] sm:$0xff]
        %v618 = vld [vmem:[%s199 + $0xbe0] sm:$0xff]
        %v619 = vld [vmem:[%s199 + $0xbe8] sm:$0xff]
        %v620 = vld [vmem:[%s199 + $0xbf0] sm:$0xff]
        %v621 = vld [vmem:[%s199 + $0xbf8] sm:$0xff]
        %v622 = vld [vmem:[%s199 + $0xc00] sm:$0xff]
        %v623 = vld [vmem:[%s199 + $0xc08] sm:$0xff]
        %v624 = vld [vmem:[%s199 + $0xc10] sm:$0xff]
        %v625 = vld [vmem:[%s199 + $0xc18] sm:$0xff]
        %v626 = vld [vmem:[%s199 + $0xc20] sm:$0xff]
        %v627 = vld [vmem:[%s199 + $0xc28] sm:$0xff]
        %v628 = vld [vmem:[%s199 + $0xc30] sm:$0xff]
        %v629 = vld [vmem:[%s199 + $0xc38] sm:$0xff]
        %v630 = vld [vmem:[%s199 + $0xc40] sm:$0xff]
        %v631 = vld [vmem:[%s199 + $0xc48] sm:$0xff]
        %v632 = vld [vmem:[%s199 + $0xc50] sm:$0xff]
        %v633 = vld [vmem:[%s199 + $0xc58] sm:$0xff]
        %v634 = vld [vmem:[%s199 + $0xc60] sm:$0xff]
        %v635 = vld [vmem:[%s199 + $0xc68] sm:$0xff]
        %v636 = vld [vmem:[%s199 + $0xc70] sm:$0xff]
        %v637 = vld [vmem:[%s199 + $0xc78] sm:$0xff]
        %v638 = vld [vmem:[%s199 + $0xc80] sm:$0xff]
        %v639 = vld [vmem:[%s199 + $0xc88] sm:$0xff]
        %v640 = vld [vmem:[%s199 + $0xc90] sm:$0xff]
        %v641 = vld [vmem:[%s199 + $0xc98] sm:$0xff]
        %v642 = vld [vmem:[%s199 + $0xca0] sm:$0xff]
        %v643 = vld [vmem:[%s199 + $0xca8] sm:$0xff]
        %v644 = vld [vmem:[%s199 + $0xcb0] sm:$0xff]
        %v645 = vld [vmem:[%s199 + $0xcb8] sm:$0xff]
        %v646 = vld [vmem:[%s199 + $0xcc0] sm:$0xff]
        %v647 = vld [vmem:[%s199 + $0xcc8] sm:$0xff]
        %v648 = vld [vmem:[%s199 + $0xcd0] sm:$0xff]
        %v649 = vld [vmem:[%s199 + $0xcd8] sm:$0xff]
        %v650 = vld [vmem:[%s199 + $0xce0] sm:$0xff]
        %v651 = vld [vmem:[%s199 + $0xce8] sm:$0xff]
        %v652 = vld [vmem:[%s199 + $0xcf0] sm:$0xff]
        %v653 = vld [vmem:[%s199 + $0xcf8] sm:$0xff]
        %v654 = vld [vmem:[%s199 + $0xd00] sm:$0xff]
        %v655 = vld [vmem:[%s199 + $0xd08] sm:$0xff]
        %v656 = vld [vmem:[%s199 + $0xd10] sm:$0xff]
        %v657 = vld [vmem:[%s199 + $0xd18] sm:$0xff]
        %v658 = vld [vmem:[%s199 + $0xd20] sm:$0xff]
        %v659 = vld [vmem:[%s199 + $0xd28] sm:$0xff]
        %v660 = vld [vmem:[%s199 + $0xd30] sm:$0xff]
        %v661 = vld [vmem:[%s199 + $0xd38] sm:$0xff]
        %v662 = vld [vmem:[%s199 + $0xd40] sm:$0xff]
        %v663 = vld [vmem:[%s199 + $0xd48] sm:$0xff]
        %v664 = vld [vmem:[%s199 + $0xd50] sm:$0xff]
        %v665 = vld [vmem:[%s199 + $0xd58] sm:$0xff]
        %v666 = vld [vmem:[%s199 + $0xd60] sm:$0xff]
        %v667 = vld [vmem:[%s199 + $0xd68] sm:$0xff]
        %v668 = vld [vmem:[%s199 + $0xd70] sm:$0xff]
        %v669 = vld [vmem:[%s199 + $0xd78] sm:$0xff]
        %v670 = vld [vmem:[%s199 + $0xd80] sm:$0xff]
        %v671 = vld [vmem:[%s199 + $0xd88] sm:$0xff]
        %v672 = vld [vmem:[%s199 + $0xd90] sm:$0xff]
        %v673 = vld [vmem:[%s199 + $0xd98] sm:$0xff]
        %v674 = vld [vmem:[%s199 + $0xda0] sm:$0xff]
        %v675 = vld [vmem:[%s199 + $0xda8] sm:$0xff]
        %v676 = vld [vmem:[%s199 + $0xdb0] sm:$0xff]
        %v677 = vld [vmem:[%s199 + $0xdb8] sm:$0xff]
        %v678 = vld [vmem:[%s199 + $0xdc0] sm:$0xff]
        %v679 = vld [vmem:[%s199 + $0xdc8] sm:$0xff]
        %v680 = vld [vmem:[%s199 + $0xdd0] sm:$0xff]
        %v681 = vld [vmem:[%s199 + $0xdd8] sm:$0xff]
        %v682 = vld [vmem:[%s199 + $0xde0] sm:$0xff]
        %v683 = vld [vmem:[%s199 + $0xde8] sm:$0xff]
        %v684 = vld [vmem:[%s199 + $0xdf0] sm:$0xff]
        %v685 = vld [vmem:[%s199 + $0xdf8] sm:$0xff]
        %v686 = vld [vmem:[%s199 + $0xe00] sm:$0xff]
        %v687 = vld [vmem:[%s199 + $0xe08] sm:$0xff]
        %v688 = vld [vmem:[%s199 + $0xe10] sm:$0xff]
        %v689 = vld [vmem:[%s199 + $0xe18] sm:$0xff]
        %v690 = vld [vmem:[%s199 + $0xe20] sm:$0xff]
        %v691 = vld [vmem:[%s199 + $0xe28] sm:$0xff]
        %v692 = vld [vmem:[%s199 + $0xe30] sm:$0xff]
        %v693 = vld [vmem:[%s199 + $0xe38] sm:$0xff]
        %v694 = vld [vmem:[%s199 + $0xe40] sm:$0xff]
        %v695 = vld [vmem:[%s199 + $0xe48] sm:$0xff]
        %v696 = vld [vmem:[%s199 + $0xe50] sm:$0xff]
        %v697 = vld [vmem:[%s199 + $0xe58] sm:$0xff]
        %v698 = vld [vmem:[%s199 + $0xe60] sm:$0xff]
        %v699 = vld [vmem:[%s199 + $0xe68] sm:$0xff]
        %v700 = vld [vmem:[%s199 + $0xe70] sm:$0xff]
        %v701 = vld [vmem:[%s199 + $0xe78] sm:$0xff]
        %v702 = vld [vmem:[%s199 + $0xe80] sm:$0xff]
        %v703 = vld [vmem:[%s199 + $0xe88] sm:$0xff]
        %v704 = vld [vmem:[%s199 + $0xe90] sm:$0xff]
        %v705 = vld [vmem:[%s199 + $0xe98] sm:$0xff]
        %v706 = vld [vmem:[%s199 + $0xea0] sm:$0xff]
        %v707 = vld [vmem:[%s199 + $0xea8] sm:$0xff]
        %v708 = vld [vmem:[%s199 + $0xeb0] sm:$0xff]
        %v709 = vld [vmem:[%s199 + $0xeb8] sm:$0xff]
        %v710 = vld [vmem:[%s199 + $0xec0] sm:$0xff]
        %v711 = vld [vmem:[%s199 + $0xec8] sm:$0xff]
        %v712 = vld [vmem:[%s199 + $0xed0] sm:$0xff]
        %v713 = vld [vmem:[%s199 + $0xed8] sm:$0xff]
        %v714 = vld [vmem:[%s199 + $0xee0] sm:$0xff]
        %v715 = vld [vmem:[%s199 + $0xee8] sm:$0xff]
        %v716 = vld [vmem:[%s199 + $0xef0] sm:$0xff]
        %v717 = vld [vmem:[%s199 + $0xef8] sm:$0xff]
        %v718 = vld [vmem:[%s199 + $0xf00] sm:$0xff]
        %v719 = vld [vmem:[%s199 + $0xf08] sm:$0xff]
        %v720 = vld [vmem:[%s199 + $0xf10] sm:$0xff]
        %v721 = vld [vmem:[%s199 + $0xf18] sm:$0xff]
        %v722 = vld [vmem:[%s199 + $0xf20] sm:$0xff]
        %v723 = vld [vmem:[%s199 + $0xf28] sm:$0xff]
        %v724 = vld [vmem:[%s199 + $0xf30] sm:$0xff]
        %v725 = vld [vmem:[%s199 + $0xf38] sm:$0xff]
        %v726 = vld [vmem:[%s199 + $0xf40] sm:$0xff]
        %v727 = vld [vmem:[%s199 + $0xf48] sm:$0xff]
        %v728 = vld [vmem:[%s199 + $0xf50] sm:$0xff]
        %v729 = vld [vmem:[%s199 + $0xf58] sm:$0xff]
        %v730 = vld [vmem:[%s199 + $0xf60] sm:$0xff]
        %v731 = vld [vmem:[%s199 + $0xf68] sm:$0xff]
        %v732 = vld [vmem:[%s199 + $0xf70] sm:$0xff]
        %v733 = vld [vmem:[%s199 + $0xf78] sm:$0xff]
        %v734 = vld [vmem:[%s199 + $0xf80] sm:$0xff]
        %v735 = vld [vmem:[%s199 + $0xf88] sm:$0xff]
        %v736 = vld [vmem:[%s199 + $0xf90] sm:$0xff]
        %v737 = vld [vmem:[%s199 + $0xf98] sm:$0xff]
        %v738 = vld [vmem:[%s199 + $0xfa0] sm:$0xff]
        %v739 = vld [vmem:[%s199 + $0xfa8] sm:$0xff]
        %v740 = vld [vmem:[%s199 + $0xfb0] sm:$0xff]
        %v741 = vld [vmem:[%s199 + $0xfb8] sm:$0xff]
        %v742 = vld [vmem:[%s199 + $0xfc0] sm:$0xff]
        %v743 = vld [vmem:[%s199 + $0xfc8] sm:$0xff]
        %v744 = vld [vmem:[%s199 + $0xfd0] sm:$0xff]
        %v745 = vld [vmem:[%s199 + $0xfd8] sm:$0xff]
        %v746 = vld [vmem:[%s199 + $0xfe0] sm:$0xff]
        %v747 = vld [vmem:[%s199 + $0xfe8] sm:$0xff]
        %v748 = vld [vmem:[%s199 + $0xff0] sm:$0xff]
        %v749 = vld [vmem:[%s199 + $0xff8] sm:$0xff]
        %750 = vadd.xlane.f32.xlu0 %v238
        %v751 = vpop.xlane.xlu0 %750
        %752 = vadd.xlane.f32.xlu0 %v239
        %v753 = vpop.xlane.xlu0 %752
        %754 = vadd.xlane.f32.xlu0 %v240
        %v755 = vpop.xlane.xlu0 %754
        %756 = vadd.xlane.f32.xlu0 %v241
        %v757 = vpop.xlane.xlu0 %756
        %758 = vadd.xlane.f32.xlu0 %v242
        %v759 = vpop.xlane.xlu0 %758
        %760 = vadd.xlane.f32.xlu0 %v243
        %v761 = vpop.xlane.xlu0 %760
        %762 = vadd.xlane.f32.xlu0 %v244
        %v763 = vpop.xlane.xlu0 %762
        %764 = vadd.xlane.f32.xlu0 %v245
        %v765 = vpop.xlane.xlu0 %764
        %766 = vadd.xlane.f32.xlu0 %v246
        %v767 = vpop.xlane.xlu0 %766
        %768 = vadd.xlane.f32.xlu0 %v247
        %v769 = vpop.xlane.xlu0 %768
        %770 = vadd.xlane.f32.xlu0 %v248
        %v771 = vpop.xlane.xlu0 %770
        %772 = vadd.xlane.f32.xlu0 %v249
        %v773 = vpop.xlane.xlu0 %772
        %774 = vadd.xlane.f32.xlu0 %v250
        %v775 = vpop.xlane.xlu0 %774
        %776 = vadd.xlane.f32.xlu0 %v251
        %v777 = vpop.xlane.xlu0 %776
        %778 = vadd.xlane.f32.xlu0 %v252
        %v779 = vpop.xlane.xlu0 %778
        %780 = vadd.xlane.f32.xlu0 %v253
        %v781 = vpop.xlane.xlu0 %780
        %782 = vadd.xlane.f32.xlu0 %v254
        %v783 = vpop.xlane.xlu0 %782
        %784 = vadd.xlane.f32.xlu0 %v255
        %v785 = vpop.xlane.xlu0 %784
        %786 = vadd.xlane.f32.xlu0 %v256
        %v787 = vpop.xlane.xlu0 %786
        %788 = vadd.xlane.f32.xlu0 %v257
        %v789 = vpop.xlane.xlu0 %788
        %790 = vadd.xlane.f32.xlu0 %v258
        %v791 = vpop.xlane.xlu0 %790
        %792 = vadd.xlane.f32.xlu0 %v259
        %v793 = vpop.xlane.xlu0 %792
        %794 = vadd.xlane.f32.xlu0 %v260
        %v795 = vpop.xlane.xlu0 %794
        %796 = vadd.xlane.f32.xlu0 %v261
        %v797 = vpop.xlane.xlu0 %796
        %798 = vadd.xlane.f32.xlu0 %v262
        %v799 = vpop.xlane.xlu0 %798
        %800 = vadd.xlane.f32.xlu0 %v263
        %v801 = vpop.xlane.xlu0 %800
        %802 = vadd.xlane.f32.xlu0 %v264
        %v803 = vpop.xlane.xlu0 %802
        %804 = vadd.xlane.f32.xlu0 %v265
        %v805 = vpop.xlane.xlu0 %804
        %806 = vadd.xlane.f32.xlu0 %v266
        %v807 = vpop.xlane.xlu0 %806
        %808 = vadd.xlane.f32.xlu0 %v267
        %v809 = vpop.xlane.xlu0 %808
        %810 = vadd.xlane.f32.xlu0 %v268
        %v811 = vpop.xlane.xlu0 %810
        %812 = vadd.xlane.f32.xlu0 %v269
        %v813 = vpop.xlane.xlu0 %812
        %814 = vadd.xlane.f32.xlu0 %v270
        %v815 = vpop.xlane.xlu0 %814
        %816 = vadd.xlane.f32.xlu0 %v271
        %v817 = vpop.xlane.xlu0 %816
        %818 = vadd.xlane.f32.xlu0 %v272
        %v819 = vpop.xlane.xlu0 %818
        %820 = vadd.xlane.f32.xlu0 %v273
        %v821 = vpop.xlane.xlu0 %820
        %822 = vadd.xlane.f32.xlu0 %v274
        %v823 = vpop.xlane.xlu0 %822
        %824 = vadd.xlane.f32.xlu0 %v275
        %v825 = vpop.xlane.xlu0 %824
        %826 = vadd.xlane.f32.xlu0 %v276
        %v827 = vpop.xlane.xlu0 %826
        %828 = vadd.xlane.f32.xlu0 %v277
        %v829 = vpop.xlane.xlu0 %828
        %830 = vadd.xlane.f32.xlu0 %v278
        %v831 = vpop.xlane.xlu0 %830
        %832 = vadd.xlane.f32.xlu0 %v279
        %v833 = vpop.xlane.xlu0 %832
        %834 = vadd.xlane.f32.xlu0 %v280
        %v835 = vpop.xlane.xlu0 %834
        %836 = vadd.xlane.f32.xlu0 %v281
        %v837 = vpop.xlane.xlu0 %836
        %838 = vadd.xlane.f32.xlu0 %v282
        %v839 = vpop.xlane.xlu0 %838
        %840 = vadd.xlane.f32.xlu0 %v283
        %v841 = vpop.xlane.xlu0 %840
        %842 = vadd.xlane.f32.xlu0 %v284
        %v843 = vpop.xlane.xlu0 %842
        %844 = vadd.xlane.f32.xlu0 %v285
        %v845 = vpop.xlane.xlu0 %844
        %846 = vadd.xlane.f32.xlu0 %v286
        %v847 = vpop.xlane.xlu0 %846
        %848 = vadd.xlane.f32.xlu0 %v287
        %v849 = vpop.xlane.xlu0 %848
        %850 = vadd.xlane.f32.xlu0 %v288
        %v851 = vpop.xlane.xlu0 %850
        %852 = vadd.xlane.f32.xlu0 %v289
        %v853 = vpop.xlane.xlu0 %852
        %854 = vadd.xlane.f32.xlu0 %v290
        %v855 = vpop.xlane.xlu0 %854
        %856 = vadd.xlane.f32.xlu0 %v291
        %v857 = vpop.xlane.xlu0 %856
        %858 = vadd.xlane.f32.xlu0 %v292
        %v859 = vpop.xlane.xlu0 %858
        %860 = vadd.xlane.f32.xlu0 %v293
        %v861 = vpop.xlane.xlu0 %860
        %862 = vadd.xlane.f32.xlu0 %v294
        %v863 = vpop.xlane.xlu0 %862
        %864 = vadd.xlane.f32.xlu0 %v295
        %v865 = vpop.xlane.xlu0 %864
        %866 = vadd.xlane.f32.xlu0 %v296
        %v867 = vpop.xlane.xlu0 %866
        %868 = vadd.xlane.f32.xlu0 %v297
        %v869 = vpop.xlane.xlu0 %868
        %870 = vadd.xlane.f32.xlu0 %v298
        %v871 = vpop.xlane.xlu0 %870
        %872 = vadd.xlane.f32.xlu0 %v299
        %v873 = vpop.xlane.xlu0 %872
        %874 = vadd.xlane.f32.xlu0 %v300
        %v875 = vpop.xlane.xlu0 %874
        %876 = vadd.xlane.f32.xlu0 %v301
        %v877 = vpop.xlane.xlu0 %876
        %878 = vadd.xlane.f32.xlu0 %v302
        %v879 = vpop.xlane.xlu0 %878
        %880 = vadd.xlane.f32.xlu0 %v303
        %v881 = vpop.xlane.xlu0 %880
        %882 = vadd.xlane.f32.xlu0 %v304
        %v883 = vpop.xlane.xlu0 %882
        %884 = vadd.xlane.f32.xlu0 %v305
        %v885 = vpop.xlane.xlu0 %884
        %886 = vadd.xlane.f32.xlu0 %v306
        %v887 = vpop.xlane.xlu0 %886
        %888 = vadd.xlane.f32.xlu0 %v307
        %v889 = vpop.xlane.xlu0 %888
        %890 = vadd.xlane.f32.xlu0 %v308
        %v891 = vpop.xlane.xlu0 %890
        %892 = vadd.xlane.f32.xlu0 %v309
        %v893 = vpop.xlane.xlu0 %892
        %894 = vadd.xlane.f32.xlu0 %v310
        %v895 = vpop.xlane.xlu0 %894
        %896 = vadd.xlane.f32.xlu0 %v311
        %v897 = vpop.xlane.xlu0 %896
        %898 = vadd.xlane.f32.xlu0 %v312
        %v899 = vpop.xlane.xlu0 %898
        %900 = vadd.xlane.f32.xlu0 %v313
        %v901 = vpop.xlane.xlu0 %900
        %902 = vadd.xlane.f32.xlu0 %v314
        %v903 = vpop.xlane.xlu0 %902
        %904 = vadd.xlane.f32.xlu0 %v315
        %v905 = vpop.xlane.xlu0 %904
        %906 = vadd.xlane.f32.xlu0 %v316
        %v907 = vpop.xlane.xlu0 %906
        %908 = vadd.xlane.f32.xlu0 %v317
        %v909 = vpop.xlane.xlu0 %908
        %910 = vadd.xlane.f32.xlu0 %v318
        %v911 = vpop.xlane.xlu0 %910
        %912 = vadd.xlane.f32.xlu0 %v319
        %v913 = vpop.xlane.xlu0 %912
        %914 = vadd.xlane.f32.xlu0 %v320
        %v915 = vpop.xlane.xlu0 %914
        %916 = vadd.xlane.f32.xlu0 %v321
        %v917 = vpop.xlane.xlu0 %916
        %918 = vadd.xlane.f32.xlu0 %v322
        %v919 = vpop.xlane.xlu0 %918
        %920 = vadd.xlane.f32.xlu0 %v323
        %v921 = vpop.xlane.xlu0 %920
        %922 = vadd.xlane.f32.xlu0 %v324
        %v923 = vpop.xlane.xlu0 %922
        %924 = vadd.xlane.f32.xlu0 %v325
        %v925 = vpop.xlane.xlu0 %924
        %926 = vadd.xlane.f32.xlu0 %v326
        %v927 = vpop.xlane.xlu0 %926
        %928 = vadd.xlane.f32.xlu0 %v327
        %v929 = vpop.xlane.xlu0 %928
        %930 = vadd.xlane.f32.xlu0 %v328
        %v931 = vpop.xlane.xlu0 %930
        %932 = vadd.xlane.f32.xlu0 %v329
        %v933 = vpop.xlane.xlu0 %932
        %934 = vadd.xlane.f32.xlu0 %v330
        %v935 = vpop.xlane.xlu0 %934
        %936 = vadd.xlane.f32.xlu0 %v331
        %v937 = vpop.xlane.xlu0 %936
        %938 = vadd.xlane.f32.xlu0 %v332
        %v939 = vpop.xlane.xlu0 %938
        %940 = vadd.xlane.f32.xlu0 %v333
        %v941 = vpop.xlane.xlu0 %940
        %942 = vadd.xlane.f32.xlu0 %v334
        %v943 = vpop.xlane.xlu0 %942
        %944 = vadd.xlane.f32.xlu0 %v335
        %v945 = vpop.xlane.xlu0 %944
        %946 = vadd.xlane.f32.xlu0 %v336
        %v947 = vpop.xlane.xlu0 %946
        %948 = vadd.xlane.f32.xlu0 %v337
        %v949 = vpop.xlane.xlu0 %948
        %950 = vadd.xlane.f32.xlu0 %v338
        %v951 = vpop.xlane.xlu0 %950
        %952 = vadd.xlane.f32.xlu0 %v339
        %v953 = vpop.xlane.xlu0 %952
        %954 = vadd.xlane.f32.xlu0 %v340
        %v955 = vpop.xlane.xlu0 %954
        %956 = vadd.xlane.f32.xlu0 %v341
        %v957 = vpop.xlane.xlu0 %956
        %958 = vadd.xlane.f32.xlu0 %v342
        %v959 = vpop.xlane.xlu0 %958
        %960 = vadd.xlane.f32.xlu0 %v343
        %v961 = vpop.xlane.xlu0 %960
        %962 = vadd.xlane.f32.xlu0 %v344
        %v963 = vpop.xlane.xlu0 %962
        %964 = vadd.xlane.f32.xlu0 %v345
        %v965 = vpop.xlane.xlu0 %964
        %966 = vadd.xlane.f32.xlu0 %v346
        %v967 = vpop.xlane.xlu0 %966
        %968 = vadd.xlane.f32.xlu0 %v347
        %v969 = vpop.xlane.xlu0 %968
        %970 = vadd.xlane.f32.xlu0 %v348
        %v971 = vpop.xlane.xlu0 %970
        %972 = vadd.xlane.f32.xlu0 %v349
        %v973 = vpop.xlane.xlu0 %972
        %974 = vadd.xlane.f32.xlu0 %v350
        %v975 = vpop.xlane.xlu0 %974
        %976 = vadd.xlane.f32.xlu0 %v351
        %v977 = vpop.xlane.xlu0 %976
        %978 = vadd.xlane.f32.xlu0 %v352
        %v979 = vpop.xlane.xlu0 %978
        %980 = vadd.xlane.f32.xlu0 %v353
        %v981 = vpop.xlane.xlu0 %980
        %982 = vadd.xlane.f32.xlu0 %v354
        %v983 = vpop.xlane.xlu0 %982
        %984 = vadd.xlane.f32.xlu0 %v355
        %v985 = vpop.xlane.xlu0 %984
        %986 = vadd.xlane.f32.xlu0 %v356
        %v987 = vpop.xlane.xlu0 %986
        %988 = vadd.xlane.f32.xlu0 %v357
        %v989 = vpop.xlane.xlu0 %988
        %990 = vadd.xlane.f32.xlu0 %v358
        %v991 = vpop.xlane.xlu0 %990
        %992 = vadd.xlane.f32.xlu0 %v359
        %v993 = vpop.xlane.xlu0 %992
        %994 = vadd.xlane.f32.xlu0 %v360
        %v995 = vpop.xlane.xlu0 %994
        %996 = vadd.xlane.f32.xlu0 %v361
        %v997 = vpop.xlane.xlu0 %996
        %998 = vadd.xlane.f32.xlu0 %v362
        %v999 = vpop.xlane.xlu0 %998
        %1000 = vadd.xlane.f32.xlu0 %v363
        %v1001 = vpop.xlane.xlu0 %1000
        %1002 = vadd.xlane.f32.xlu0 %v364
        %v1003 = vpop.xlane.xlu0 %1002
        %1004 = vadd.xlane.f32.xlu0 %v365
        %v1005 = vpop.xlane.xlu0 %1004
        %1006 = vadd.xlane.f32.xlu0 %v366
        %v1007 = vpop.xlane.xlu0 %1006
        %1008 = vadd.xlane.f32.xlu0 %v367
        %v1009 = vpop.xlane.xlu0 %1008
        %1010 = vadd.xlane.f32.xlu0 %v368
        %v1011 = vpop.xlane.xlu0 %1010
        %1012 = vadd.xlane.f32.xlu0 %v369
        %v1013 = vpop.xlane.xlu0 %1012
        %1014 = vadd.xlane.f32.xlu0 %v370
        %v1015 = vpop.xlane.xlu0 %1014
        %1016 = vadd.xlane.f32.xlu0 %v371
        %v1017 = vpop.xlane.xlu0 %1016
        %1018 = vadd.xlane.f32.xlu0 %v372
        %v1019 = vpop.xlane.xlu0 %1018
        %1020 = vadd.xlane.f32.xlu0 %v373
        %v1021 = vpop.xlane.xlu0 %1020
        %1022 = vadd.xlane.f32.xlu0 %v374
        %v1023 = vpop.xlane.xlu0 %1022
        %1024 = vadd.xlane.f32.xlu0 %v375
        %v1025 = vpop.xlane.xlu0 %1024
        %1026 = vadd.xlane.f32.xlu0 %v376
        %v1027 = vpop.xlane.xlu0 %1026
        %1028 = vadd.xlane.f32.xlu0 %v377
        %v1029 = vpop.xlane.xlu0 %1028
        %1030 = vadd.xlane.f32.xlu0 %v378
        %v1031 = vpop.xlane.xlu0 %1030
        %1032 = vadd.xlane.f32.xlu0 %v379
        %v1033 = vpop.xlane.xlu0 %1032
        %1034 = vadd.xlane.f32.xlu0 %v380
        %v1035 = vpop.xlane.xlu0 %1034
        %1036 = vadd.xlane.f32.xlu0 %v381
        %v1037 = vpop.xlane.xlu0 %1036
        %1038 = vadd.xlane.f32.xlu0 %v382
        %v1039 = vpop.xlane.xlu0 %1038
        %1040 = vadd.xlane.f32.xlu0 %v383
        %v1041 = vpop.xlane.xlu0 %1040
        %1042 = vadd.xlane.f32.xlu0 %v384
        %v1043 = vpop.xlane.xlu0 %1042
        %1044 = vadd.xlane.f32.xlu0 %v385
        %v1045 = vpop.xlane.xlu0 %1044
        %1046 = vadd.xlane.f32.xlu0 %v386
        %v1047 = vpop.xlane.xlu0 %1046
        %1048 = vadd.xlane.f32.xlu0 %v387
        %v1049 = vpop.xlane.xlu0 %1048
        %1050 = vadd.xlane.f32.xlu0 %v388
        %v1051 = vpop.xlane.xlu0 %1050
        %1052 = vadd.xlane.f32.xlu0 %v389
        %v1053 = vpop.xlane.xlu0 %1052
        %1054 = vadd.xlane.f32.xlu0 %v390
        %v1055 = vpop.xlane.xlu0 %1054
        %1056 = vadd.xlane.f32.xlu0 %v391
        %v1057 = vpop.xlane.xlu0 %1056
        %1058 = vadd.xlane.f32.xlu0 %v392
        %v1059 = vpop.xlane.xlu0 %1058
        %1060 = vadd.xlane.f32.xlu0 %v393
        %v1061 = vpop.xlane.xlu0 %1060
        %1062 = vadd.xlane.f32.xlu0 %v394
        %v1063 = vpop.xlane.xlu0 %1062
        %1064 = vadd.xlane.f32.xlu0 %v395
        %v1065 = vpop.xlane.xlu0 %1064
        %1066 = vadd.xlane.f32.xlu0 %v396
        %v1067 = vpop.xlane.xlu0 %1066
        %1068 = vadd.xlane.f32.xlu0 %v397
        %v1069 = vpop.xlane.xlu0 %1068
        %1070 = vadd.xlane.f32.xlu0 %v398
        %v1071 = vpop.xlane.xlu0 %1070
        %1072 = vadd.xlane.f32.xlu0 %v399
        %v1073 = vpop.xlane.xlu0 %1072
        %1074 = vadd.xlane.f32.xlu0 %v400
        %v1075 = vpop.xlane.xlu0 %1074
        %1076 = vadd.xlane.f32.xlu0 %v401
        %v1077 = vpop.xlane.xlu0 %1076
        %1078 = vadd.xlane.f32.xlu0 %v402
        %v1079 = vpop.xlane.xlu0 %1078
        %1080 = vadd.xlane.f32.xlu0 %v403
        %v1081 = vpop.xlane.xlu0 %1080
        %1082 = vadd.xlane.f32.xlu0 %v404
        %v1083 = vpop.xlane.xlu0 %1082
        %1084 = vadd.xlane.f32.xlu0 %v405
        %v1085 = vpop.xlane.xlu0 %1084
        %1086 = vadd.xlane.f32.xlu0 %v406
        %v1087 = vpop.xlane.xlu0 %1086
        %1088 = vadd.xlane.f32.xlu0 %v407
        %v1089 = vpop.xlane.xlu0 %1088
        %1090 = vadd.xlane.f32.xlu0 %v408
        %v1091 = vpop.xlane.xlu0 %1090
        %1092 = vadd.xlane.f32.xlu0 %v409
        %v1093 = vpop.xlane.xlu0 %1092
        %1094 = vadd.xlane.f32.xlu0 %v410
        %v1095 = vpop.xlane.xlu0 %1094
        %1096 = vadd.xlane.f32.xlu0 %v411
        %v1097 = vpop.xlane.xlu0 %1096
        %1098 = vadd.xlane.f32.xlu0 %v412
        %v1099 = vpop.xlane.xlu0 %1098
        %1100 = vadd.xlane.f32.xlu0 %v413
        %v1101 = vpop.xlane.xlu0 %1100
        %1102 = vadd.xlane.f32.xlu0 %v414
        %v1103 = vpop.xlane.xlu0 %1102
        %1104 = vadd.xlane.f32.xlu0 %v415
        %v1105 = vpop.xlane.xlu0 %1104
        %1106 = vadd.xlane.f32.xlu0 %v416
        %v1107 = vpop.xlane.xlu0 %1106
        %1108 = vadd.xlane.f32.xlu0 %v417
        %v1109 = vpop.xlane.xlu0 %1108
        %1110 = vadd.xlane.f32.xlu0 %v418
        %v1111 = vpop.xlane.xlu0 %1110
        %1112 = vadd.xlane.f32.xlu0 %v419
        %v1113 = vpop.xlane.xlu0 %1112
        %1114 = vadd.xlane.f32.xlu0 %v420
        %v1115 = vpop.xlane.xlu0 %1114
        %1116 = vadd.xlane.f32.xlu0 %v421
        %v1117 = vpop.xlane.xlu0 %1116
        %1118 = vadd.xlane.f32.xlu0 %v422
        %v1119 = vpop.xlane.xlu0 %1118
        %1120 = vadd.xlane.f32.xlu0 %v423
        %v1121 = vpop.xlane.xlu0 %1120
        %1122 = vadd.xlane.f32.xlu0 %v424
        %v1123 = vpop.xlane.xlu0 %1122
        %1124 = vadd.xlane.f32.xlu0 %v425
        %v1125 = vpop.xlane.xlu0 %1124
        %1126 = vadd.xlane.f32.xlu0 %v426
        %v1127 = vpop.xlane.xlu0 %1126
        %1128 = vadd.xlane.f32.xlu0 %v427
        %v1129 = vpop.xlane.xlu0 %1128
        %1130 = vadd.xlane.f32.xlu0 %v428
        %v1131 = vpop.xlane.xlu0 %1130
        %1132 = vadd.xlane.f32.xlu0 %v429
        %v1133 = vpop.xlane.xlu0 %1132
        %1134 = vadd.xlane.f32.xlu0 %v430
        %v1135 = vpop.xlane.xlu0 %1134
        %1136 = vadd.xlane.f32.xlu0 %v431
        %v1137 = vpop.xlane.xlu0 %1136
        %1138 = vadd.xlane.f32.xlu0 %v432
        %v1139 = vpop.xlane.xlu0 %1138
        %1140 = vadd.xlane.f32.xlu0 %v433
        %v1141 = vpop.xlane.xlu0 %1140
        %1142 = vadd.xlane.f32.xlu0 %v434
        %v1143 = vpop.xlane.xlu0 %1142
        %1144 = vadd.xlane.f32.xlu0 %v435
        %v1145 = vpop.xlane.xlu0 %1144
        %1146 = vadd.xlane.f32.xlu0 %v436
        %v1147 = vpop.xlane.xlu0 %1146
        %1148 = vadd.xlane.f32.xlu0 %v437
        %v1149 = vpop.xlane.xlu0 %1148
        %1150 = vadd.xlane.f32.xlu0 %v438
        %v1151 = vpop.xlane.xlu0 %1150
        %1152 = vadd.xlane.f32.xlu0 %v439
        %v1153 = vpop.xlane.xlu0 %1152
        %1154 = vadd.xlane.f32.xlu0 %v440
        %v1155 = vpop.xlane.xlu0 %1154
        %1156 = vadd.xlane.f32.xlu0 %v441
        %v1157 = vpop.xlane.xlu0 %1156
        %1158 = vadd.xlane.f32.xlu0 %v442
        %v1159 = vpop.xlane.xlu0 %1158
        %1160 = vadd.xlane.f32.xlu0 %v443
        %v1161 = vpop.xlane.xlu0 %1160
        %1162 = vadd.xlane.f32.xlu0 %v444
        %v1163 = vpop.xlane.xlu0 %1162
        %1164 = vadd.xlane.f32.xlu0 %v445
        %v1165 = vpop.xlane.xlu0 %1164
        %1166 = vadd.xlane.f32.xlu0 %v446
        %v1167 = vpop.xlane.xlu0 %1166
        %1168 = vadd.xlane.f32.xlu0 %v447
        %v1169 = vpop.xlane.xlu0 %1168
        %1170 = vadd.xlane.f32.xlu0 %v448
        %v1171 = vpop.xlane.xlu0 %1170
        %1172 = vadd.xlane.f32.xlu0 %v449
        %v1173 = vpop.xlane.xlu0 %1172
        %1174 = vadd.xlane.f32.xlu0 %v450
        %v1175 = vpop.xlane.xlu0 %1174
        %1176 = vadd.xlane.f32.xlu0 %v451
        %v1177 = vpop.xlane.xlu0 %1176
        %1178 = vadd.xlane.f32.xlu0 %v452
        %v1179 = vpop.xlane.xlu0 %1178
        %1180 = vadd.xlane.f32.xlu0 %v453
        %v1181 = vpop.xlane.xlu0 %1180
        %1182 = vadd.xlane.f32.xlu0 %v454
        %v1183 = vpop.xlane.xlu0 %1182
        %1184 = vadd.xlane.f32.xlu0 %v455
        %v1185 = vpop.xlane.xlu0 %1184
        %1186 = vadd.xlane.f32.xlu0 %v456
        %v1187 = vpop.xlane.xlu0 %1186
        %1188 = vadd.xlane.f32.xlu0 %v457
        %v1189 = vpop.xlane.xlu0 %1188
        %1190 = vadd.xlane.f32.xlu0 %v458
        %v1191 = vpop.xlane.xlu0 %1190
        %1192 = vadd.xlane.f32.xlu0 %v459
        %v1193 = vpop.xlane.xlu0 %1192
        %1194 = vadd.xlane.f32.xlu0 %v460
        %v1195 = vpop.xlane.xlu0 %1194
        %1196 = vadd.xlane.f32.xlu0 %v461
        %v1197 = vpop.xlane.xlu0 %1196
        %1198 = vadd.xlane.f32.xlu0 %v462
        %v1199 = vpop.xlane.xlu0 %1198
        %1200 = vadd.xlane.f32.xlu0 %v463
        %v1201 = vpop.xlane.xlu0 %1200
        %1202 = vadd.xlane.f32.xlu0 %v464
        %v1203 = vpop.xlane.xlu0 %1202
        %1204 = vadd.xlane.f32.xlu0 %v465
        %v1205 = vpop.xlane.xlu0 %1204
        %1206 = vadd.xlane.f32.xlu0 %v466
        %v1207 = vpop.xlane.xlu0 %1206
        %1208 = vadd.xlane.f32.xlu0 %v467
        %v1209 = vpop.xlane.xlu0 %1208
        %1210 = vadd.xlane.f32.xlu0 %v468
        %v1211 = vpop.xlane.xlu0 %1210
        %1212 = vadd.xlane.f32.xlu0 %v469
        %v1213 = vpop.xlane.xlu0 %1212
        %1214 = vadd.xlane.f32.xlu0 %v470
        %v1215 = vpop.xlane.xlu0 %1214
        %1216 = vadd.xlane.f32.xlu0 %v471
        %v1217 = vpop.xlane.xlu0 %1216
        %1218 = vadd.xlane.f32.xlu0 %v472
        %v1219 = vpop.xlane.xlu0 %1218
        %1220 = vadd.xlane.f32.xlu0 %v473
        %v1221 = vpop.xlane.xlu0 %1220
        %1222 = vadd.xlane.f32.xlu0 %v474
        %v1223 = vpop.xlane.xlu0 %1222
        %1224 = vadd.xlane.f32.xlu0 %v475
        %v1225 = vpop.xlane.xlu0 %1224
        %1226 = vadd.xlane.f32.xlu0 %v476
        %v1227 = vpop.xlane.xlu0 %1226
        %1228 = vadd.xlane.f32.xlu0 %v477
        %v1229 = vpop.xlane.xlu0 %1228
        %1230 = vadd.xlane.f32.xlu0 %v478
        %v1231 = vpop.xlane.xlu0 %1230
        %1232 = vadd.xlane.f32.xlu0 %v479
        %v1233 = vpop.xlane.xlu0 %1232
        %1234 = vadd.xlane.f32.xlu0 %v480
        %v1235 = vpop.xlane.xlu0 %1234
        %1236 = vadd.xlane.f32.xlu0 %v481
        %v1237 = vpop.xlane.xlu0 %1236
        %1238 = vadd.xlane.f32.xlu0 %v482
        %v1239 = vpop.xlane.xlu0 %1238
        %1240 = vadd.xlane.f32.xlu0 %v483
        %v1241 = vpop.xlane.xlu0 %1240
        %1242 = vadd.xlane.f32.xlu0 %v484
        %v1243 = vpop.xlane.xlu0 %1242
        %1244 = vadd.xlane.f32.xlu0 %v485
        %v1245 = vpop.xlane.xlu0 %1244
        %1246 = vadd.xlane.f32.xlu0 %v486
        %v1247 = vpop.xlane.xlu0 %1246
        %1248 = vadd.xlane.f32.xlu0 %v487
        %v1249 = vpop.xlane.xlu0 %1248
        %1250 = vadd.xlane.f32.xlu0 %v488
        %v1251 = vpop.xlane.xlu0 %1250
        %1252 = vadd.xlane.f32.xlu0 %v489
        %v1253 = vpop.xlane.xlu0 %1252
        %1254 = vadd.xlane.f32.xlu0 %v490
        %v1255 = vpop.xlane.xlu0 %1254
        %1256 = vadd.xlane.f32.xlu0 %v491
        %v1257 = vpop.xlane.xlu0 %1256
        %1258 = vadd.xlane.f32.xlu0 %v492
        %v1259 = vpop.xlane.xlu0 %1258
        %1260 = vadd.xlane.f32.xlu0 %v493
        %v1261 = vpop.xlane.xlu0 %1260
        %1262 = vadd.xlane.f32.xlu0 %v494
        %v1263 = vpop.xlane.xlu0 %1262
        %1264 = vadd.xlane.f32.xlu0 %v495
        %v1265 = vpop.xlane.xlu0 %1264
        %1266 = vadd.xlane.f32.xlu0 %v496
        %v1267 = vpop.xlane.xlu0 %1266
        %1268 = vadd.xlane.f32.xlu0 %v497
        %v1269 = vpop.xlane.xlu0 %1268
        %1270 = vadd.xlane.f32.xlu0 %v498
        %v1271 = vpop.xlane.xlu0 %1270
        %1272 = vadd.xlane.f32.xlu0 %v499
        %v1273 = vpop.xlane.xlu0 %1272
        %1274 = vadd.xlane.f32.xlu0 %v500
        %v1275 = vpop.xlane.xlu0 %1274
        %1276 = vadd.xlane.f32.xlu0 %v501
        %v1277 = vpop.xlane.xlu0 %1276
        %1278 = vadd.xlane.f32.xlu0 %v502
        %v1279 = vpop.xlane.xlu0 %1278
        %1280 = vadd.xlane.f32.xlu0 %v503
        %v1281 = vpop.xlane.xlu0 %1280
        %1282 = vadd.xlane.f32.xlu0 %v504
        %v1283 = vpop.xlane.xlu0 %1282
        %1284 = vadd.xlane.f32.xlu0 %v505
        %v1285 = vpop.xlane.xlu0 %1284
        %1286 = vadd.xlane.f32.xlu0 %v506
        %v1287 = vpop.xlane.xlu0 %1286
        %1288 = vadd.xlane.f32.xlu0 %v507
        %v1289 = vpop.xlane.xlu0 %1288
        %1290 = vadd.xlane.f32.xlu0 %v508
        %v1291 = vpop.xlane.xlu0 %1290
        %1292 = vadd.xlane.f32.xlu0 %v509
        %v1293 = vpop.xlane.xlu0 %1292
        %1294 = vadd.xlane.f32.xlu0 %v510
        %v1295 = vpop.xlane.xlu0 %1294
        %1296 = vadd.xlane.f32.xlu0 %v511
        %v1297 = vpop.xlane.xlu0 %1296
        %1298 = vadd.xlane.f32.xlu0 %v512
        %v1299 = vpop.xlane.xlu0 %1298
        %1300 = vadd.xlane.f32.xlu0 %v513
        %v1301 = vpop.xlane.xlu0 %1300
        %1302 = vadd.xlane.f32.xlu0 %v514
        %v1303 = vpop.xlane.xlu0 %1302
        %1304 = vadd.xlane.f32.xlu0 %v515
        %v1305 = vpop.xlane.xlu0 %1304
        %1306 = vadd.xlane.f32.xlu0 %v516
        %v1307 = vpop.xlane.xlu0 %1306
        %1308 = vadd.xlane.f32.xlu0 %v517
        %v1309 = vpop.xlane.xlu0 %1308
        %1310 = vadd.xlane.f32.xlu0 %v518
        %v1311 = vpop.xlane.xlu0 %1310
        %1312 = vadd.xlane.f32.xlu0 %v519
        %v1313 = vpop.xlane.xlu0 %1312
        %1314 = vadd.xlane.f32.xlu0 %v520
        %v1315 = vpop.xlane.xlu0 %1314
        %1316 = vadd.xlane.f32.xlu0 %v521
        %v1317 = vpop.xlane.xlu0 %1316
        %1318 = vadd.xlane.f32.xlu0 %v522
        %v1319 = vpop.xlane.xlu0 %1318
        %1320 = vadd.xlane.f32.xlu0 %v523
        %v1321 = vpop.xlane.xlu0 %1320
        %1322 = vadd.xlane.f32.xlu0 %v524
        %v1323 = vpop.xlane.xlu0 %1322
        %1324 = vadd.xlane.f32.xlu0 %v525
        %v1325 = vpop.xlane.xlu0 %1324
        %1326 = vadd.xlane.f32.xlu0 %v526
        %v1327 = vpop.xlane.xlu0 %1326
        %1328 = vadd.xlane.f32.xlu0 %v527
        %v1329 = vpop.xlane.xlu0 %1328
        %1330 = vadd.xlane.f32.xlu0 %v528
        %v1331 = vpop.xlane.xlu0 %1330
        %1332 = vadd.xlane.f32.xlu0 %v529
        %v1333 = vpop.xlane.xlu0 %1332
        %1334 = vadd.xlane.f32.xlu0 %v530
        %v1335 = vpop.xlane.xlu0 %1334
        %1336 = vadd.xlane.f32.xlu0 %v531
        %v1337 = vpop.xlane.xlu0 %1336
        %1338 = vadd.xlane.f32.xlu0 %v532
        %v1339 = vpop.xlane.xlu0 %1338
        %1340 = vadd.xlane.f32.xlu0 %v533
        %v1341 = vpop.xlane.xlu0 %1340
        %1342 = vadd.xlane.f32.xlu0 %v534
        %v1343 = vpop.xlane.xlu0 %1342
        %1344 = vadd.xlane.f32.xlu0 %v535
        %v1345 = vpop.xlane.xlu0 %1344
        %1346 = vadd.xlane.f32.xlu0 %v536
        %v1347 = vpop.xlane.xlu0 %1346
        %1348 = vadd.xlane.f32.xlu0 %v537
        %v1349 = vpop.xlane.xlu0 %1348
        %1350 = vadd.xlane.f32.xlu0 %v538
        %v1351 = vpop.xlane.xlu0 %1350
        %1352 = vadd.xlane.f32.xlu0 %v539
        %v1353 = vpop.xlane.xlu0 %1352
        %1354 = vadd.xlane.f32.xlu0 %v540
        %v1355 = vpop.xlane.xlu0 %1354
        %1356 = vadd.xlane.f32.xlu0 %v541
        %v1357 = vpop.xlane.xlu0 %1356
        %1358 = vadd.xlane.f32.xlu0 %v542
        %v1359 = vpop.xlane.xlu0 %1358
        %1360 = vadd.xlane.f32.xlu0 %v543
        %v1361 = vpop.xlane.xlu0 %1360
        %1362 = vadd.xlane.f32.xlu0 %v544
        %v1363 = vpop.xlane.xlu0 %1362
        %1364 = vadd.xlane.f32.xlu0 %v545
        %v1365 = vpop.xlane.xlu0 %1364
        %1366 = vadd.xlane.f32.xlu0 %v546
        %v1367 = vpop.xlane.xlu0 %1366
        %1368 = vadd.xlane.f32.xlu0 %v547
        %v1369 = vpop.xlane.xlu0 %1368
        %1370 = vadd.xlane.f32.xlu0 %v548
        %v1371 = vpop.xlane.xlu0 %1370
        %1372 = vadd.xlane.f32.xlu0 %v549
        %v1373 = vpop.xlane.xlu0 %1372
        %1374 = vadd.xlane.f32.xlu0 %v550
        %v1375 = vpop.xlane.xlu0 %1374
        %1376 = vadd.xlane.f32.xlu0 %v551
        %v1377 = vpop.xlane.xlu0 %1376
        %1378 = vadd.xlane.f32.xlu0 %v552
        %v1379 = vpop.xlane.xlu0 %1378
        %1380 = vadd.xlane.f32.xlu0 %v553
        %v1381 = vpop.xlane.xlu0 %1380
        %1382 = vadd.xlane.f32.xlu0 %v554
        %v1383 = vpop.xlane.xlu0 %1382
        %1384 = vadd.xlane.f32.xlu0 %v555
        %v1385 = vpop.xlane.xlu0 %1384
        %1386 = vadd.xlane.f32.xlu0 %v556
        %v1387 = vpop.xlane.xlu0 %1386
        %1388 = vadd.xlane.f32.xlu0 %v557
        %v1389 = vpop.xlane.xlu0 %1388
        %1390 = vadd.xlane.f32.xlu0 %v558
        %v1391 = vpop.xlane.xlu0 %1390
        %1392 = vadd.xlane.f32.xlu0 %v559
        %v1393 = vpop.xlane.xlu0 %1392
        %1394 = vadd.xlane.f32.xlu0 %v560
        %v1395 = vpop.xlane.xlu0 %1394
        %1396 = vadd.xlane.f32.xlu0 %v561
        %v1397 = vpop.xlane.xlu0 %1396
        %1398 = vadd.xlane.f32.xlu0 %v562
        %v1399 = vpop.xlane.xlu0 %1398
        %1400 = vadd.xlane.f32.xlu0 %v563
        %v1401 = vpop.xlane.xlu0 %1400
        %1402 = vadd.xlane.f32.xlu0 %v564
        %v1403 = vpop.xlane.xlu0 %1402
        %1404 = vadd.xlane.f32.xlu0 %v565
        %v1405 = vpop.xlane.xlu0 %1404
        %1406 = vadd.xlane.f32.xlu0 %v566
        %v1407 = vpop.xlane.xlu0 %1406
        %1408 = vadd.xlane.f32.xlu0 %v567
        %v1409 = vpop.xlane.xlu0 %1408
        %1410 = vadd.xlane.f32.xlu0 %v568
        %v1411 = vpop.xlane.xlu0 %1410
        %1412 = vadd.xlane.f32.xlu0 %v569
        %v1413 = vpop.xlane.xlu0 %1412
        %1414 = vadd.xlane.f32.xlu0 %v570
        %v1415 = vpop.xlane.xlu0 %1414
        %1416 = vadd.xlane.f32.xlu0 %v571
        %v1417 = vpop.xlane.xlu0 %1416
        %1418 = vadd.xlane.f32.xlu0 %v572
        %v1419 = vpop.xlane.xlu0 %1418
        %1420 = vadd.xlane.f32.xlu0 %v573
        %v1421 = vpop.xlane.xlu0 %1420
        %1422 = vadd.xlane.f32.xlu0 %v574
        %v1423 = vpop.xlane.xlu0 %1422
        %1424 = vadd.xlane.f32.xlu0 %v575
        %v1425 = vpop.xlane.xlu0 %1424
        %1426 = vadd.xlane.f32.xlu0 %v576
        %v1427 = vpop.xlane.xlu0 %1426
        %1428 = vadd.xlane.f32.xlu0 %v577
        %v1429 = vpop.xlane.xlu0 %1428
        %1430 = vadd.xlane.f32.xlu0 %v578
        %v1431 = vpop.xlane.xlu0 %1430
        %1432 = vadd.xlane.f32.xlu0 %v579
        %v1433 = vpop.xlane.xlu0 %1432
        %1434 = vadd.xlane.f32.xlu0 %v580
        %v1435 = vpop.xlane.xlu0 %1434
        %1436 = vadd.xlane.f32.xlu0 %v581
        %v1437 = vpop.xlane.xlu0 %1436
        %1438 = vadd.xlane.f32.xlu0 %v582
        %v1439 = vpop.xlane.xlu0 %1438
        %1440 = vadd.xlane.f32.xlu0 %v583
        %v1441 = vpop.xlane.xlu0 %1440
        %1442 = vadd.xlane.f32.xlu0 %v584
        %v1443 = vpop.xlane.xlu0 %1442
        %1444 = vadd.xlane.f32.xlu0 %v585
        %v1445 = vpop.xlane.xlu0 %1444
        %1446 = vadd.xlane.f32.xlu0 %v586
        %v1447 = vpop.xlane.xlu0 %1446
        %1448 = vadd.xlane.f32.xlu0 %v587
        %v1449 = vpop.xlane.xlu0 %1448
        %1450 = vadd.xlane.f32.xlu0 %v588
        %v1451 = vpop.xlane.xlu0 %1450
        %1452 = vadd.xlane.f32.xlu0 %v589
        %v1453 = vpop.xlane.xlu0 %1452
        %1454 = vadd.xlane.f32.xlu0 %v590
        %v1455 = vpop.xlane.xlu0 %1454
        %1456 = vadd.xlane.f32.xlu0 %v591
        %v1457 = vpop.xlane.xlu0 %1456
        %1458 = vadd.xlane.f32.xlu0 %v592
        %v1459 = vpop.xlane.xlu0 %1458
        %1460 = vadd.xlane.f32.xlu0 %v593
        %v1461 = vpop.xlane.xlu0 %1460
        %1462 = vadd.xlane.f32.xlu0 %v594
        %v1463 = vpop.xlane.xlu0 %1462
        %1464 = vadd.xlane.f32.xlu0 %v595
        %v1465 = vpop.xlane.xlu0 %1464
        %1466 = vadd.xlane.f32.xlu0 %v596
        %v1467 = vpop.xlane.xlu0 %1466
        %1468 = vadd.xlane.f32.xlu0 %v597
        %v1469 = vpop.xlane.xlu0 %1468
        %1470 = vadd.xlane.f32.xlu0 %v598
        %v1471 = vpop.xlane.xlu0 %1470
        %1472 = vadd.xlane.f32.xlu0 %v599
        %v1473 = vpop.xlane.xlu0 %1472
        %1474 = vadd.xlane.f32.xlu0 %v600
        %v1475 = vpop.xlane.xlu0 %1474
        %1476 = vadd.xlane.f32.xlu0 %v601
        %v1477 = vpop.xlane.xlu0 %1476
        %1478 = vadd.xlane.f32.xlu0 %v602
        %v1479 = vpop.xlane.xlu0 %1478
        %1480 = vadd.xlane.f32.xlu0 %v603
        %v1481 = vpop.xlane.xlu0 %1480
        %1482 = vadd.xlane.f32.xlu0 %v604
        %v1483 = vpop.xlane.xlu0 %1482
        %1484 = vadd.xlane.f32.xlu0 %v605
        %v1485 = vpop.xlane.xlu0 %1484
        %1486 = vadd.xlane.f32.xlu0 %v606
        %v1487 = vpop.xlane.xlu0 %1486
        %1488 = vadd.xlane.f32.xlu0 %v607
        %v1489 = vpop.xlane.xlu0 %1488
        %1490 = vadd.xlane.f32.xlu0 %v608
        %v1491 = vpop.xlane.xlu0 %1490
        %1492 = vadd.xlane.f32.xlu0 %v609
        %v1493 = vpop.xlane.xlu0 %1492
        %1494 = vadd.xlane.f32.xlu0 %v610
        %v1495 = vpop.xlane.xlu0 %1494
        %1496 = vadd.xlane.f32.xlu0 %v611
        %v1497 = vpop.xlane.xlu0 %1496
        %1498 = vadd.xlane.f32.xlu0 %v612
        %v1499 = vpop.xlane.xlu0 %1498
        %1500 = vadd.xlane.f32.xlu0 %v613
        %v1501 = vpop.xlane.xlu0 %1500
        %1502 = vadd.xlane.f32.xlu0 %v614
        %v1503 = vpop.xlane.xlu0 %1502
        %1504 = vadd.xlane.f32.xlu0 %v615
        %v1505 = vpop.xlane.xlu0 %1504
        %1506 = vadd.xlane.f32.xlu0 %v616
        %v1507 = vpop.xlane.xlu0 %1506
        %1508 = vadd.xlane.f32.xlu0 %v617
        %v1509 = vpop.xlane.xlu0 %1508
        %1510 = vadd.xlane.f32.xlu0 %v618
        %v1511 = vpop.xlane.xlu0 %1510
        %1512 = vadd.xlane.f32.xlu0 %v619
        %v1513 = vpop.xlane.xlu0 %1512
        %1514 = vadd.xlane.f32.xlu0 %v620
        %v1515 = vpop.xlane.xlu0 %1514
        %1516 = vadd.xlane.f32.xlu0 %v621
        %v1517 = vpop.xlane.xlu0 %1516
        %1518 = vadd.xlane.f32.xlu0 %v622
        %v1519 = vpop.xlane.xlu0 %1518
        %1520 = vadd.xlane.f32.xlu0 %v623
        %v1521 = vpop.xlane.xlu0 %1520
        %1522 = vadd.xlane.f32.xlu0 %v624
        %v1523 = vpop.xlane.xlu0 %1522
        %1524 = vadd.xlane.f32.xlu0 %v625
        %v1525 = vpop.xlane.xlu0 %1524
        %1526 = vadd.xlane.f32.xlu0 %v626
        %v1527 = vpop.xlane.xlu0 %1526
        %1528 = vadd.xlane.f32.xlu0 %v627
        %v1529 = vpop.xlane.xlu0 %1528
        %1530 = vadd.xlane.f32.xlu0 %v628
        %v1531 = vpop.xlane.xlu0 %1530
        %1532 = vadd.xlane.f32.xlu0 %v629
        %v1533 = vpop.xlane.xlu0 %1532
        %1534 = vadd.xlane.f32.xlu0 %v630
        %v1535 = vpop.xlane.xlu0 %1534
        %1536 = vadd.xlane.f32.xlu0 %v631
        %v1537 = vpop.xlane.xlu0 %1536
        %1538 = vadd.xlane.f32.xlu0 %v632
        %v1539 = vpop.xlane.xlu0 %1538
        %1540 = vadd.xlane.f32.xlu0 %v633
        %v1541 = vpop.xlane.xlu0 %1540
        %1542 = vadd.xlane.f32.xlu0 %v634
        %v1543 = vpop.xlane.xlu0 %1542
        %1544 = vadd.xlane.f32.xlu0 %v635
        %v1545 = vpop.xlane.xlu0 %1544
        %1546 = vadd.xlane.f32.xlu0 %v636
        %v1547 = vpop.xlane.xlu0 %1546
        %1548 = vadd.xlane.f32.xlu0 %v637
        %v1549 = vpop.xlane.xlu0 %1548
        %1550 = vadd.xlane.f32.xlu0 %v638
        %v1551 = vpop.xlane.xlu0 %1550
        %1552 = vadd.xlane.f32.xlu0 %v639
        %v1553 = vpop.xlane.xlu0 %1552
        %1554 = vadd.xlane.f32.xlu0 %v640
        %v1555 = vpop.xlane.xlu0 %1554
        %1556 = vadd.xlane.f32.xlu0 %v641
        %v1557 = vpop.xlane.xlu0 %1556
        %1558 = vadd.xlane.f32.xlu0 %v642
        %v1559 = vpop.xlane.xlu0 %1558
        %1560 = vadd.xlane.f32.xlu0 %v643
        %v1561 = vpop.xlane.xlu0 %1560
        %1562 = vadd.xlane.f32.xlu0 %v644
        %v1563 = vpop.xlane.xlu0 %1562
        %1564 = vadd.xlane.f32.xlu0 %v645
        %v1565 = vpop.xlane.xlu0 %1564
        %1566 = vadd.xlane.f32.xlu0 %v646
        %v1567 = vpop.xlane.xlu0 %1566
        %1568 = vadd.xlane.f32.xlu0 %v647
        %v1569 = vpop.xlane.xlu0 %1568
        %1570 = vadd.xlane.f32.xlu0 %v648
        %v1571 = vpop.xlane.xlu0 %1570
        %1572 = vadd.xlane.f32.xlu0 %v649
        %v1573 = vpop.xlane.xlu0 %1572
        %1574 = vadd.xlane.f32.xlu0 %v650
        %v1575 = vpop.xlane.xlu0 %1574
        %1576 = vadd.xlane.f32.xlu0 %v651
        %v1577 = vpop.xlane.xlu0 %1576
        %1578 = vadd.xlane.f32.xlu0 %v652
        %v1579 = vpop.xlane.xlu0 %1578
        %1580 = vadd.xlane.f32.xlu0 %v653
        %v1581 = vpop.xlane.xlu0 %1580
        %1582 = vadd.xlane.f32.xlu0 %v654
        %v1583 = vpop.xlane.xlu0 %1582
        %1584 = vadd.xlane.f32.xlu0 %v655
        %v1585 = vpop.xlane.xlu0 %1584
        %1586 = vadd.xlane.f32.xlu0 %v656
        %v1587 = vpop.xlane.xlu0 %1586
        %1588 = vadd.xlane.f32.xlu0 %v657
        %v1589 = vpop.xlane.xlu0 %1588
        %1590 = vadd.xlane.f32.xlu0 %v658
        %v1591 = vpop.xlane.xlu0 %1590
        %1592 = vadd.xlane.f32.xlu0 %v659
        %v1593 = vpop.xlane.xlu0 %1592
        %1594 = vadd.xlane.f32.xlu0 %v660
        %v1595 = vpop.xlane.xlu0 %1594
        %1596 = vadd.xlane.f32.xlu0 %v661
        %v1597 = vpop.xlane.xlu0 %1596
        %1598 = vadd.xlane.f32.xlu0 %v662
        %v1599 = vpop.xlane.xlu0 %1598
        %1600 = vadd.xlane.f32.xlu0 %v663
        %v1601 = vpop.xlane.xlu0 %1600
        %1602 = vadd.xlane.f32.xlu0 %v664
        %v1603 = vpop.xlane.xlu0 %1602
        %1604 = vadd.xlane.f32.xlu0 %v665
        %v1605 = vpop.xlane.xlu0 %1604
        %1606 = vadd.xlane.f32.xlu0 %v666
        %v1607 = vpop.xlane.xlu0 %1606
        %1608 = vadd.xlane.f32.xlu0 %v667
        %v1609 = vpop.xlane.xlu0 %1608
        %1610 = vadd.xlane.f32.xlu0 %v668
        %v1611 = vpop.xlane.xlu0 %1610
        %1612 = vadd.xlane.f32.xlu0 %v669
        %v1613 = vpop.xlane.xlu0 %1612
        %1614 = vadd.xlane.f32.xlu0 %v670
        %v1615 = vpop.xlane.xlu0 %1614
        %1616 = vadd.xlane.f32.xlu0 %v671
        %v1617 = vpop.xlane.xlu0 %1616
        %1618 = vadd.xlane.f32.xlu0 %v672
        %v1619 = vpop.xlane.xlu0 %1618
        %1620 = vadd.xlane.f32.xlu0 %v673
        %v1621 = vpop.xlane.xlu0 %1620
        %1622 = vadd.xlane.f32.xlu0 %v674
        %v1623 = vpop.xlane.xlu0 %1622
        %1624 = vadd.xlane.f32.xlu0 %v675
        %v1625 = vpop.xlane.xlu0 %1624
        %1626 = vadd.xlane.f32.xlu0 %v676
        %v1627 = vpop.xlane.xlu0 %1626
        %1628 = vadd.xlane.f32.xlu0 %v677
        %v1629 = vpop.xlane.xlu0 %1628
        %1630 = vadd.xlane.f32.xlu0 %v678
        %v1631 = vpop.xlane.xlu0 %1630
        %1632 = vadd.xlane.f32.xlu0 %v679
        %v1633 = vpop.xlane.xlu0 %1632
        %1634 = vadd.xlane.f32.xlu0 %v680
        %v1635 = vpop.xlane.xlu0 %1634
        %1636 = vadd.xlane.f32.xlu0 %v681
        %v1637 = vpop.xlane.xlu0 %1636
        %1638 = vadd.xlane.f32.xlu0 %v682
        %v1639 = vpop.xlane.xlu0 %1638
        %1640 = vadd.xlane.f32.xlu0 %v683
        %v1641 = vpop.xlane.xlu0 %1640
        %1642 = vadd.xlane.f32.xlu0 %v684
        %v1643 = vpop.xlane.xlu0 %1642
        %1644 = vadd.xlane.f32.xlu0 %v685
        %v1645 = vpop.xlane.xlu0 %1644
        %1646 = vadd.xlane.f32.xlu0 %v686
        %v1647 = vpop.xlane.xlu0 %1646
        %1648 = vadd.xlane.f32.xlu0 %v687
        %v1649 = vpop.xlane.xlu0 %1648
        %1650 = vadd.xlane.f32.xlu0 %v688
        %v1651 = vpop.xlane.xlu0 %1650
        %1652 = vadd.xlane.f32.xlu0 %v689
        %v1653 = vpop.xlane.xlu0 %1652
        %1654 = vadd.xlane.f32.xlu0 %v690
        %v1655 = vpop.xlane.xlu0 %1654
        %1656 = vadd.xlane.f32.xlu0 %v691
        %v1657 = vpop.xlane.xlu0 %1656
        %1658 = vadd.xlane.f32.xlu0 %v692
        %v1659 = vpop.xlane.xlu0 %1658
        %1660 = vadd.xlane.f32.xlu0 %v693
        %v1661 = vpop.xlane.xlu0 %1660
        %1662 = vadd.xlane.f32.xlu0 %v694
        %v1663 = vpop.xlane.xlu0 %1662
        %1664 = vadd.xlane.f32.xlu0 %v695
        %v1665 = vpop.xlane.xlu0 %1664
        %1666 = vadd.xlane.f32.xlu0 %v696
        %v1667 = vpop.xlane.xlu0 %1666
        %1668 = vadd.xlane.f32.xlu0 %v697
        %v1669 = vpop.xlane.xlu0 %1668
        %1670 = vadd.xlane.f32.xlu0 %v698
        %v1671 = vpop.xlane.xlu0 %1670
        %1672 = vadd.xlane.f32.xlu0 %v699
        %v1673 = vpop.xlane.xlu0 %1672
        %1674 = vadd.xlane.f32.xlu0 %v700
        %v1675 = vpop.xlane.xlu0 %1674
        %1676 = vadd.xlane.f32.xlu0 %v701
        %v1677 = vpop.xlane.xlu0 %1676
        %1678 = vadd.xlane.f32.xlu0 %v702
        %v1679 = vpop.xlane.xlu0 %1678
        %1680 = vadd.xlane.f32.xlu0 %v703
        %v1681 = vpop.xlane.xlu0 %1680
        %1682 = vadd.xlane.f32.xlu0 %v704
        %v1683 = vpop.xlane.xlu0 %1682
        %1684 = vadd.xlane.f32.xlu0 %v705
        %v1685 = vpop.xlane.xlu0 %1684
        %1686 = vadd.xlane.f32.xlu0 %v706
        %v1687 = vpop.xlane.xlu0 %1686
        %1688 = vadd.xlane.f32.xlu0 %v707
        %v1689 = vpop.xlane.xlu0 %1688
        %1690 = vadd.xlane.f32.xlu0 %v708
        %v1691 = vpop.xlane.xlu0 %1690
        %1692 = vadd.xlane.f32.xlu0 %v709
        %v1693 = vpop.xlane.xlu0 %1692
        %1694 = vadd.xlane.f32.xlu0 %v710
        %v1695 = vpop.xlane.xlu0 %1694
        %1696 = vadd.xlane.f32.xlu0 %v711
        %v1697 = vpop.xlane.xlu0 %1696
        %1698 = vadd.xlane.f32.xlu0 %v712
        %v1699 = vpop.xlane.xlu0 %1698
        %1700 = vadd.xlane.f32.xlu0 %v713
        %v1701 = vpop.xlane.xlu0 %1700
        %1702 = vadd.xlane.f32.xlu0 %v714
        %v1703 = vpop.xlane.xlu0 %1702
        %1704 = vadd.xlane.f32.xlu0 %v715
        %v1705 = vpop.xlane.xlu0 %1704
        %1706 = vadd.xlane.f32.xlu0 %v716
        %v1707 = vpop.xlane.xlu0 %1706
        %1708 = vadd.xlane.f32.xlu0 %v717
        %v1709 = vpop.xlane.xlu0 %1708
        %1710 = vadd.xlane.f32.xlu0 %v718
        %v1711 = vpop.xlane.xlu0 %1710
        %1712 = vadd.xlane.f32.xlu0 %v719
        %v1713 = vpop.xlane.xlu0 %1712
        %1714 = vadd.xlane.f32.xlu0 %v720
        %v1715 = vpop.xlane.xlu0 %1714
        %1716 = vadd.xlane.f32.xlu0 %v721
        %v1717 = vpop.xlane.xlu0 %1716
        %1718 = vadd.xlane.f32.xlu0 %v722
        %v1719 = vpop.xlane.xlu0 %1718
        %1720 = vadd.xlane.f32.xlu0 %v723
        %v1721 = vpop.xlane.xlu0 %1720
        %1722 = vadd.xlane.f32.xlu0 %v724
        %v1723 = vpop.xlane.xlu0 %1722
        %1724 = vadd.xlane.f32.xlu0 %v725
        %v1725 = vpop.xlane.xlu0 %1724
        %1726 = vadd.xlane.f32.xlu0 %v726
        %v1727 = vpop.xlane.xlu0 %1726
        %1728 = vadd.xlane.f32.xlu0 %v727
        %v1729 = vpop.xlane.xlu0 %1728
        %1730 = vadd.xlane.f32.xlu0 %v728
        %v1731 = vpop.xlane.xlu0 %1730
        %1732 = vadd.xlane.f32.xlu0 %v729
        %v1733 = vpop.xlane.xlu0 %1732
        %1734 = vadd.xlane.f32.xlu0 %v730
        %v1735 = vpop.xlane.xlu0 %1734
        %1736 = vadd.xlane.f32.xlu0 %v731
        %v1737 = vpop.xlane.xlu0 %1736
        %1738 = vadd.xlane.f32.xlu0 %v732
        %v1739 = vpop.xlane.xlu0 %1738
        %1740 = vadd.xlane.f32.xlu0 %v733
        %v1741 = vpop.xlane.xlu0 %1740
        %1742 = vadd.xlane.f32.xlu0 %v734
        %v1743 = vpop.xlane.xlu0 %1742
        %1744 = vadd.xlane.f32.xlu0 %v735
        %v1745 = vpop.xlane.xlu0 %1744
        %1746 = vadd.xlane.f32.xlu0 %v736
        %v1747 = vpop.xlane.xlu0 %1746
        %1748 = vadd.xlane.f32.xlu0 %v737
        %v1749 = vpop.xlane.xlu0 %1748
        %1750 = vadd.xlane.f32.xlu0 %v738
        %v1751 = vpop.xlane.xlu0 %1750
        %1752 = vadd.xlane.f32.xlu0 %v739
        %v1753 = vpop.xlane.xlu0 %1752
        %1754 = vadd.xlane.f32.xlu0 %v740
        %v1755 = vpop.xlane.xlu0 %1754
        %1756 = vadd.xlane.f32.xlu0 %v741
        %v1757 = vpop.xlane.xlu0 %1756
        %1758 = vadd.xlane.f32.xlu0 %v742
        %v1759 = vpop.xlane.xlu0 %1758
        %1760 = vadd.xlane.f32.xlu0 %v743
        %v1761 = vpop.xlane.xlu0 %1760
        %1762 = vadd.xlane.f32.xlu0 %v744
        %v1763 = vpop.xlane.xlu0 %1762
        %1764 = vadd.xlane.f32.xlu0 %v745
        %v1765 = vpop.xlane.xlu0 %1764
        %1766 = vadd.xlane.f32.xlu0 %v746
        %v1767 = vpop.xlane.xlu0 %1766
        %1768 = vadd.xlane.f32.xlu0 %v747
        %v1769 = vpop.xlane.xlu0 %1768
        %1770 = vadd.xlane.f32.xlu0 %v748
        %v1771 = vpop.xlane.xlu0 %1770
        %1772 = vadd.xlane.f32.xlu0 %v749
        %v1773 = vpop.xlane.xlu0 %1772
        %v2286 = vlaneseq
        %v2287 = vand.u32 %v2286, 127
        %v2288 = vlaneseq
        %v2289 = vshrl.u32 %v2288, 7
        %v2290 = vsub.s32 %v2287, %v2289
        %v2291 = vrot.slane %v751, %v2290
        %v2292 = vadd.s32 %v2287, 4294967288
        %v2293 = vlaneseq
        %v2294 = vshrl.u32 %v2293, 7
        %v2295 = vsub.s32 %v2292, %v2294
        %v2296 = vrot.slane %v753, %v2295
        %vm2297 = vcmask 130112
        %v2298 = vsel %vm2297, %v2296, %v2291
        %v2299 = vadd.s32 %v2287, 4294967280
        %v2300 = vlaneseq
        %v2301 = vshrl.u32 %v2300, 7
        %v2302 = vsub.s32 %v2299, %v2301
        %v2303 = vrot.slane %v755, %v2302
        %vm2304 = vcmask 195712
        %v2305 = vsel %vm2304, %v2303, %v2298
        %v2306 = vadd.s32 %v2287, 4294967272
        %v2307 = vlaneseq
        %v2308 = vshrl.u32 %v2307, 7
        %v2309 = vsub.s32 %v2306, %v2308
        %v2310 = vrot.slane %v757, %v2309
        %vm2311 = vcmask 261312
        %v2312 = vsel %vm2311, %v2310, %v2305
        %v2313 = vadd.s32 %v2287, 4294967264
        %v2314 = vlaneseq
        %v2315 = vshrl.u32 %v2314, 7
        %v2316 = vsub.s32 %v2313, %v2315
        %v2317 = vrot.slane %v759, %v2316
        %vm2318 = vcmask 326912
        %v2319 = vsel %vm2318, %v2317, %v2312
        %v2320 = vadd.s32 %v2287, 4294967256
        %v2321 = vlaneseq
        %v2322 = vshrl.u32 %v2321, 7
        %v2323 = vsub.s32 %v2320, %v2322
        %v2324 = vrot.slane %v761, %v2323
        %vm2325 = vcmask 392512
        %v2326 = vsel %vm2325, %v2324, %v2319
        %v2327 = vadd.s32 %v2287, 4294967248
        %v2328 = vlaneseq
        %v2329 = vshrl.u32 %v2328, 7
        %v2330 = vsub.s32 %v2327, %v2329
        %v2331 = vrot.slane %v763, %v2330
        %vm2332 = vcmask 458112
        %v2333 = vsel %vm2332, %v2331, %v2326
        %v2334 = vadd.s32 %v2287, 4294967240
        %v2335 = vlaneseq
        %v2336 = vshrl.u32 %v2335, 7
        %v2337 = vsub.s32 %v2334, %v2336
        %v2338 = vrot.slane %v765, %v2337
        %vm2339 = vcmask 523712
        %v2340 = vsel %vm2339, %v2338, %v2333
        %v2341 = vadd.s32 %v2287, 4294967232
        %v2342 = vlaneseq
        %v2343 = vshrl.u32 %v2342, 7
        %v2344 = vsub.s32 %v2341, %v2343
        %v2345 = vrot.slane %v767, %v2344
        %vm2346 = vcmask 589312
        %v2347 = vsel %vm2346, %v2345, %v2340
        %v2348 = vadd.s32 %v2287, 4294967224
        %v2349 = vlaneseq
        %v2350 = vshrl.u32 %v2349, 7
        %v2351 = vsub.s32 %v2348, %v2350
        %v2352 = vrot.slane %v769, %v2351
        %vm2353 = vcmask 654912
        %v2354 = vsel %vm2353, %v2352, %v2347
        %v2355 = vadd.s32 %v2287, 4294967216
        %v2356 = vlaneseq
        %v2357 = vshrl.u32 %v2356, 7
        %v2358 = vsub.s32 %v2355, %v2357
        %v2359 = vrot.slane %v771, %v2358
        %vm2360 = vcmask 720512
        %v2361 = vsel %vm2360, %v2359, %v2354
        %v2362 = vadd.s32 %v2287, 4294967208
        %v2363 = vlaneseq
        %v2364 = vshrl.u32 %v2363, 7
        %v2365 = vsub.s32 %v2362, %v2364
        %v2366 = vrot.slane %v773, %v2365
        %vm2367 = vcmask 786112
        %v2368 = vsel %vm2367, %v2366, %v2361
        %v2369 = vadd.s32 %v2287, 4294967200
        %v2370 = vlaneseq
        %v2371 = vshrl.u32 %v2370, 7
        %v2372 = vsub.s32 %v2369, %v2371
        %v2373 = vrot.slane %v775, %v2372
        %vm2374 = vcmask 851712
        %v2375 = vsel %vm2374, %v2373, %v2368
        %v2376 = vadd.s32 %v2287, 4294967192
        %v2377 = vlaneseq
        %v2378 = vshrl.u32 %v2377, 7
        %v2379 = vsub.s32 %v2376, %v2378
        %v2380 = vrot.slane %v777, %v2379
        %vm2381 = vcmask 917312
        %v2382 = vsel %vm2381, %v2380, %v2375
        %v2383 = vadd.s32 %v2287, 4294967184
        %v2384 = vlaneseq
        %v2385 = vshrl.u32 %v2384, 7
        %v2386 = vsub.s32 %v2383, %v2385
        %v2387 = vrot.slane %v779, %v2386
        %vm2388 = vcmask 982912
        %v2389 = vsel %vm2388, %v2387, %v2382
        %v2390 = vadd.s32 %v2287, 4294967176
        %v2391 = vlaneseq
        %v2392 = vshrl.u32 %v2391, 7
        %v2393 = vsub.s32 %v2390, %v2392
        %v2394 = vrot.slane %v781, %v2393
        %vm2395 = vcmask 1048512
        %v2396 = vsel %vm2395, %v2394, %v2389
        %v2397 = vlaneseq
        %v2398 = vshrl.u32 %v2397, 7
        %v2399 = vsub.s32 %v2287, %v2398
        %v2400 = vrot.slane %v783, %v2399
        %v2401 = vlaneseq
        %v2402 = vshrl.u32 %v2401, 7
        %v2403 = vsub.s32 %v2292, %v2402
        %v2404 = vrot.slane %v785, %v2403
        %v2405 = vsel %vm2297, %v2404, %v2400
        %v2406 = vlaneseq
        %v2407 = vshrl.u32 %v2406, 7
        %v2408 = vsub.s32 %v2299, %v2407
        %v2409 = vrot.slane %v787, %v2408
        %v2410 = vsel %vm2304, %v2409, %v2405
        %v2411 = vlaneseq
        %v2412 = vshrl.u32 %v2411, 7
        %v2413 = vsub.s32 %v2306, %v2412
        %v2414 = vrot.slane %v789, %v2413
        %v2415 = vsel %vm2311, %v2414, %v2410
        %v2416 = vlaneseq
        %v2417 = vshrl.u32 %v2416, 7
        %v2418 = vsub.s32 %v2313, %v2417
        %v2419 = vrot.slane %v791, %v2418
        %v2420 = vsel %vm2318, %v2419, %v2415
        %v2421 = vlaneseq
        %v2422 = vshrl.u32 %v2421, 7
        %v2423 = vsub.s32 %v2320, %v2422
        %v2424 = vrot.slane %v793, %v2423
        %v2425 = vsel %vm2325, %v2424, %v2420
        %v2426 = vlaneseq
        %v2427 = vshrl.u32 %v2426, 7
        %v2428 = vsub.s32 %v2327, %v2427
        %v2429 = vrot.slane %v795, %v2428
        %v2430 = vsel %vm2332, %v2429, %v2425
        %v2431 = vlaneseq
        %v2432 = vshrl.u32 %v2431, 7
        %v2433 = vsub.s32 %v2334, %v2432
        %v2434 = vrot.slane %v797, %v2433
        %v2435 = vsel %vm2339, %v2434, %v2430
        %v2436 = vlaneseq
        %v2437 = vshrl.u32 %v2436, 7
        %v2438 = vsub.s32 %v2341, %v2437
        %v2439 = vrot.slane %v799, %v2438
        %v2440 = vsel %vm2346, %v2439, %v2435
        %v2441 = vlaneseq
        %v2442 = vshrl.u32 %v2441, 7
        %v2443 = vsub.s32 %v2348, %v2442
        %v2444 = vrot.slane %v801, %v2443
        %v2445 = vsel %vm2353, %v2444, %v2440
        %v2446 = vlaneseq
        %v2447 = vshrl.u32 %v2446, 7
        %v2448 = vsub.s32 %v2355, %v2447
        %v2449 = vrot.slane %v803, %v2448
        %v2450 = vsel %vm2360, %v2449, %v2445
        %v2451 = vlaneseq
        %v2452 = vshrl.u32 %v2451, 7
        %v2453 = vsub.s32 %v2362, %v2452
        %v2454 = vrot.slane %v805, %v2453
        %v2455 = vsel %vm2367, %v2454, %v2450
        %v2456 = vlaneseq
        %v2457 = vshrl.u32 %v2456, 7
        %v2458 = vsub.s32 %v2369, %v2457
        %v2459 = vrot.slane %v807, %v2458
        %v2460 = vsel %vm2374, %v2459, %v2455
        %v2461 = vlaneseq
        %v2462 = vshrl.u32 %v2461, 7
        %v2463 = vsub.s32 %v2376, %v2462
        %v2464 = vrot.slane %v809, %v2463
        %v2465 = vsel %vm2381, %v2464, %v2460
        %v2466 = vlaneseq
        %v2467 = vshrl.u32 %v2466, 7
        %v2468 = vsub.s32 %v2383, %v2467
        %v2469 = vrot.slane %v811, %v2468
        %v2470 = vsel %vm2388, %v2469, %v2465
        %v2471 = vlaneseq
        %v2472 = vshrl.u32 %v2471, 7
        %v2473 = vsub.s32 %v2390, %v2472
        %v2474 = vrot.slane %v813, %v2473
        %v2475 = vsel %vm2395, %v2474, %v2470
        %v2476 = vlaneseq
        %v2477 = vshrl.u32 %v2476, 7
        %v2478 = vsub.s32 %v2287, %v2477
        %v2479 = vrot.slane %v815, %v2478
        %v2480 = vlaneseq
        %v2481 = vshrl.u32 %v2480, 7
        %v2482 = vsub.s32 %v2292, %v2481
        %v2483 = vrot.slane %v817, %v2482
        %v2484 = vsel %vm2297, %v2483, %v2479
        %v2485 = vlaneseq
        %v2486 = vshrl.u32 %v2485, 7
        %v2487 = vsub.s32 %v2299, %v2486
        %v2488 = vrot.slane %v819, %v2487
        %v2489 = vsel %vm2304, %v2488, %v2484
        %v2490 = vlaneseq
        %v2491 = vshrl.u32 %v2490, 7
        %v2492 = vsub.s32 %v2306, %v2491
        %v2493 = vrot.slane %v821, %v2492
        %v2494 = vsel %vm2311, %v2493, %v2489
        %v2495 = vlaneseq
        %v2496 = vshrl.u32 %v2495, 7
        %v2497 = vsub.s32 %v2313, %v2496
        %v2498 = vrot.slane %v823, %v2497
        %v2499 = vsel %vm2318, %v2498, %v2494
        %v2500 = vlaneseq
        %v2501 = vshrl.u32 %v2500, 7
        %v2502 = vsub.s32 %v2320, %v2501
        %v2503 = vrot.slane %v825, %v2502
        %v2504 = vsel %vm2325, %v2503, %v2499
        %v2505 = vlaneseq
        %v2506 = vshrl.u32 %v2505, 7
        %v2507 = vsub.s32 %v2327, %v2506
        %v2508 = vrot.slane %v827, %v2507
        %v2509 = vsel %vm2332, %v2508, %v2504
        %v2510 = vlaneseq
        %v2511 = vshrl.u32 %v2510, 7
        %v2512 = vsub.s32 %v2334, %v2511
        %v2513 = vrot.slane %v829, %v2512
        %v2514 = vsel %vm2339, %v2513, %v2509
        %v2515 = vlaneseq
        %v2516 = vshrl.u32 %v2515, 7
        %v2517 = vsub.s32 %v2341, %v2516
        %v2518 = vrot.slane %v831, %v2517
        %v2519 = vsel %vm2346, %v2518, %v2514
        %v2520 = vlaneseq
        %v2521 = vshrl.u32 %v2520, 7
        %v2522 = vsub.s32 %v2348, %v2521
        %v2523 = vrot.slane %v833, %v2522
        %v2524 = vsel %vm2353, %v2523, %v2519
        %v2525 = vlaneseq
        %v2526 = vshrl.u32 %v2525, 7
        %v2527 = vsub.s32 %v2355, %v2526
        %v2528 = vrot.slane %v835, %v2527
        %v2529 = vsel %vm2360, %v2528, %v2524
        %v2530 = vlaneseq
        %v2531 = vshrl.u32 %v2530, 7
        %v2532 = vsub.s32 %v2362, %v2531
        %v2533 = vrot.slane %v837, %v2532
        %v2534 = vsel %vm2367, %v2533, %v2529
        %v2535 = vlaneseq
        %v2536 = vshrl.u32 %v2535, 7
        %v2537 = vsub.s32 %v2369, %v2536
        %v2538 = vrot.slane %v839, %v2537
        %v2539 = vsel %vm2374, %v2538, %v2534
        %v2540 = vlaneseq
        %v2541 = vshrl.u32 %v2540, 7
        %v2542 = vsub.s32 %v2376, %v2541
        %v2543 = vrot.slane %v841, %v2542
        %v2544 = vsel %vm2381, %v2543, %v2539
        %v2545 = vlaneseq
        %v2546 = vshrl.u32 %v2545, 7
        %v2547 = vsub.s32 %v2383, %v2546
        %v2548 = vrot.slane %v843, %v2547
        %v2549 = vsel %vm2388, %v2548, %v2544
        %v2550 = vlaneseq
        %v2551 = vshrl.u32 %v2550, 7
        %v2552 = vsub.s32 %v2390, %v2551
        %v2553 = vrot.slane %v845, %v2552
        %v2554 = vsel %vm2395, %v2553, %v2549
        %v2555 = vlaneseq
        %v2556 = vshrl.u32 %v2555, 7
        %v2557 = vsub.s32 %v2287, %v2556
        %v2558 = vrot.slane %v847, %v2557
        %v2559 = vlaneseq
        %v2560 = vshrl.u32 %v2559, 7
        %v2561 = vsub.s32 %v2292, %v2560
        %v2562 = vrot.slane %v849, %v2561
        %v2563 = vsel %vm2297, %v2562, %v2558
        %v2564 = vlaneseq
        %v2565 = vshrl.u32 %v2564, 7
        %v2566 = vsub.s32 %v2299, %v2565
        %v2567 = vrot.slane %v851, %v2566
        %v2568 = vsel %vm2304, %v2567, %v2563
        %v2569 = vlaneseq
        %v2570 = vshrl.u32 %v2569, 7
        %v2571 = vsub.s32 %v2306, %v2570
        %v2572 = vrot.slane %v853, %v2571
        %v2573 = vsel %vm2311, %v2572, %v2568
        %v2574 = vlaneseq
        %v2575 = vshrl.u32 %v2574, 7
        %v2576 = vsub.s32 %v2313, %v2575
        %v2577 = vrot.slane %v855, %v2576
        %v2578 = vsel %vm2318, %v2577, %v2573
        %v2579 = vlaneseq
        %v2580 = vshrl.u32 %v2579, 7
        %v2581 = vsub.s32 %v2320, %v2580
        %v2582 = vrot.slane %v857, %v2581
        %v2583 = vsel %vm2325, %v2582, %v2578
        %v2584 = vlaneseq
        %v2585 = vshrl.u32 %v2584, 7
        %v2586 = vsub.s32 %v2327, %v2585
        %v2587 = vrot.slane %v859, %v2586
        %v2588 = vsel %vm2332, %v2587, %v2583
        %v2589 = vlaneseq
        %v2590 = vshrl.u32 %v2589, 7
        %v2591 = vsub.s32 %v2334, %v2590
        %v2592 = vrot.slane %v861, %v2591
        %v2593 = vsel %vm2339, %v2592, %v2588
        %v2594 = vlaneseq
        %v2595 = vshrl.u32 %v2594, 7
        %v2596 = vsub.s32 %v2341, %v2595
        %v2597 = vrot.slane %v863, %v2596
        %v2598 = vsel %vm2346, %v2597, %v2593
        %v2599 = vlaneseq
        %v2600 = vshrl.u32 %v2599, 7
        %v2601 = vsub.s32 %v2348, %v2600
        %v2602 = vrot.slane %v865, %v2601
        %v2603 = vsel %vm2353, %v2602, %v2598
        %v2604 = vlaneseq
        %v2605 = vshrl.u32 %v2604, 7
        %v2606 = vsub.s32 %v2355, %v2605
        %v2607 = vrot.slane %v867, %v2606
        %v2608 = vsel %vm2360, %v2607, %v2603
        %v2609 = vlaneseq
        %v2610 = vshrl.u32 %v2609, 7
        %v2611 = vsub.s32 %v2362, %v2610
        %v2612 = vrot.slane %v869, %v2611
        %v2613 = vsel %vm2367, %v2612, %v2608
        %v2614 = vlaneseq
        %v2615 = vshrl.u32 %v2614, 7
        %v2616 = vsub.s32 %v2369, %v2615
        %v2617 = vrot.slane %v871, %v2616
        %v2618 = vsel %vm2374, %v2617, %v2613
        %v2619 = vlaneseq
        %v2620 = vshrl.u32 %v2619, 7
        %v2621 = vsub.s32 %v2376, %v2620
        %v2622 = vrot.slane %v873, %v2621
        %v2623 = vsel %vm2381, %v2622, %v2618
        %v2624 = vlaneseq
        %v2625 = vshrl.u32 %v2624, 7
        %v2626 = vsub.s32 %v2383, %v2625
        %v2627 = vrot.slane %v875, %v2626
        %v2628 = vsel %vm2388, %v2627, %v2623
        %v2629 = vlaneseq
        %v2630 = vshrl.u32 %v2629, 7
        %v2631 = vsub.s32 %v2390, %v2630
        %v2632 = vrot.slane %v877, %v2631
        %v2633 = vsel %vm2395, %v2632, %v2628
        %v2634 = vlaneseq
        %v2635 = vshrl.u32 %v2634, 7
        %v2636 = vsub.s32 %v2287, %v2635
        %v2637 = vrot.slane %v879, %v2636
        %v2638 = vlaneseq
        %v2639 = vshrl.u32 %v2638, 7
        %v2640 = vsub.s32 %v2292, %v2639
        %v2641 = vrot.slane %v881, %v2640
        %v2642 = vsel %vm2297, %v2641, %v2637
        %v2643 = vlaneseq
        %v2644 = vshrl.u32 %v2643, 7
        %v2645 = vsub.s32 %v2299, %v2644
        %v2646 = vrot.slane %v883, %v2645
        %v2647 = vsel %vm2304, %v2646, %v2642
        %v2648 = vlaneseq
        %v2649 = vshrl.u32 %v2648, 7
        %v2650 = vsub.s32 %v2306, %v2649
        %v2651 = vrot.slane %v885, %v2650
        %v2652 = vsel %vm2311, %v2651, %v2647
        %v2653 = vlaneseq
        %v2654 = vshrl.u32 %v2653, 7
        %v2655 = vsub.s32 %v2313, %v2654
        %v2656 = vrot.slane %v887, %v2655
        %v2657 = vsel %vm2318, %v2656, %v2652
        %v2658 = vlaneseq
        %v2659 = vshrl.u32 %v2658, 7
        %v2660 = vsub.s32 %v2320, %v2659
        %v2661 = vrot.slane %v889, %v2660
        %v2662 = vsel %vm2325, %v2661, %v2657
        %v2663 = vlaneseq
        %v2664 = vshrl.u32 %v2663, 7
        %v2665 = vsub.s32 %v2327, %v2664
        %v2666 = vrot.slane %v891, %v2665
        %v2667 = vsel %vm2332, %v2666, %v2662
        %v2668 = vlaneseq
        %v2669 = vshrl.u32 %v2668, 7
        %v2670 = vsub.s32 %v2334, %v2669
        %v2671 = vrot.slane %v893, %v2670
        %v2672 = vsel %vm2339, %v2671, %v2667
        %v2673 = vlaneseq
        %v2674 = vshrl.u32 %v2673, 7
        %v2675 = vsub.s32 %v2341, %v2674
        %v2676 = vrot.slane %v895, %v2675
        %v2677 = vsel %vm2346, %v2676, %v2672
        %v2678 = vlaneseq
        %v2679 = vshrl.u32 %v2678, 7
        %v2680 = vsub.s32 %v2348, %v2679
        %v2681 = vrot.slane %v897, %v2680
        %v2682 = vsel %vm2353, %v2681, %v2677
        %v2683 = vlaneseq
        %v2684 = vshrl.u32 %v2683, 7
        %v2685 = vsub.s32 %v2355, %v2684
        %v2686 = vrot.slane %v899, %v2685
        %v2687 = vsel %vm2360, %v2686, %v2682
        %v2688 = vlaneseq
        %v2689 = vshrl.u32 %v2688, 7
        %v2690 = vsub.s32 %v2362, %v2689
        %v2691 = vrot.slane %v901, %v2690
        %v2692 = vsel %vm2367, %v2691, %v2687
        %v2693 = vlaneseq
        %v2694 = vshrl.u32 %v2693, 7
        %v2695 = vsub.s32 %v2369, %v2694
        %v2696 = vrot.slane %v903, %v2695
        %v2697 = vsel %vm2374, %v2696, %v2692
        %v2698 = vlaneseq
        %v2699 = vshrl.u32 %v2698, 7
        %v2700 = vsub.s32 %v2376, %v2699
        %v2701 = vrot.slane %v905, %v2700
        %v2702 = vsel %vm2381, %v2701, %v2697
        %v2703 = vlaneseq
        %v2704 = vshrl.u32 %v2703, 7
        %v2705 = vsub.s32 %v2383, %v2704
        %v2706 = vrot.slane %v907, %v2705
        %v2707 = vsel %vm2388, %v2706, %v2702
        %v2708 = vlaneseq
        %v2709 = vshrl.u32 %v2708, 7
        %v2710 = vsub.s32 %v2390, %v2709
        %v2711 = vrot.slane %v909, %v2710
        %v2712 = vsel %vm2395, %v2711, %v2707
        %v2713 = vlaneseq
        %v2714 = vshrl.u32 %v2713, 7
        %v2715 = vsub.s32 %v2287, %v2714
        %v2716 = vrot.slane %v911, %v2715
        %v2717 = vlaneseq
        %v2718 = vshrl.u32 %v2717, 7
        %v2719 = vsub.s32 %v2292, %v2718
        %v2720 = vrot.slane %v913, %v2719
        %v2721 = vsel %vm2297, %v2720, %v2716
        %v2722 = vlaneseq
        %v2723 = vshrl.u32 %v2722, 7
        %v2724 = vsub.s32 %v2299, %v2723
        %v2725 = vrot.slane %v915, %v2724
        %v2726 = vsel %vm2304, %v2725, %v2721
        %v2727 = vlaneseq
        %v2728 = vshrl.u32 %v2727, 7
        %v2729 = vsub.s32 %v2306, %v2728
        %v2730 = vrot.slane %v917, %v2729
        %v2731 = vsel %vm2311, %v2730, %v2726
        %v2732 = vlaneseq
        %v2733 = vshrl.u32 %v2732, 7
        %v2734 = vsub.s32 %v2313, %v2733
        %v2735 = vrot.slane %v919, %v2734
        %v2736 = vsel %vm2318, %v2735, %v2731
        %v2737 = vlaneseq
        %v2738 = vshrl.u32 %v2737, 7
        %v2739 = vsub.s32 %v2320, %v2738
        %v2740 = vrot.slane %v921, %v2739
        %v2741 = vsel %vm2325, %v2740, %v2736
        %v2742 = vlaneseq
        %v2743 = vshrl.u32 %v2742, 7
        %v2744 = vsub.s32 %v2327, %v2743
        %v2745 = vrot.slane %v923, %v2744
        %v2746 = vsel %vm2332, %v2745, %v2741
        %v2747 = vlaneseq
        %v2748 = vshrl.u32 %v2747, 7
        %v2749 = vsub.s32 %v2334, %v2748
        %v2750 = vrot.slane %v925, %v2749
        %v2751 = vsel %vm2339, %v2750, %v2746
        %v2752 = vlaneseq
        %v2753 = vshrl.u32 %v2752, 7
        %v2754 = vsub.s32 %v2341, %v2753
        %v2755 = vrot.slane %v927, %v2754
        %v2756 = vsel %vm2346, %v2755, %v2751
        %v2757 = vlaneseq
        %v2758 = vshrl.u32 %v2757, 7
        %v2759 = vsub.s32 %v2348, %v2758
        %v2760 = vrot.slane %v929, %v2759
        %v2761 = vsel %vm2353, %v2760, %v2756
        %v2762 = vlaneseq
        %v2763 = vshrl.u32 %v2762, 7
        %v2764 = vsub.s32 %v2355, %v2763
        %v2765 = vrot.slane %v931, %v2764
        %v2766 = vsel %vm2360, %v2765, %v2761
        %v2767 = vlaneseq
        %v2768 = vshrl.u32 %v2767, 7
        %v2769 = vsub.s32 %v2362, %v2768
        %v2770 = vrot.slane %v933, %v2769
        %v2771 = vsel %vm2367, %v2770, %v2766
        %v2772 = vlaneseq
        %v2773 = vshrl.u32 %v2772, 7
        %v2774 = vsub.s32 %v2369, %v2773
        %v2775 = vrot.slane %v935, %v2774
        %v2776 = vsel %vm2374, %v2775, %v2771
        %v2777 = vlaneseq
        %v2778 = vshrl.u32 %v2777, 7
        %v2779 = vsub.s32 %v2376, %v2778
        %v2780 = vrot.slane %v937, %v2779
        %v2781 = vsel %vm2381, %v2780, %v2776
        %v2782 = vlaneseq
        %v2783 = vshrl.u32 %v2782, 7
        %v2784 = vsub.s32 %v2383, %v2783
        %v2785 = vrot.slane %v939, %v2784
        %v2786 = vsel %vm2388, %v2785, %v2781
        %v2787 = vlaneseq
        %v2788 = vshrl.u32 %v2787, 7
        %v2789 = vsub.s32 %v2390, %v2788
        %v2790 = vrot.slane %v941, %v2789
        %v2791 = vsel %vm2395, %v2790, %v2786
        %v2792 = vlaneseq
        %v2793 = vshrl.u32 %v2792, 7
        %v2794 = vsub.s32 %v2287, %v2793
        %v2795 = vrot.slane %v943, %v2794
        %v2796 = vlaneseq
        %v2797 = vshrl.u32 %v2796, 7
        %v2798 = vsub.s32 %v2292, %v2797
        %v2799 = vrot.slane %v945, %v2798
        %v2800 = vsel %vm2297, %v2799, %v2795
        %v2801 = vlaneseq
        %v2802 = vshrl.u32 %v2801, 7
        %v2803 = vsub.s32 %v2299, %v2802
        %v2804 = vrot.slane %v947, %v2803
        %v2805 = vsel %vm2304, %v2804, %v2800
        %v2806 = vlaneseq
        %v2807 = vshrl.u32 %v2806, 7
        %v2808 = vsub.s32 %v2306, %v2807
        %v2809 = vrot.slane %v949, %v2808
        %v2810 = vsel %vm2311, %v2809, %v2805
        %v2811 = vlaneseq
        %v2812 = vshrl.u32 %v2811, 7
        %v2813 = vsub.s32 %v2313, %v2812
        %v2814 = vrot.slane %v951, %v2813
        %v2815 = vsel %vm2318, %v2814, %v2810
        %v2816 = vlaneseq
        %v2817 = vshrl.u32 %v2816, 7
        %v2818 = vsub.s32 %v2320, %v2817
        %v2819 = vrot.slane %v953, %v2818
        %v2820 = vsel %vm2325, %v2819, %v2815
        %v2821 = vlaneseq
        %v2822 = vshrl.u32 %v2821, 7
        %v2823 = vsub.s32 %v2327, %v2822
        %v2824 = vrot.slane %v955, %v2823
        %v2825 = vsel %vm2332, %v2824, %v2820
        %v2826 = vlaneseq
        %v2827 = vshrl.u32 %v2826, 7
        %v2828 = vsub.s32 %v2334, %v2827
        %v2829 = vrot.slane %v957, %v2828
        %v2830 = vsel %vm2339, %v2829, %v2825
        %v2831 = vlaneseq
        %v2832 = vshrl.u32 %v2831, 7
        %v2833 = vsub.s32 %v2341, %v2832
        %v2834 = vrot.slane %v959, %v2833
        %v2835 = vsel %vm2346, %v2834, %v2830
        %v2836 = vlaneseq
        %v2837 = vshrl.u32 %v2836, 7
        %v2838 = vsub.s32 %v2348, %v2837
        %v2839 = vrot.slane %v961, %v2838
        %v2840 = vsel %vm2353, %v2839, %v2835
        %v2841 = vlaneseq
        %v2842 = vshrl.u32 %v2841, 7
        %v2843 = vsub.s32 %v2355, %v2842
        %v2844 = vrot.slane %v963, %v2843
        %v2845 = vsel %vm2360, %v2844, %v2840
        %v2846 = vlaneseq
        %v2847 = vshrl.u32 %v2846, 7
        %v2848 = vsub.s32 %v2362, %v2847
        %v2849 = vrot.slane %v965, %v2848
        %v2850 = vsel %vm2367, %v2849, %v2845
        %v2851 = vlaneseq
        %v2852 = vshrl.u32 %v2851, 7
        %v2853 = vsub.s32 %v2369, %v2852
        %v2854 = vrot.slane %v967, %v2853
        %v2855 = vsel %vm2374, %v2854, %v2850
        %v2856 = vlaneseq
        %v2857 = vshrl.u32 %v2856, 7
        %v2858 = vsub.s32 %v2376, %v2857
        %v2859 = vrot.slane %v969, %v2858
        %v2860 = vsel %vm2381, %v2859, %v2855
        %v2861 = vlaneseq
        %v2862 = vshrl.u32 %v2861, 7
        %v2863 = vsub.s32 %v2383, %v2862
        %v2864 = vrot.slane %v971, %v2863
        %v2865 = vsel %vm2388, %v2864, %v2860
        %v2866 = vlaneseq
        %v2867 = vshrl.u32 %v2866, 7
        %v2868 = vsub.s32 %v2390, %v2867
        %v2869 = vrot.slane %v973, %v2868
        %v2870 = vsel %vm2395, %v2869, %v2865
        %v2871 = vlaneseq
        %v2872 = vshrl.u32 %v2871, 7
        %v2873 = vsub.s32 %v2287, %v2872
        %v2874 = vrot.slane %v975, %v2873
        %v2875 = vlaneseq
        %v2876 = vshrl.u32 %v2875, 7
        %v2877 = vsub.s32 %v2292, %v2876
        %v2878 = vrot.slane %v977, %v2877
        %v2879 = vsel %vm2297, %v2878, %v2874
        %v2880 = vlaneseq
        %v2881 = vshrl.u32 %v2880, 7
        %v2882 = vsub.s32 %v2299, %v2881
        %v2883 = vrot.slane %v979, %v2882
        %v2884 = vsel %vm2304, %v2883, %v2879
        %v2885 = vlaneseq
        %v2886 = vshrl.u32 %v2885, 7
        %v2887 = vsub.s32 %v2306, %v2886
        %v2888 = vrot.slane %v981, %v2887
        %v2889 = vsel %vm2311, %v2888, %v2884
        %v2890 = vlaneseq
        %v2891 = vshrl.u32 %v2890, 7
        %v2892 = vsub.s32 %v2313, %v2891
        %v2893 = vrot.slane %v983, %v2892
        %v2894 = vsel %vm2318, %v2893, %v2889
        %v2895 = vlaneseq
        %v2896 = vshrl.u32 %v2895, 7
        %v2897 = vsub.s32 %v2320, %v2896
        %v2898 = vrot.slane %v985, %v2897
        %v2899 = vsel %vm2325, %v2898, %v2894
        %v2900 = vlaneseq
        %v2901 = vshrl.u32 %v2900, 7
        %v2902 = vsub.s32 %v2327, %v2901
        %v2903 = vrot.slane %v987, %v2902
        %v2904 = vsel %vm2332, %v2903, %v2899
        %v2905 = vlaneseq
        %v2906 = vshrl.u32 %v2905, 7
        %v2907 = vsub.s32 %v2334, %v2906
        %v2908 = vrot.slane %v989, %v2907
        %v2909 = vsel %vm2339, %v2908, %v2904
        %v2910 = vlaneseq
        %v2911 = vshrl.u32 %v2910, 7
        %v2912 = vsub.s32 %v2341, %v2911
        %v2913 = vrot.slane %v991, %v2912
        %v2914 = vsel %vm2346, %v2913, %v2909
        %v2915 = vlaneseq
        %v2916 = vshrl.u32 %v2915, 7
        %v2917 = vsub.s32 %v2348, %v2916
        %v2918 = vrot.slane %v993, %v2917
        %v2919 = vsel %vm2353, %v2918, %v2914
        %v2920 = vlaneseq
        %v2921 = vshrl.u32 %v2920, 7
        %v2922 = vsub.s32 %v2355, %v2921
        %v2923 = vrot.slane %v995, %v2922
        %v2924 = vsel %vm2360, %v2923, %v2919
        %v2925 = vlaneseq
        %v2926 = vshrl.u32 %v2925, 7
        %v2927 = vsub.s32 %v2362, %v2926
        %v2928 = vrot.slane %v997, %v2927
        %v2929 = vsel %vm2367, %v2928, %v2924
        %v2930 = vlaneseq
        %v2931 = vshrl.u32 %v2930, 7
        %v2932 = vsub.s32 %v2369, %v2931
        %v2933 = vrot.slane %v999, %v2932
        %v2934 = vsel %vm2374, %v2933, %v2929
        %v2935 = vlaneseq
        %v2936 = vshrl.u32 %v2935, 7
        %v2937 = vsub.s32 %v2376, %v2936
        %v2938 = vrot.slane %v1001, %v2937
        %v2939 = vsel %vm2381, %v2938, %v2934
        %v2940 = vlaneseq
        %v2941 = vshrl.u32 %v2940, 7
        %v2942 = vsub.s32 %v2383, %v2941
        %v2943 = vrot.slane %v1003, %v2942
        %v2944 = vsel %vm2388, %v2943, %v2939
        %v2945 = vlaneseq
        %v2946 = vshrl.u32 %v2945, 7
        %v2947 = vsub.s32 %v2390, %v2946
        %v2948 = vrot.slane %v1005, %v2947
        %v2949 = vsel %vm2395, %v2948, %v2944
        %v2950 = vlaneseq
        %v2951 = vshrl.u32 %v2950, 7
        %v2952 = vsub.s32 %v2287, %v2951
        %v2953 = vrot.slane %v1007, %v2952
        %v2954 = vlaneseq
        %v2955 = vshrl.u32 %v2954, 7
        %v2956 = vsub.s32 %v2292, %v2955
        %v2957 = vrot.slane %v1009, %v2956
        %v2958 = vsel %vm2297, %v2957, %v2953
        %v2959 = vlaneseq
        %v2960 = vshrl.u32 %v2959, 7
        %v2961 = vsub.s32 %v2299, %v2960
        %v2962 = vrot.slane %v1011, %v2961
        %v2963 = vsel %vm2304, %v2962, %v2958
        %v2964 = vlaneseq
        %v2965 = vshrl.u32 %v2964, 7
        %v2966 = vsub.s32 %v2306, %v2965
        %v2967 = vrot.slane %v1013, %v2966
        %v2968 = vsel %vm2311, %v2967, %v2963
        %v2969 = vlaneseq
        %v2970 = vshrl.u32 %v2969, 7
        %v2971 = vsub.s32 %v2313, %v2970
        %v2972 = vrot.slane %v1015, %v2971
        %v2973 = vsel %vm2318, %v2972, %v2968
        %v2974 = vlaneseq
        %v2975 = vshrl.u32 %v2974, 7
        %v2976 = vsub.s32 %v2320, %v2975
        %v2977 = vrot.slane %v1017, %v2976
        %v2978 = vsel %vm2325, %v2977, %v2973
        %v2979 = vlaneseq
        %v2980 = vshrl.u32 %v2979, 7
        %v2981 = vsub.s32 %v2327, %v2980
        %v2982 = vrot.slane %v1019, %v2981
        %v2983 = vsel %vm2332, %v2982, %v2978
        %v2984 = vlaneseq
        %v2985 = vshrl.u32 %v2984, 7
        %v2986 = vsub.s32 %v2334, %v2985
        %v2987 = vrot.slane %v1021, %v2986
        %v2988 = vsel %vm2339, %v2987, %v2983
        %v2989 = vlaneseq
        %v2990 = vshrl.u32 %v2989, 7
        %v2991 = vsub.s32 %v2341, %v2990
        %v2992 = vrot.slane %v1023, %v2991
        %v2993 = vsel %vm2346, %v2992, %v2988
        %v2994 = vlaneseq
        %v2995 = vshrl.u32 %v2994, 7
        %v2996 = vsub.s32 %v2348, %v2995
        %v2997 = vrot.slane %v1025, %v2996
        %v2998 = vsel %vm2353, %v2997, %v2993
        %v2999 = vlaneseq
        %v3000 = vshrl.u32 %v2999, 7
        %v3001 = vsub.s32 %v2355, %v3000
        %v3002 = vrot.slane %v1027, %v3001
        %v3003 = vsel %vm2360, %v3002, %v2998
        %v3004 = vlaneseq
        %v3005 = vshrl.u32 %v3004, 7
        %v3006 = vsub.s32 %v2362, %v3005
        %v3007 = vrot.slane %v1029, %v3006
        %v3008 = vsel %vm2367, %v3007, %v3003
        %v3009 = vlaneseq
        %v3010 = vshrl.u32 %v3009, 7
        %v3011 = vsub.s32 %v2369, %v3010
        %v3012 = vrot.slane %v1031, %v3011
        %v3013 = vsel %vm2374, %v3012, %v3008
        %v3014 = vlaneseq
        %v3015 = vshrl.u32 %v3014, 7
        %v3016 = vsub.s32 %v2376, %v3015
        %v3017 = vrot.slane %v1033, %v3016
        %v3018 = vsel %vm2381, %v3017, %v3013
        %v3019 = vlaneseq
        %v3020 = vshrl.u32 %v3019, 7
        %v3021 = vsub.s32 %v2383, %v3020
        %v3022 = vrot.slane %v1035, %v3021
        %v3023 = vsel %vm2388, %v3022, %v3018
        %v3024 = vlaneseq
        %v3025 = vshrl.u32 %v3024, 7
        %v3026 = vsub.s32 %v2390, %v3025
        %v3027 = vrot.slane %v1037, %v3026
        %v3028 = vsel %vm2395, %v3027, %v3023
        %v3029 = vlaneseq
        %v3030 = vshrl.u32 %v3029, 7
        %v3031 = vsub.s32 %v2287, %v3030
        %v3032 = vrot.slane %v1039, %v3031
        %v3033 = vlaneseq
        %v3034 = vshrl.u32 %v3033, 7
        %v3035 = vsub.s32 %v2292, %v3034
        %v3036 = vrot.slane %v1041, %v3035
        %v3037 = vsel %vm2297, %v3036, %v3032
        %v3038 = vlaneseq
        %v3039 = vshrl.u32 %v3038, 7
        %v3040 = vsub.s32 %v2299, %v3039
        %v3041 = vrot.slane %v1043, %v3040
        %v3042 = vsel %vm2304, %v3041, %v3037
        %v3043 = vlaneseq
        %v3044 = vshrl.u32 %v3043, 7
        %v3045 = vsub.s32 %v2306, %v3044
        %v3046 = vrot.slane %v1045, %v3045
        %v3047 = vsel %vm2311, %v3046, %v3042
        %v3048 = vlaneseq
        %v3049 = vshrl.u32 %v3048, 7
        %v3050 = vsub.s32 %v2313, %v3049
        %v3051 = vrot.slane %v1047, %v3050
        %v3052 = vsel %vm2318, %v3051, %v3047
        %v3053 = vlaneseq
        %v3054 = vshrl.u32 %v3053, 7
        %v3055 = vsub.s32 %v2320, %v3054
        %v3056 = vrot.slane %v1049, %v3055
        %v3057 = vsel %vm2325, %v3056, %v3052
        %v3058 = vlaneseq
        %v3059 = vshrl.u32 %v3058, 7
        %v3060 = vsub.s32 %v2327, %v3059
        %v3061 = vrot.slane %v1051, %v3060
        %v3062 = vsel %vm2332, %v3061, %v3057
        %v3063 = vlaneseq
        %v3064 = vshrl.u32 %v3063, 7
        %v3065 = vsub.s32 %v2334, %v3064
        %v3066 = vrot.slane %v1053, %v3065
        %v3067 = vsel %vm2339, %v3066, %v3062
        %v3068 = vlaneseq
        %v3069 = vshrl.u32 %v3068, 7
        %v3070 = vsub.s32 %v2341, %v3069
        %v3071 = vrot.slane %v1055, %v3070
        %v3072 = vsel %vm2346, %v3071, %v3067
        %v3073 = vlaneseq
        %v3074 = vshrl.u32 %v3073, 7
        %v3075 = vsub.s32 %v2348, %v3074
        %v3076 = vrot.slane %v1057, %v3075
        %v3077 = vsel %vm2353, %v3076, %v3072
        %v3078 = vlaneseq
        %v3079 = vshrl.u32 %v3078, 7
        %v3080 = vsub.s32 %v2355, %v3079
        %v3081 = vrot.slane %v1059, %v3080
        %v3082 = vsel %vm2360, %v3081, %v3077
        %v3083 = vlaneseq
        %v3084 = vshrl.u32 %v3083, 7
        %v3085 = vsub.s32 %v2362, %v3084
        %v3086 = vrot.slane %v1061, %v3085
        %v3087 = vsel %vm2367, %v3086, %v3082
        %v3088 = vlaneseq
        %v3089 = vshrl.u32 %v3088, 7
        %v3090 = vsub.s32 %v2369, %v3089
        %v3091 = vrot.slane %v1063, %v3090
        %v3092 = vsel %vm2374, %v3091, %v3087
        %v3093 = vlaneseq
        %v3094 = vshrl.u32 %v3093, 7
        %v3095 = vsub.s32 %v2376, %v3094
        %v3096 = vrot.slane %v1065, %v3095
        %v3097 = vsel %vm2381, %v3096, %v3092
        %v3098 = vlaneseq
        %v3099 = vshrl.u32 %v3098, 7
        %v3100 = vsub.s32 %v2383, %v3099
        %v3101 = vrot.slane %v1067, %v3100
        %v3102 = vsel %vm2388, %v3101, %v3097
        %v3103 = vlaneseq
        %v3104 = vshrl.u32 %v3103, 7
        %v3105 = vsub.s32 %v2390, %v3104
        %v3106 = vrot.slane %v1069, %v3105
        %v3107 = vsel %vm2395, %v3106, %v3102
        %v3108 = vlaneseq
        %v3109 = vshrl.u32 %v3108, 7
        %v3110 = vsub.s32 %v2287, %v3109
        %v3111 = vrot.slane %v1071, %v3110
        %v3112 = vlaneseq
        %v3113 = vshrl.u32 %v3112, 7
        %v3114 = vsub.s32 %v2292, %v3113
        %v3115 = vrot.slane %v1073, %v3114
        %v3116 = vsel %vm2297, %v3115, %v3111
        %v3117 = vlaneseq
        %v3118 = vshrl.u32 %v3117, 7
        %v3119 = vsub.s32 %v2299, %v3118
        %v3120 = vrot.slane %v1075, %v3119
        %v3121 = vsel %vm2304, %v3120, %v3116
        %v3122 = vlaneseq
        %v3123 = vshrl.u32 %v3122, 7
        %v3124 = vsub.s32 %v2306, %v3123
        %v3125 = vrot.slane %v1077, %v3124
        %v3126 = vsel %vm2311, %v3125, %v3121
        %v3127 = vlaneseq
        %v3128 = vshrl.u32 %v3127, 7
        %v3129 = vsub.s32 %v2313, %v3128
        %v3130 = vrot.slane %v1079, %v3129
        %v3131 = vsel %vm2318, %v3130, %v3126
        %v3132 = vlaneseq
        %v3133 = vshrl.u32 %v3132, 7
        %v3134 = vsub.s32 %v2320, %v3133
        %v3135 = vrot.slane %v1081, %v3134
        %v3136 = vsel %vm2325, %v3135, %v3131
        %v3137 = vlaneseq
        %v3138 = vshrl.u32 %v3137, 7
        %v3139 = vsub.s32 %v2327, %v3138
        %v3140 = vrot.slane %v1083, %v3139
        %v3141 = vsel %vm2332, %v3140, %v3136
        %v3142 = vlaneseq
        %v3143 = vshrl.u32 %v3142, 7
        %v3144 = vsub.s32 %v2334, %v3143
        %v3145 = vrot.slane %v1085, %v3144
        %v3146 = vsel %vm2339, %v3145, %v3141
        %v3147 = vlaneseq
        %v3148 = vshrl.u32 %v3147, 7
        %v3149 = vsub.s32 %v2341, %v3148
        %v3150 = vrot.slane %v1087, %v3149
        %v3151 = vsel %vm2346, %v3150, %v3146
        %v3152 = vlaneseq
        %v3153 = vshrl.u32 %v3152, 7
        %v3154 = vsub.s32 %v2348, %v3153
        %v3155 = vrot.slane %v1089, %v3154
        %v3156 = vsel %vm2353, %v3155, %v3151
        %v3157 = vlaneseq
        %v3158 = vshrl.u32 %v3157, 7
        %v3159 = vsub.s32 %v2355, %v3158
        %v3160 = vrot.slane %v1091, %v3159
        %v3161 = vsel %vm2360, %v3160, %v3156
        %v3162 = vlaneseq
        %v3163 = vshrl.u32 %v3162, 7
        %v3164 = vsub.s32 %v2362, %v3163
        %v3165 = vrot.slane %v1093, %v3164
        %v3166 = vsel %vm2367, %v3165, %v3161
        %v3167 = vlaneseq
        %v3168 = vshrl.u32 %v3167, 7
        %v3169 = vsub.s32 %v2369, %v3168
        %v3170 = vrot.slane %v1095, %v3169
        %v3171 = vsel %vm2374, %v3170, %v3166
        %v3172 = vlaneseq
        %v3173 = vshrl.u32 %v3172, 7
        %v3174 = vsub.s32 %v2376, %v3173
        %v3175 = vrot.slane %v1097, %v3174
        %v3176 = vsel %vm2381, %v3175, %v3171
        %v3177 = vlaneseq
        %v3178 = vshrl.u32 %v3177, 7
        %v3179 = vsub.s32 %v2383, %v3178
        %v3180 = vrot.slane %v1099, %v3179
        %v3181 = vsel %vm2388, %v3180, %v3176
        %v3182 = vlaneseq
        %v3183 = vshrl.u32 %v3182, 7
        %v3184 = vsub.s32 %v2390, %v3183
        %v3185 = vrot.slane %v1101, %v3184
        %v3186 = vsel %vm2395, %v3185, %v3181
        %v3187 = vlaneseq
        %v3188 = vshrl.u32 %v3187, 7
        %v3189 = vsub.s32 %v2287, %v3188
        %v3190 = vrot.slane %v1103, %v3189
        %v3191 = vlaneseq
        %v3192 = vshrl.u32 %v3191, 7
        %v3193 = vsub.s32 %v2292, %v3192
        %v3194 = vrot.slane %v1105, %v3193
        %v3195 = vsel %vm2297, %v3194, %v3190
        %v3196 = vlaneseq
        %v3197 = vshrl.u32 %v3196, 7
        %v3198 = vsub.s32 %v2299, %v3197
        %v3199 = vrot.slane %v1107, %v3198
        %v3200 = vsel %vm2304, %v3199, %v3195
        %v3201 = vlaneseq
        %v3202 = vshrl.u32 %v3201, 7
        %v3203 = vsub.s32 %v2306, %v3202
        %v3204 = vrot.slane %v1109, %v3203
        %v3205 = vsel %vm2311, %v3204, %v3200
        %v3206 = vlaneseq
        %v3207 = vshrl.u32 %v3206, 7
        %v3208 = vsub.s32 %v2313, %v3207
        %v3209 = vrot.slane %v1111, %v3208
        %v3210 = vsel %vm2318, %v3209, %v3205
        %v3211 = vlaneseq
        %v3212 = vshrl.u32 %v3211, 7
        %v3213 = vsub.s32 %v2320, %v3212
        %v3214 = vrot.slane %v1113, %v3213
        %v3215 = vsel %vm2325, %v3214, %v3210
        %v3216 = vlaneseq
        %v3217 = vshrl.u32 %v3216, 7
        %v3218 = vsub.s32 %v2327, %v3217
        %v3219 = vrot.slane %v1115, %v3218
        %v3220 = vsel %vm2332, %v3219, %v3215
        %v3221 = vlaneseq
        %v3222 = vshrl.u32 %v3221, 7
        %v3223 = vsub.s32 %v2334, %v3222
        %v3224 = vrot.slane %v1117, %v3223
        %v3225 = vsel %vm2339, %v3224, %v3220
        %v3226 = vlaneseq
        %v3227 = vshrl.u32 %v3226, 7
        %v3228 = vsub.s32 %v2341, %v3227
        %v3229 = vrot.slane %v1119, %v3228
        %v3230 = vsel %vm2346, %v3229, %v3225
        %v3231 = vlaneseq
        %v3232 = vshrl.u32 %v3231, 7
        %v3233 = vsub.s32 %v2348, %v3232
        %v3234 = vrot.slane %v1121, %v3233
        %v3235 = vsel %vm2353, %v3234, %v3230
        %v3236 = vlaneseq
        %v3237 = vshrl.u32 %v3236, 7
        %v3238 = vsub.s32 %v2355, %v3237
        %v3239 = vrot.slane %v1123, %v3238
        %v3240 = vsel %vm2360, %v3239, %v3235
        %v3241 = vlaneseq
        %v3242 = vshrl.u32 %v3241, 7
        %v3243 = vsub.s32 %v2362, %v3242
        %v3244 = vrot.slane %v1125, %v3243
        %v3245 = vsel %vm2367, %v3244, %v3240
        %v3246 = vlaneseq
        %v3247 = vshrl.u32 %v3246, 7
        %v3248 = vsub.s32 %v2369, %v3247
        %v3249 = vrot.slane %v1127, %v3248
        %v3250 = vsel %vm2374, %v3249, %v3245
        %v3251 = vlaneseq
        %v3252 = vshrl.u32 %v3251, 7
        %v3253 = vsub.s32 %v2376, %v3252
        %v3254 = vrot.slane %v1129, %v3253
        %v3255 = vsel %vm2381, %v3254, %v3250
        %v3256 = vlaneseq
        %v3257 = vshrl.u32 %v3256, 7
        %v3258 = vsub.s32 %v2383, %v3257
        %v3259 = vrot.slane %v1131, %v3258
        %v3260 = vsel %vm2388, %v3259, %v3255
        %v3261 = vlaneseq
        %v3262 = vshrl.u32 %v3261, 7
        %v3263 = vsub.s32 %v2390, %v3262
        %v3264 = vrot.slane %v1133, %v3263
        %v3265 = vsel %vm2395, %v3264, %v3260
        %v3266 = vlaneseq
        %v3267 = vshrl.u32 %v3266, 7
        %v3268 = vsub.s32 %v2287, %v3267
        %v3269 = vrot.slane %v1135, %v3268
        %v3270 = vlaneseq
        %v3271 = vshrl.u32 %v3270, 7
        %v3272 = vsub.s32 %v2292, %v3271
        %v3273 = vrot.slane %v1137, %v3272
        %v3274 = vsel %vm2297, %v3273, %v3269
        %v3275 = vlaneseq
        %v3276 = vshrl.u32 %v3275, 7
        %v3277 = vsub.s32 %v2299, %v3276
        %v3278 = vrot.slane %v1139, %v3277
        %v3279 = vsel %vm2304, %v3278, %v3274
        %v3280 = vlaneseq
        %v3281 = vshrl.u32 %v3280, 7
        %v3282 = vsub.s32 %v2306, %v3281
        %v3283 = vrot.slane %v1141, %v3282
        %v3284 = vsel %vm2311, %v3283, %v3279
        %v3285 = vlaneseq
        %v3286 = vshrl.u32 %v3285, 7
        %v3287 = vsub.s32 %v2313, %v3286
        %v3288 = vrot.slane %v1143, %v3287
        %v3289 = vsel %vm2318, %v3288, %v3284
        %v3290 = vlaneseq
        %v3291 = vshrl.u32 %v3290, 7
        %v3292 = vsub.s32 %v2320, %v3291
        %v3293 = vrot.slane %v1145, %v3292
        %v3294 = vsel %vm2325, %v3293, %v3289
        %v3295 = vlaneseq
        %v3296 = vshrl.u32 %v3295, 7
        %v3297 = vsub.s32 %v2327, %v3296
        %v3298 = vrot.slane %v1147, %v3297
        %v3299 = vsel %vm2332, %v3298, %v3294
        %v3300 = vlaneseq
        %v3301 = vshrl.u32 %v3300, 7
        %v3302 = vsub.s32 %v2334, %v3301
        %v3303 = vrot.slane %v1149, %v3302
        %v3304 = vsel %vm2339, %v3303, %v3299
        %v3305 = vlaneseq
        %v3306 = vshrl.u32 %v3305, 7
        %v3307 = vsub.s32 %v2341, %v3306
        %v3308 = vrot.slane %v1151, %v3307
        %v3309 = vsel %vm2346, %v3308, %v3304
        %v3310 = vlaneseq
        %v3311 = vshrl.u32 %v3310, 7
        %v3312 = vsub.s32 %v2348, %v3311
        %v3313 = vrot.slane %v1153, %v3312
        %v3314 = vsel %vm2353, %v3313, %v3309
        %v3315 = vlaneseq
        %v3316 = vshrl.u32 %v3315, 7
        %v3317 = vsub.s32 %v2355, %v3316
        %v3318 = vrot.slane %v1155, %v3317
        %v3319 = vsel %vm2360, %v3318, %v3314
        %v3320 = vlaneseq
        %v3321 = vshrl.u32 %v3320, 7
        %v3322 = vsub.s32 %v2362, %v3321
        %v3323 = vrot.slane %v1157, %v3322
        %v3324 = vsel %vm2367, %v3323, %v3319
        %v3325 = vlaneseq
        %v3326 = vshrl.u32 %v3325, 7
        %v3327 = vsub.s32 %v2369, %v3326
        %v3328 = vrot.slane %v1159, %v3327
        %v3329 = vsel %vm2374, %v3328, %v3324
        %v3330 = vlaneseq
        %v3331 = vshrl.u32 %v3330, 7
        %v3332 = vsub.s32 %v2376, %v3331
        %v3333 = vrot.slane %v1161, %v3332
        %v3334 = vsel %vm2381, %v3333, %v3329
        %v3335 = vlaneseq
        %v3336 = vshrl.u32 %v3335, 7
        %v3337 = vsub.s32 %v2383, %v3336
        %v3338 = vrot.slane %v1163, %v3337
        %v3339 = vsel %vm2388, %v3338, %v3334
        %v3340 = vlaneseq
        %v3341 = vshrl.u32 %v3340, 7
        %v3342 = vsub.s32 %v2390, %v3341
        %v3343 = vrot.slane %v1165, %v3342
        %v3344 = vsel %vm2395, %v3343, %v3339
        %v3345 = vlaneseq
        %v3346 = vshrl.u32 %v3345, 7
        %v3347 = vsub.s32 %v2287, %v3346
        %v3348 = vrot.slane %v1167, %v3347
        %v3349 = vlaneseq
        %v3350 = vshrl.u32 %v3349, 7
        %v3351 = vsub.s32 %v2292, %v3350
        %v3352 = vrot.slane %v1169, %v3351
        %v3353 = vsel %vm2297, %v3352, %v3348
        %v3354 = vlaneseq
        %v3355 = vshrl.u32 %v3354, 7
        %v3356 = vsub.s32 %v2299, %v3355
        %v3357 = vrot.slane %v1171, %v3356
        %v3358 = vsel %vm2304, %v3357, %v3353
        %v3359 = vlaneseq
        %v3360 = vshrl.u32 %v3359, 7
        %v3361 = vsub.s32 %v2306, %v3360
        %v3362 = vrot.slane %v1173, %v3361
        %v3363 = vsel %vm2311, %v3362, %v3358
        %v3364 = vlaneseq
        %v3365 = vshrl.u32 %v3364, 7
        %v3366 = vsub.s32 %v2313, %v3365
        %v3367 = vrot.slane %v1175, %v3366
        %v3368 = vsel %vm2318, %v3367, %v3363
        %v3369 = vlaneseq
        %v3370 = vshrl.u32 %v3369, 7
        %v3371 = vsub.s32 %v2320, %v3370
        %v3372 = vrot.slane %v1177, %v3371
        %v3373 = vsel %vm2325, %v3372, %v3368
        %v3374 = vlaneseq
        %v3375 = vshrl.u32 %v3374, 7
        %v3376 = vsub.s32 %v2327, %v3375
        %v3377 = vrot.slane %v1179, %v3376
        %v3378 = vsel %vm2332, %v3377, %v3373
        %v3379 = vlaneseq
        %v3380 = vshrl.u32 %v3379, 7
        %v3381 = vsub.s32 %v2334, %v3380
        %v3382 = vrot.slane %v1181, %v3381
        %v3383 = vsel %vm2339, %v3382, %v3378
        %v3384 = vlaneseq
        %v3385 = vshrl.u32 %v3384, 7
        %v3386 = vsub.s32 %v2341, %v3385
        %v3387 = vrot.slane %v1183, %v3386
        %v3388 = vsel %vm2346, %v3387, %v3383
        %v3389 = vlaneseq
        %v3390 = vshrl.u32 %v3389, 7
        %v3391 = vsub.s32 %v2348, %v3390
        %v3392 = vrot.slane %v1185, %v3391
        %v3393 = vsel %vm2353, %v3392, %v3388
        %v3394 = vlaneseq
        %v3395 = vshrl.u32 %v3394, 7
        %v3396 = vsub.s32 %v2355, %v3395
        %v3397 = vrot.slane %v1187, %v3396
        %v3398 = vsel %vm2360, %v3397, %v3393
        %v3399 = vlaneseq
        %v3400 = vshrl.u32 %v3399, 7
        %v3401 = vsub.s32 %v2362, %v3400
        %v3402 = vrot.slane %v1189, %v3401
        %v3403 = vsel %vm2367, %v3402, %v3398
        %v3404 = vlaneseq
        %v3405 = vshrl.u32 %v3404, 7
        %v3406 = vsub.s32 %v2369, %v3405
        %v3407 = vrot.slane %v1191, %v3406
        %v3408 = vsel %vm2374, %v3407, %v3403
        %v3409 = vlaneseq
        %v3410 = vshrl.u32 %v3409, 7
        %v3411 = vsub.s32 %v2376, %v3410
        %v3412 = vrot.slane %v1193, %v3411
        %v3413 = vsel %vm2381, %v3412, %v3408
        %v3414 = vlaneseq
        %v3415 = vshrl.u32 %v3414, 7
        %v3416 = vsub.s32 %v2383, %v3415
        %v3417 = vrot.slane %v1195, %v3416
        %v3418 = vsel %vm2388, %v3417, %v3413
        %v3419 = vlaneseq
        %v3420 = vshrl.u32 %v3419, 7
        %v3421 = vsub.s32 %v2390, %v3420
        %v3422 = vrot.slane %v1197, %v3421
        %v3423 = vsel %vm2395, %v3422, %v3418
        %v3424 = vlaneseq
        %v3425 = vshrl.u32 %v3424, 7
        %v3426 = vsub.s32 %v2287, %v3425
        %v3427 = vrot.slane %v1199, %v3426
        %v3428 = vlaneseq
        %v3429 = vshrl.u32 %v3428, 7
        %v3430 = vsub.s32 %v2292, %v3429
        %v3431 = vrot.slane %v1201, %v3430
        %v3432 = vsel %vm2297, %v3431, %v3427
        %v3433 = vlaneseq
        %v3434 = vshrl.u32 %v3433, 7
        %v3435 = vsub.s32 %v2299, %v3434
        %v3436 = vrot.slane %v1203, %v3435
        %v3437 = vsel %vm2304, %v3436, %v3432
        %v3438 = vlaneseq
        %v3439 = vshrl.u32 %v3438, 7
        %v3440 = vsub.s32 %v2306, %v3439
        %v3441 = vrot.slane %v1205, %v3440
        %v3442 = vsel %vm2311, %v3441, %v3437
        %v3443 = vlaneseq
        %v3444 = vshrl.u32 %v3443, 7
        %v3445 = vsub.s32 %v2313, %v3444
        %v3446 = vrot.slane %v1207, %v3445
        %v3447 = vsel %vm2318, %v3446, %v3442
        %v3448 = vlaneseq
        %v3449 = vshrl.u32 %v3448, 7
        %v3450 = vsub.s32 %v2320, %v3449
        %v3451 = vrot.slane %v1209, %v3450
        %v3452 = vsel %vm2325, %v3451, %v3447
        %v3453 = vlaneseq
        %v3454 = vshrl.u32 %v3453, 7
        %v3455 = vsub.s32 %v2327, %v3454
        %v3456 = vrot.slane %v1211, %v3455
        %v3457 = vsel %vm2332, %v3456, %v3452
        %v3458 = vlaneseq
        %v3459 = vshrl.u32 %v3458, 7
        %v3460 = vsub.s32 %v2334, %v3459
        %v3461 = vrot.slane %v1213, %v3460
        %v3462 = vsel %vm2339, %v3461, %v3457
        %v3463 = vlaneseq
        %v3464 = vshrl.u32 %v3463, 7
        %v3465 = vsub.s32 %v2341, %v3464
        %v3466 = vrot.slane %v1215, %v3465
        %v3467 = vsel %vm2346, %v3466, %v3462
        %v3468 = vlaneseq
        %v3469 = vshrl.u32 %v3468, 7
        %v3470 = vsub.s32 %v2348, %v3469
        %v3471 = vrot.slane %v1217, %v3470
        %v3472 = vsel %vm2353, %v3471, %v3467
        %v3473 = vlaneseq
        %v3474 = vshrl.u32 %v3473, 7
        %v3475 = vsub.s32 %v2355, %v3474
        %v3476 = vrot.slane %v1219, %v3475
        %v3477 = vsel %vm2360, %v3476, %v3472
        %v3478 = vlaneseq
        %v3479 = vshrl.u32 %v3478, 7
        %v3480 = vsub.s32 %v2362, %v3479
        %v3481 = vrot.slane %v1221, %v3480
        %v3482 = vsel %vm2367, %v3481, %v3477
        %v3483 = vlaneseq
        %v3484 = vshrl.u32 %v3483, 7
        %v3485 = vsub.s32 %v2369, %v3484
        %v3486 = vrot.slane %v1223, %v3485
        %v3487 = vsel %vm2374, %v3486, %v3482
        %v3488 = vlaneseq
        %v3489 = vshrl.u32 %v3488, 7
        %v3490 = vsub.s32 %v2376, %v3489
        %v3491 = vrot.slane %v1225, %v3490
        %v3492 = vsel %vm2381, %v3491, %v3487
        %v3493 = vlaneseq
        %v3494 = vshrl.u32 %v3493, 7
        %v3495 = vsub.s32 %v2383, %v3494
        %v3496 = vrot.slane %v1227, %v3495
        %v3497 = vsel %vm2388, %v3496, %v3492
        %v3498 = vlaneseq
        %v3499 = vshrl.u32 %v3498, 7
        %v3500 = vsub.s32 %v2390, %v3499
        %v3501 = vrot.slane %v1229, %v3500
        %v3502 = vsel %vm2395, %v3501, %v3497
        %v3503 = vlaneseq
        %v3504 = vshrl.u32 %v3503, 7
        %v3505 = vsub.s32 %v2287, %v3504
        %v3506 = vrot.slane %v1231, %v3505
        %v3507 = vlaneseq
        %v3508 = vshrl.u32 %v3507, 7
        %v3509 = vsub.s32 %v2292, %v3508
        %v3510 = vrot.slane %v1233, %v3509
        %v3511 = vsel %vm2297, %v3510, %v3506
        %v3512 = vlaneseq
        %v3513 = vshrl.u32 %v3512, 7
        %v3514 = vsub.s32 %v2299, %v3513
        %v3515 = vrot.slane %v1235, %v3514
        %v3516 = vsel %vm2304, %v3515, %v3511
        %v3517 = vlaneseq
        %v3518 = vshrl.u32 %v3517, 7
        %v3519 = vsub.s32 %v2306, %v3518
        %v3520 = vrot.slane %v1237, %v3519
        %v3521 = vsel %vm2311, %v3520, %v3516
        %v3522 = vlaneseq
        %v3523 = vshrl.u32 %v3522, 7
        %v3524 = vsub.s32 %v2313, %v3523
        %v3525 = vrot.slane %v1239, %v3524
        %v3526 = vsel %vm2318, %v3525, %v3521
        %v3527 = vlaneseq
        %v3528 = vshrl.u32 %v3527, 7
        %v3529 = vsub.s32 %v2320, %v3528
        %v3530 = vrot.slane %v1241, %v3529
        %v3531 = vsel %vm2325, %v3530, %v3526
        %v3532 = vlaneseq
        %v3533 = vshrl.u32 %v3532, 7
        %v3534 = vsub.s32 %v2327, %v3533
        %v3535 = vrot.slane %v1243, %v3534
        %v3536 = vsel %vm2332, %v3535, %v3531
        %v3537 = vlaneseq
        %v3538 = vshrl.u32 %v3537, 7
        %v3539 = vsub.s32 %v2334, %v3538
        %v3540 = vrot.slane %v1245, %v3539
        %v3541 = vsel %vm2339, %v3540, %v3536
        %v3542 = vlaneseq
        %v3543 = vshrl.u32 %v3542, 7
        %v3544 = vsub.s32 %v2341, %v3543
        %v3545 = vrot.slane %v1247, %v3544
        %v3546 = vsel %vm2346, %v3545, %v3541
        %v3547 = vlaneseq
        %v3548 = vshrl.u32 %v3547, 7
        %v3549 = vsub.s32 %v2348, %v3548
        %v3550 = vrot.slane %v1249, %v3549
        %v3551 = vsel %vm2353, %v3550, %v3546
        %v3552 = vlaneseq
        %v3553 = vshrl.u32 %v3552, 7
        %v3554 = vsub.s32 %v2355, %v3553
        %v3555 = vrot.slane %v1251, %v3554
        %v3556 = vsel %vm2360, %v3555, %v3551
        %v3557 = vlaneseq
        %v3558 = vshrl.u32 %v3557, 7
        %v3559 = vsub.s32 %v2362, %v3558
        %v3560 = vrot.slane %v1253, %v3559
        %v3561 = vsel %vm2367, %v3560, %v3556
        %v3562 = vlaneseq
        %v3563 = vshrl.u32 %v3562, 7
        %v3564 = vsub.s32 %v2369, %v3563
        %v3565 = vrot.slane %v1255, %v3564
        %v3566 = vsel %vm2374, %v3565, %v3561
        %v3567 = vlaneseq
        %v3568 = vshrl.u32 %v3567, 7
        %v3569 = vsub.s32 %v2376, %v3568
        %v3570 = vrot.slane %v1257, %v3569
        %v3571 = vsel %vm2381, %v3570, %v3566
        %v3572 = vlaneseq
        %v3573 = vshrl.u32 %v3572, 7
        %v3574 = vsub.s32 %v2383, %v3573
        %v3575 = vrot.slane %v1259, %v3574
        %v3576 = vsel %vm2388, %v3575, %v3571
        %v3577 = vlaneseq
        %v3578 = vshrl.u32 %v3577, 7
        %v3579 = vsub.s32 %v2390, %v3578
        %v3580 = vrot.slane %v1261, %v3579
        %v3581 = vsel %vm2395, %v3580, %v3576
        %v3582 = vlaneseq
        %v3583 = vshrl.u32 %v3582, 7
        %v3584 = vsub.s32 %v2287, %v3583
        %v3585 = vrot.slane %v1263, %v3584
        %v3586 = vlaneseq
        %v3587 = vshrl.u32 %v3586, 7
        %v3588 = vsub.s32 %v2292, %v3587
        %v3589 = vrot.slane %v1265, %v3588
        %v3590 = vsel %vm2297, %v3589, %v3585
        %v3591 = vlaneseq
        %v3592 = vshrl.u32 %v3591, 7
        %v3593 = vsub.s32 %v2299, %v3592
        %v3594 = vrot.slane %v1267, %v3593
        %v3595 = vsel %vm2304, %v3594, %v3590
        %v3596 = vlaneseq
        %v3597 = vshrl.u32 %v3596, 7
        %v3598 = vsub.s32 %v2306, %v3597
        %v3599 = vrot.slane %v1269, %v3598
        %v3600 = vsel %vm2311, %v3599, %v3595
        %v3601 = vlaneseq
        %v3602 = vshrl.u32 %v3601, 7
        %v3603 = vsub.s32 %v2313, %v3602
        %v3604 = vrot.slane %v1271, %v3603
        %v3605 = vsel %vm2318, %v3604, %v3600
        %v3606 = vlaneseq
        %v3607 = vshrl.u32 %v3606, 7
        %v3608 = vsub.s32 %v2320, %v3607
        %v3609 = vrot.slane %v1273, %v3608
        %v3610 = vsel %vm2325, %v3609, %v3605
        %v3611 = vlaneseq
        %v3612 = vshrl.u32 %v3611, 7
        %v3613 = vsub.s32 %v2327, %v3612
        %v3614 = vrot.slane %v1275, %v3613
        %v3615 = vsel %vm2332, %v3614, %v3610
        %v3616 = vlaneseq
        %v3617 = vshrl.u32 %v3616, 7
        %v3618 = vsub.s32 %v2334, %v3617
        %v3619 = vrot.slane %v1277, %v3618
        %v3620 = vsel %vm2339, %v3619, %v3615
        %v3621 = vlaneseq
        %v3622 = vshrl.u32 %v3621, 7
        %v3623 = vsub.s32 %v2341, %v3622
        %v3624 = vrot.slane %v1279, %v3623
        %v3625 = vsel %vm2346, %v3624, %v3620
        %v3626 = vlaneseq
        %v3627 = vshrl.u32 %v3626, 7
        %v3628 = vsub.s32 %v2348, %v3627
        %v3629 = vrot.slane %v1281, %v3628
        %v3630 = vsel %vm2353, %v3629, %v3625
        %v3631 = vlaneseq
        %v3632 = vshrl.u32 %v3631, 7
        %v3633 = vsub.s32 %v2355, %v3632
        %v3634 = vrot.slane %v1283, %v3633
        %v3635 = vsel %vm2360, %v3634, %v3630
        %v3636 = vlaneseq
        %v3637 = vshrl.u32 %v3636, 7
        %v3638 = vsub.s32 %v2362, %v3637
        %v3639 = vrot.slane %v1285, %v3638
        %v3640 = vsel %vm2367, %v3639, %v3635
        %v3641 = vlaneseq
        %v3642 = vshrl.u32 %v3641, 7
        %v3643 = vsub.s32 %v2369, %v3642
        %v3644 = vrot.slane %v1287, %v3643
        %v3645 = vsel %vm2374, %v3644, %v3640
        %v3646 = vlaneseq
        %v3647 = vshrl.u32 %v3646, 7
        %v3648 = vsub.s32 %v2376, %v3647
        %v3649 = vrot.slane %v1289, %v3648
        %v3650 = vsel %vm2381, %v3649, %v3645
        %v3651 = vlaneseq
        %v3652 = vshrl.u32 %v3651, 7
        %v3653 = vsub.s32 %v2383, %v3652
        %v3654 = vrot.slane %v1291, %v3653
        %v3655 = vsel %vm2388, %v3654, %v3650
        %v3656 = vlaneseq
        %v3657 = vshrl.u32 %v3656, 7
        %v3658 = vsub.s32 %v2390, %v3657
        %v3659 = vrot.slane %v1293, %v3658
        %v3660 = vsel %vm2395, %v3659, %v3655
        %v3661 = vlaneseq
        %v3662 = vshrl.u32 %v3661, 7
        %v3663 = vsub.s32 %v2287, %v3662
        %v3664 = vrot.slane %v1295, %v3663
        %v3665 = vlaneseq
        %v3666 = vshrl.u32 %v3665, 7
        %v3667 = vsub.s32 %v2292, %v3666
        %v3668 = vrot.slane %v1297, %v3667
        %v3669 = vsel %vm2297, %v3668, %v3664
        %v3670 = vlaneseq
        %v3671 = vshrl.u32 %v3670, 7
        %v3672 = vsub.s32 %v2299, %v3671
        %v3673 = vrot.slane %v1299, %v3672
        %v3674 = vsel %vm2304, %v3673, %v3669
        %v3675 = vlaneseq
        %v3676 = vshrl.u32 %v3675, 7
        %v3677 = vsub.s32 %v2306, %v3676
        %v3678 = vrot.slane %v1301, %v3677
        %v3679 = vsel %vm2311, %v3678, %v3674
        %v3680 = vlaneseq
        %v3681 = vshrl.u32 %v3680, 7
        %v3682 = vsub.s32 %v2313, %v3681
        %v3683 = vrot.slane %v1303, %v3682
        %v3684 = vsel %vm2318, %v3683, %v3679
        %v3685 = vlaneseq
        %v3686 = vshrl.u32 %v3685, 7
        %v3687 = vsub.s32 %v2320, %v3686
        %v3688 = vrot.slane %v1305, %v3687
        %v3689 = vsel %vm2325, %v3688, %v3684
        %v3690 = vlaneseq
        %v3691 = vshrl.u32 %v3690, 7
        %v3692 = vsub.s32 %v2327, %v3691
        %v3693 = vrot.slane %v1307, %v3692
        %v3694 = vsel %vm2332, %v3693, %v3689
        %v3695 = vlaneseq
        %v3696 = vshrl.u32 %v3695, 7
        %v3697 = vsub.s32 %v2334, %v3696
        %v3698 = vrot.slane %v1309, %v3697
        %v3699 = vsel %vm2339, %v3698, %v3694
        %v3700 = vlaneseq
        %v3701 = vshrl.u32 %v3700, 7
        %v3702 = vsub.s32 %v2341, %v3701
        %v3703 = vrot.slane %v1311, %v3702
        %v3704 = vsel %vm2346, %v3703, %v3699
        %v3705 = vlaneseq
        %v3706 = vshrl.u32 %v3705, 7
        %v3707 = vsub.s32 %v2348, %v3706
        %v3708 = vrot.slane %v1313, %v3707
        %v3709 = vsel %vm2353, %v3708, %v3704
        %v3710 = vlaneseq
        %v3711 = vshrl.u32 %v3710, 7
        %v3712 = vsub.s32 %v2355, %v3711
        %v3713 = vrot.slane %v1315, %v3712
        %v3714 = vsel %vm2360, %v3713, %v3709
        %v3715 = vlaneseq
        %v3716 = vshrl.u32 %v3715, 7
        %v3717 = vsub.s32 %v2362, %v3716
        %v3718 = vrot.slane %v1317, %v3717
        %v3719 = vsel %vm2367, %v3718, %v3714
        %v3720 = vlaneseq
        %v3721 = vshrl.u32 %v3720, 7
        %v3722 = vsub.s32 %v2369, %v3721
        %v3723 = vrot.slane %v1319, %v3722
        %v3724 = vsel %vm2374, %v3723, %v3719
        %v3725 = vlaneseq
        %v3726 = vshrl.u32 %v3725, 7
        %v3727 = vsub.s32 %v2376, %v3726
        %v3728 = vrot.slane %v1321, %v3727
        %v3729 = vsel %vm2381, %v3728, %v3724
        %v3730 = vlaneseq
        %v3731 = vshrl.u32 %v3730, 7
        %v3732 = vsub.s32 %v2383, %v3731
        %v3733 = vrot.slane %v1323, %v3732
        %v3734 = vsel %vm2388, %v3733, %v3729
        %v3735 = vlaneseq
        %v3736 = vshrl.u32 %v3735, 7
        %v3737 = vsub.s32 %v2390, %v3736
        %v3738 = vrot.slane %v1325, %v3737
        %v3739 = vsel %vm2395, %v3738, %v3734
        %v3740 = vlaneseq
        %v3741 = vshrl.u32 %v3740, 7
        %v3742 = vsub.s32 %v2287, %v3741
        %v3743 = vrot.slane %v1327, %v3742
        %v3744 = vlaneseq
        %v3745 = vshrl.u32 %v3744, 7
        %v3746 = vsub.s32 %v2292, %v3745
        %v3747 = vrot.slane %v1329, %v3746
        %v3748 = vsel %vm2297, %v3747, %v3743
        %v3749 = vlaneseq
        %v3750 = vshrl.u32 %v3749, 7
        %v3751 = vsub.s32 %v2299, %v3750
        %v3752 = vrot.slane %v1331, %v3751
        %v3753 = vsel %vm2304, %v3752, %v3748
        %v3754 = vlaneseq
        %v3755 = vshrl.u32 %v3754, 7
        %v3756 = vsub.s32 %v2306, %v3755
        %v3757 = vrot.slane %v1333, %v3756
        %v3758 = vsel %vm2311, %v3757, %v3753
        %v3759 = vlaneseq
        %v3760 = vshrl.u32 %v3759, 7
        %v3761 = vsub.s32 %v2313, %v3760
        %v3762 = vrot.slane %v1335, %v3761
        %v3763 = vsel %vm2318, %v3762, %v3758
        %v3764 = vlaneseq
        %v3765 = vshrl.u32 %v3764, 7
        %v3766 = vsub.s32 %v2320, %v3765
        %v3767 = vrot.slane %v1337, %v3766
        %v3768 = vsel %vm2325, %v3767, %v3763
        %v3769 = vlaneseq
        %v3770 = vshrl.u32 %v3769, 7
        %v3771 = vsub.s32 %v2327, %v3770
        %v3772 = vrot.slane %v1339, %v3771
        %v3773 = vsel %vm2332, %v3772, %v3768
        %v3774 = vlaneseq
        %v3775 = vshrl.u32 %v3774, 7
        %v3776 = vsub.s32 %v2334, %v3775
        %v3777 = vrot.slane %v1341, %v3776
        %v3778 = vsel %vm2339, %v3777, %v3773
        %v3779 = vlaneseq
        %v3780 = vshrl.u32 %v3779, 7
        %v3781 = vsub.s32 %v2341, %v3780
        %v3782 = vrot.slane %v1343, %v3781
        %v3783 = vsel %vm2346, %v3782, %v3778
        %v3784 = vlaneseq
        %v3785 = vshrl.u32 %v3784, 7
        %v3786 = vsub.s32 %v2348, %v3785
        %v3787 = vrot.slane %v1345, %v3786
        %v3788 = vsel %vm2353, %v3787, %v3783
        %v3789 = vlaneseq
        %v3790 = vshrl.u32 %v3789, 7
        %v3791 = vsub.s32 %v2355, %v3790
        %v3792 = vrot.slane %v1347, %v3791
        %v3793 = vsel %vm2360, %v3792, %v3788
        %v3794 = vlaneseq
        %v3795 = vshrl.u32 %v3794, 7
        %v3796 = vsub.s32 %v2362, %v3795
        %v3797 = vrot.slane %v1349, %v3796
        %v3798 = vsel %vm2367, %v3797, %v3793
        %v3799 = vlaneseq
        %v3800 = vshrl.u32 %v3799, 7
        %v3801 = vsub.s32 %v2369, %v3800
        %v3802 = vrot.slane %v1351, %v3801
        %v3803 = vsel %vm2374, %v3802, %v3798
        %v3804 = vlaneseq
        %v3805 = vshrl.u32 %v3804, 7
        %v3806 = vsub.s32 %v2376, %v3805
        %v3807 = vrot.slane %v1353, %v3806
        %v3808 = vsel %vm2381, %v3807, %v3803
        %v3809 = vlaneseq
        %v3810 = vshrl.u32 %v3809, 7
        %v3811 = vsub.s32 %v2383, %v3810
        %v3812 = vrot.slane %v1355, %v3811
        %v3813 = vsel %vm2388, %v3812, %v3808
        %v3814 = vlaneseq
        %v3815 = vshrl.u32 %v3814, 7
        %v3816 = vsub.s32 %v2390, %v3815
        %v3817 = vrot.slane %v1357, %v3816
        %v3818 = vsel %vm2395, %v3817, %v3813
        %v3819 = vlaneseq
        %v3820 = vshrl.u32 %v3819, 7
        %v3821 = vsub.s32 %v2287, %v3820
        %v3822 = vrot.slane %v1359, %v3821
        %v3823 = vlaneseq
        %v3824 = vshrl.u32 %v3823, 7
        %v3825 = vsub.s32 %v2292, %v3824
        %v3826 = vrot.slane %v1361, %v3825
        %v3827 = vsel %vm2297, %v3826, %v3822
        %v3828 = vlaneseq
        %v3829 = vshrl.u32 %v3828, 7
        %v3830 = vsub.s32 %v2299, %v3829
        %v3831 = vrot.slane %v1363, %v3830
        %v3832 = vsel %vm2304, %v3831, %v3827
        %v3833 = vlaneseq
        %v3834 = vshrl.u32 %v3833, 7
        %v3835 = vsub.s32 %v2306, %v3834
        %v3836 = vrot.slane %v1365, %v3835
        %v3837 = vsel %vm2311, %v3836, %v3832
        %v3838 = vlaneseq
        %v3839 = vshrl.u32 %v3838, 7
        %v3840 = vsub.s32 %v2313, %v3839
        %v3841 = vrot.slane %v1367, %v3840
        %v3842 = vsel %vm2318, %v3841, %v3837
        %v3843 = vlaneseq
        %v3844 = vshrl.u32 %v3843, 7
        %v3845 = vsub.s32 %v2320, %v3844
        %v3846 = vrot.slane %v1369, %v3845
        %v3847 = vsel %vm2325, %v3846, %v3842
        %v3848 = vlaneseq
        %v3849 = vshrl.u32 %v3848, 7
        %v3850 = vsub.s32 %v2327, %v3849
        %v3851 = vrot.slane %v1371, %v3850
        %v3852 = vsel %vm2332, %v3851, %v3847
        %v3853 = vlaneseq
        %v3854 = vshrl.u32 %v3853, 7
        %v3855 = vsub.s32 %v2334, %v3854
        %v3856 = vrot.slane %v1373, %v3855
        %v3857 = vsel %vm2339, %v3856, %v3852
        %v3858 = vlaneseq
        %v3859 = vshrl.u32 %v3858, 7
        %v3860 = vsub.s32 %v2341, %v3859
        %v3861 = vrot.slane %v1375, %v3860
        %v3862 = vsel %vm2346, %v3861, %v3857
        %v3863 = vlaneseq
        %v3864 = vshrl.u32 %v3863, 7
        %v3865 = vsub.s32 %v2348, %v3864
        %v3866 = vrot.slane %v1377, %v3865
        %v3867 = vsel %vm2353, %v3866, %v3862
        %v3868 = vlaneseq
        %v3869 = vshrl.u32 %v3868, 7
        %v3870 = vsub.s32 %v2355, %v3869
        %v3871 = vrot.slane %v1379, %v3870
        %v3872 = vsel %vm2360, %v3871, %v3867
        %v3873 = vlaneseq
        %v3874 = vshrl.u32 %v3873, 7
        %v3875 = vsub.s32 %v2362, %v3874
        %v3876 = vrot.slane %v1381, %v3875
        %v3877 = vsel %vm2367, %v3876, %v3872
        %v3878 = vlaneseq
        %v3879 = vshrl.u32 %v3878, 7
        %v3880 = vsub.s32 %v2369, %v3879
        %v3881 = vrot.slane %v1383, %v3880
        %v3882 = vsel %vm2374, %v3881, %v3877
        %v3883 = vlaneseq
        %v3884 = vshrl.u32 %v3883, 7
        %v3885 = vsub.s32 %v2376, %v3884
        %v3886 = vrot.slane %v1385, %v3885
        %v3887 = vsel %vm2381, %v3886, %v3882
        %v3888 = vlaneseq
        %v3889 = vshrl.u32 %v3888, 7
        %v3890 = vsub.s32 %v2383, %v3889
        %v3891 = vrot.slane %v1387, %v3890
        %v3892 = vsel %vm2388, %v3891, %v3887
        %v3893 = vlaneseq
        %v3894 = vshrl.u32 %v3893, 7
        %v3895 = vsub.s32 %v2390, %v3894
        %v3896 = vrot.slane %v1389, %v3895
        %v3897 = vsel %vm2395, %v3896, %v3892
        %v3898 = vlaneseq
        %v3899 = vshrl.u32 %v3898, 7
        %v3900 = vsub.s32 %v2287, %v3899
        %v3901 = vrot.slane %v1391, %v3900
        %v3902 = vlaneseq
        %v3903 = vshrl.u32 %v3902, 7
        %v3904 = vsub.s32 %v2292, %v3903
        %v3905 = vrot.slane %v1393, %v3904
        %v3906 = vsel %vm2297, %v3905, %v3901
        %v3907 = vlaneseq
        %v3908 = vshrl.u32 %v3907, 7
        %v3909 = vsub.s32 %v2299, %v3908
        %v3910 = vrot.slane %v1395, %v3909
        %v3911 = vsel %vm2304, %v3910, %v3906
        %v3912 = vlaneseq
        %v3913 = vshrl.u32 %v3912, 7
        %v3914 = vsub.s32 %v2306, %v3913
        %v3915 = vrot.slane %v1397, %v3914
        %v3916 = vsel %vm2311, %v3915, %v3911
        %v3917 = vlaneseq
        %v3918 = vshrl.u32 %v3917, 7
        %v3919 = vsub.s32 %v2313, %v3918
        %v3920 = vrot.slane %v1399, %v3919
        %v3921 = vsel %vm2318, %v3920, %v3916
        %v3922 = vlaneseq
        %v3923 = vshrl.u32 %v3922, 7
        %v3924 = vsub.s32 %v2320, %v3923
        %v3925 = vrot.slane %v1401, %v3924
        %v3926 = vsel %vm2325, %v3925, %v3921
        %v3927 = vlaneseq
        %v3928 = vshrl.u32 %v3927, 7
        %v3929 = vsub.s32 %v2327, %v3928
        %v3930 = vrot.slane %v1403, %v3929
        %v3931 = vsel %vm2332, %v3930, %v3926
        %v3932 = vlaneseq
        %v3933 = vshrl.u32 %v3932, 7
        %v3934 = vsub.s32 %v2334, %v3933
        %v3935 = vrot.slane %v1405, %v3934
        %v3936 = vsel %vm2339, %v3935, %v3931
        %v3937 = vlaneseq
        %v3938 = vshrl.u32 %v3937, 7
        %v3939 = vsub.s32 %v2341, %v3938
        %v3940 = vrot.slane %v1407, %v3939
        %v3941 = vsel %vm2346, %v3940, %v3936
        %v3942 = vlaneseq
        %v3943 = vshrl.u32 %v3942, 7
        %v3944 = vsub.s32 %v2348, %v3943
        %v3945 = vrot.slane %v1409, %v3944
        %v3946 = vsel %vm2353, %v3945, %v3941
        %v3947 = vlaneseq
        %v3948 = vshrl.u32 %v3947, 7
        %v3949 = vsub.s32 %v2355, %v3948
        %v3950 = vrot.slane %v1411, %v3949
        %v3951 = vsel %vm2360, %v3950, %v3946
        %v3952 = vlaneseq
        %v3953 = vshrl.u32 %v3952, 7
        %v3954 = vsub.s32 %v2362, %v3953
        %v3955 = vrot.slane %v1413, %v3954
        %v3956 = vsel %vm2367, %v3955, %v3951
        %v3957 = vlaneseq
        %v3958 = vshrl.u32 %v3957, 7
        %v3959 = vsub.s32 %v2369, %v3958
        %v3960 = vrot.slane %v1415, %v3959
        %v3961 = vsel %vm2374, %v3960, %v3956
        %v3962 = vlaneseq
        %v3963 = vshrl.u32 %v3962, 7
        %v3964 = vsub.s32 %v2376, %v3963
        %v3965 = vrot.slane %v1417, %v3964
        %v3966 = vsel %vm2381, %v3965, %v3961
        %v3967 = vlaneseq
        %v3968 = vshrl.u32 %v3967, 7
        %v3969 = vsub.s32 %v2383, %v3968
        %v3970 = vrot.slane %v1419, %v3969
        %v3971 = vsel %vm2388, %v3970, %v3966
        %v3972 = vlaneseq
        %v3973 = vshrl.u32 %v3972, 7
        %v3974 = vsub.s32 %v2390, %v3973
        %v3975 = vrot.slane %v1421, %v3974
        %v3976 = vsel %vm2395, %v3975, %v3971
        %v3977 = vlaneseq
        %v3978 = vshrl.u32 %v3977, 7
        %v3979 = vsub.s32 %v2287, %v3978
        %v3980 = vrot.slane %v1423, %v3979
        %v3981 = vlaneseq
        %v3982 = vshrl.u32 %v3981, 7
        %v3983 = vsub.s32 %v2292, %v3982
        %v3984 = vrot.slane %v1425, %v3983
        %v3985 = vsel %vm2297, %v3984, %v3980
        %v3986 = vlaneseq
        %v3987 = vshrl.u32 %v3986, 7
        %v3988 = vsub.s32 %v2299, %v3987
        %v3989 = vrot.slane %v1427, %v3988
        %v3990 = vsel %vm2304, %v3989, %v3985
        %v3991 = vlaneseq
        %v3992 = vshrl.u32 %v3991, 7
        %v3993 = vsub.s32 %v2306, %v3992
        %v3994 = vrot.slane %v1429, %v3993
        %v3995 = vsel %vm2311, %v3994, %v3990
        %v3996 = vlaneseq
        %v3997 = vshrl.u32 %v3996, 7
        %v3998 = vsub.s32 %v2313, %v3997
        %v3999 = vrot.slane %v1431, %v3998
        %v4000 = vsel %vm2318, %v3999, %v3995
        %v4001 = vlaneseq
        %v4002 = vshrl.u32 %v4001, 7
        %v4003 = vsub.s32 %v2320, %v4002
        %v4004 = vrot.slane %v1433, %v4003
        %v4005 = vsel %vm2325, %v4004, %v4000
        %v4006 = vlaneseq
        %v4007 = vshrl.u32 %v4006, 7
        %v4008 = vsub.s32 %v2327, %v4007
        %v4009 = vrot.slane %v1435, %v4008
        %v4010 = vsel %vm2332, %v4009, %v4005
        %v4011 = vlaneseq
        %v4012 = vshrl.u32 %v4011, 7
        %v4013 = vsub.s32 %v2334, %v4012
        %v4014 = vrot.slane %v1437, %v4013
        %v4015 = vsel %vm2339, %v4014, %v4010
        %v4016 = vlaneseq
        %v4017 = vshrl.u32 %v4016, 7
        %v4018 = vsub.s32 %v2341, %v4017
        %v4019 = vrot.slane %v1439, %v4018
        %v4020 = vsel %vm2346, %v4019, %v4015
        %v4021 = vlaneseq
        %v4022 = vshrl.u32 %v4021, 7
        %v4023 = vsub.s32 %v2348, %v4022
        %v4024 = vrot.slane %v1441, %v4023
        %v4025 = vsel %vm2353, %v4024, %v4020
        %v4026 = vlaneseq
        %v4027 = vshrl.u32 %v4026, 7
        %v4028 = vsub.s32 %v2355, %v4027
        %v4029 = vrot.slane %v1443, %v4028
        %v4030 = vsel %vm2360, %v4029, %v4025
        %v4031 = vlaneseq
        %v4032 = vshrl.u32 %v4031, 7
        %v4033 = vsub.s32 %v2362, %v4032
        %v4034 = vrot.slane %v1445, %v4033
        %v4035 = vsel %vm2367, %v4034, %v4030
        %v4036 = vlaneseq
        %v4037 = vshrl.u32 %v4036, 7
        %v4038 = vsub.s32 %v2369, %v4037
        %v4039 = vrot.slane %v1447, %v4038
        %v4040 = vsel %vm2374, %v4039, %v4035
        %v4041 = vlaneseq
        %v4042 = vshrl.u32 %v4041, 7
        %v4043 = vsub.s32 %v2376, %v4042
        %v4044 = vrot.slane %v1449, %v4043
        %v4045 = vsel %vm2381, %v4044, %v4040
        %v4046 = vlaneseq
        %v4047 = vshrl.u32 %v4046, 7
        %v4048 = vsub.s32 %v2383, %v4047
        %v4049 = vrot.slane %v1451, %v4048
        %v4050 = vsel %vm2388, %v4049, %v4045
        %v4051 = vlaneseq
        %v4052 = vshrl.u32 %v4051, 7
        %v4053 = vsub.s32 %v2390, %v4052
        %v4054 = vrot.slane %v1453, %v4053
        %v4055 = vsel %vm2395, %v4054, %v4050
        %v4056 = vlaneseq
        %v4057 = vshrl.u32 %v4056, 7
        %v4058 = vsub.s32 %v2287, %v4057
        %v4059 = vrot.slane %v1455, %v4058
        %v4060 = vlaneseq
        %v4061 = vshrl.u32 %v4060, 7
        %v4062 = vsub.s32 %v2292, %v4061
        %v4063 = vrot.slane %v1457, %v4062
        %v4064 = vsel %vm2297, %v4063, %v4059
        %v4065 = vlaneseq
        %v4066 = vshrl.u32 %v4065, 7
        %v4067 = vsub.s32 %v2299, %v4066
        %v4068 = vrot.slane %v1459, %v4067
        %v4069 = vsel %vm2304, %v4068, %v4064
        %v4070 = vlaneseq
        %v4071 = vshrl.u32 %v4070, 7
        %v4072 = vsub.s32 %v2306, %v4071
        %v4073 = vrot.slane %v1461, %v4072
        %v4074 = vsel %vm2311, %v4073, %v4069
        %v4075 = vlaneseq
        %v4076 = vshrl.u32 %v4075, 7
        %v4077 = vsub.s32 %v2313, %v4076
        %v4078 = vrot.slane %v1463, %v4077
        %v4079 = vsel %vm2318, %v4078, %v4074
        %v4080 = vlaneseq
        %v4081 = vshrl.u32 %v4080, 7
        %v4082 = vsub.s32 %v2320, %v4081
        %v4083 = vrot.slane %v1465, %v4082
        %v4084 = vsel %vm2325, %v4083, %v4079
        %v4085 = vlaneseq
        %v4086 = vshrl.u32 %v4085, 7
        %v4087 = vsub.s32 %v2327, %v4086
        %v4088 = vrot.slane %v1467, %v4087
        %v4089 = vsel %vm2332, %v4088, %v4084
        %v4090 = vlaneseq
        %v4091 = vshrl.u32 %v4090, 7
        %v4092 = vsub.s32 %v2334, %v4091
        %v4093 = vrot.slane %v1469, %v4092
        %v4094 = vsel %vm2339, %v4093, %v4089
        %v4095 = vlaneseq
        %v4096 = vshrl.u32 %v4095, 7
        %v4097 = vsub.s32 %v2341, %v4096
        %v4098 = vrot.slane %v1471, %v4097
        %v4099 = vsel %vm2346, %v4098, %v4094
        %v4100 = vlaneseq
        %v4101 = vshrl.u32 %v4100, 7
        %v4102 = vsub.s32 %v2348, %v4101
        %v4103 = vrot.slane %v1473, %v4102
        %v4104 = vsel %vm2353, %v4103, %v4099
        %v4105 = vlaneseq
        %v4106 = vshrl.u32 %v4105, 7
        %v4107 = vsub.s32 %v2355, %v4106
        %v4108 = vrot.slane %v1475, %v4107
        %v4109 = vsel %vm2360, %v4108, %v4104
        %v4110 = vlaneseq
        %v4111 = vshrl.u32 %v4110, 7
        %v4112 = vsub.s32 %v2362, %v4111
        %v4113 = vrot.slane %v1477, %v4112
        %v4114 = vsel %vm2367, %v4113, %v4109
        %v4115 = vlaneseq
        %v4116 = vshrl.u32 %v4115, 7
        %v4117 = vsub.s32 %v2369, %v4116
        %v4118 = vrot.slane %v1479, %v4117
        %v4119 = vsel %vm2374, %v4118, %v4114
        %v4120 = vlaneseq
        %v4121 = vshrl.u32 %v4120, 7
        %v4122 = vsub.s32 %v2376, %v4121
        %v4123 = vrot.slane %v1481, %v4122
        %v4124 = vsel %vm2381, %v4123, %v4119
        %v4125 = vlaneseq
        %v4126 = vshrl.u32 %v4125, 7
        %v4127 = vsub.s32 %v2383, %v4126
        %v4128 = vrot.slane %v1483, %v4127
        %v4129 = vsel %vm2388, %v4128, %v4124
        %v4130 = vlaneseq
        %v4131 = vshrl.u32 %v4130, 7
        %v4132 = vsub.s32 %v2390, %v4131
        %v4133 = vrot.slane %v1485, %v4132
        %v4134 = vsel %vm2395, %v4133, %v4129
        %v4135 = vlaneseq
        %v4136 = vshrl.u32 %v4135, 7
        %v4137 = vsub.s32 %v2287, %v4136
        %v4138 = vrot.slane %v1487, %v4137
        %v4139 = vlaneseq
        %v4140 = vshrl.u32 %v4139, 7
        %v4141 = vsub.s32 %v2292, %v4140
        %v4142 = vrot.slane %v1489, %v4141
        %v4143 = vsel %vm2297, %v4142, %v4138
        %v4144 = vlaneseq
        %v4145 = vshrl.u32 %v4144, 7
        %v4146 = vsub.s32 %v2299, %v4145
        %v4147 = vrot.slane %v1491, %v4146
        %v4148 = vsel %vm2304, %v4147, %v4143
        %v4149 = vlaneseq
        %v4150 = vshrl.u32 %v4149, 7
        %v4151 = vsub.s32 %v2306, %v4150
        %v4152 = vrot.slane %v1493, %v4151
        %v4153 = vsel %vm2311, %v4152, %v4148
        %v4154 = vlaneseq
        %v4155 = vshrl.u32 %v4154, 7
        %v4156 = vsub.s32 %v2313, %v4155
        %v4157 = vrot.slane %v1495, %v4156
        %v4158 = vsel %vm2318, %v4157, %v4153
        %v4159 = vlaneseq
        %v4160 = vshrl.u32 %v4159, 7
        %v4161 = vsub.s32 %v2320, %v4160
        %v4162 = vrot.slane %v1497, %v4161
        %v4163 = vsel %vm2325, %v4162, %v4158
        %v4164 = vlaneseq
        %v4165 = vshrl.u32 %v4164, 7
        %v4166 = vsub.s32 %v2327, %v4165
        %v4167 = vrot.slane %v1499, %v4166
        %v4168 = vsel %vm2332, %v4167, %v4163
        %v4169 = vlaneseq
        %v4170 = vshrl.u32 %v4169, 7
        %v4171 = vsub.s32 %v2334, %v4170
        %v4172 = vrot.slane %v1501, %v4171
        %v4173 = vsel %vm2339, %v4172, %v4168
        %v4174 = vlaneseq
        %v4175 = vshrl.u32 %v4174, 7
        %v4176 = vsub.s32 %v2341, %v4175
        %v4177 = vrot.slane %v1503, %v4176
        %v4178 = vsel %vm2346, %v4177, %v4173
        %v4179 = vlaneseq
        %v4180 = vshrl.u32 %v4179, 7
        %v4181 = vsub.s32 %v2348, %v4180
        %v4182 = vrot.slane %v1505, %v4181
        %v4183 = vsel %vm2353, %v4182, %v4178
        %v4184 = vlaneseq
        %v4185 = vshrl.u32 %v4184, 7
        %v4186 = vsub.s32 %v2355, %v4185
        %v4187 = vrot.slane %v1507, %v4186
        %v4188 = vsel %vm2360, %v4187, %v4183
        %v4189 = vlaneseq
        %v4190 = vshrl.u32 %v4189, 7
        %v4191 = vsub.s32 %v2362, %v4190
        %v4192 = vrot.slane %v1509, %v4191
        %v4193 = vsel %vm2367, %v4192, %v4188
        %v4194 = vlaneseq
        %v4195 = vshrl.u32 %v4194, 7
        %v4196 = vsub.s32 %v2369, %v4195
        %v4197 = vrot.slane %v1511, %v4196
        %v4198 = vsel %vm2374, %v4197, %v4193
        %v4199 = vlaneseq
        %v4200 = vshrl.u32 %v4199, 7
        %v4201 = vsub.s32 %v2376, %v4200
        %v4202 = vrot.slane %v1513, %v4201
        %v4203 = vsel %vm2381, %v4202, %v4198
        %v4204 = vlaneseq
        %v4205 = vshrl.u32 %v4204, 7
        %v4206 = vsub.s32 %v2383, %v4205
        %v4207 = vrot.slane %v1515, %v4206
        %v4208 = vsel %vm2388, %v4207, %v4203
        %v4209 = vlaneseq
        %v4210 = vshrl.u32 %v4209, 7
        %v4211 = vsub.s32 %v2390, %v4210
        %v4212 = vrot.slane %v1517, %v4211
        %v4213 = vsel %vm2395, %v4212, %v4208
        %v4214 = vlaneseq
        %v4215 = vshrl.u32 %v4214, 7
        %v4216 = vsub.s32 %v2287, %v4215
        %v4217 = vrot.slane %v1519, %v4216
        %v4218 = vlaneseq
        %v4219 = vshrl.u32 %v4218, 7
        %v4220 = vsub.s32 %v2292, %v4219
        %v4221 = vrot.slane %v1521, %v4220
        %v4222 = vsel %vm2297, %v4221, %v4217
        %v4223 = vlaneseq
        %v4224 = vshrl.u32 %v4223, 7
        %v4225 = vsub.s32 %v2299, %v4224
        %v4226 = vrot.slane %v1523, %v4225
        %v4227 = vsel %vm2304, %v4226, %v4222
        %v4228 = vlaneseq
        %v4229 = vshrl.u32 %v4228, 7
        %v4230 = vsub.s32 %v2306, %v4229
        %v4231 = vrot.slane %v1525, %v4230
        %v4232 = vsel %vm2311, %v4231, %v4227
        %v4233 = vlaneseq
        %v4234 = vshrl.u32 %v4233, 7
        %v4235 = vsub.s32 %v2313, %v4234
        %v4236 = vrot.slane %v1527, %v4235
        %v4237 = vsel %vm2318, %v4236, %v4232
        %v4238 = vlaneseq
        %v4239 = vshrl.u32 %v4238, 7
        %v4240 = vsub.s32 %v2320, %v4239
        %v4241 = vrot.slane %v1529, %v4240
        %v4242 = vsel %vm2325, %v4241, %v4237
        %v4243 = vlaneseq
        %v4244 = vshrl.u32 %v4243, 7
        %v4245 = vsub.s32 %v2327, %v4244
        %v4246 = vrot.slane %v1531, %v4245
        %v4247 = vsel %vm2332, %v4246, %v4242
        %v4248 = vlaneseq
        %v4249 = vshrl.u32 %v4248, 7
        %v4250 = vsub.s32 %v2334, %v4249
        %v4251 = vrot.slane %v1533, %v4250
        %v4252 = vsel %vm2339, %v4251, %v4247
        %v4253 = vlaneseq
        %v4254 = vshrl.u32 %v4253, 7
        %v4255 = vsub.s32 %v2341, %v4254
        %v4256 = vrot.slane %v1535, %v4255
        %v4257 = vsel %vm2346, %v4256, %v4252
        %v4258 = vlaneseq
        %v4259 = vshrl.u32 %v4258, 7
        %v4260 = vsub.s32 %v2348, %v4259
        %v4261 = vrot.slane %v1537, %v4260
        %v4262 = vsel %vm2353, %v4261, %v4257
        %v4263 = vlaneseq
        %v4264 = vshrl.u32 %v4263, 7
        %v4265 = vsub.s32 %v2355, %v4264
        %v4266 = vrot.slane %v1539, %v4265
        %v4267 = vsel %vm2360, %v4266, %v4262
        %v4268 = vlaneseq
        %v4269 = vshrl.u32 %v4268, 7
        %v4270 = vsub.s32 %v2362, %v4269
        %v4271 = vrot.slane %v1541, %v4270
        %v4272 = vsel %vm2367, %v4271, %v4267
        %v4273 = vlaneseq
        %v4274 = vshrl.u32 %v4273, 7
        %v4275 = vsub.s32 %v2369, %v4274
        %v4276 = vrot.slane %v1543, %v4275
        %v4277 = vsel %vm2374, %v4276, %v4272
        %v4278 = vlaneseq
        %v4279 = vshrl.u32 %v4278, 7
        %v4280 = vsub.s32 %v2376, %v4279
        %v4281 = vrot.slane %v1545, %v4280
        %v4282 = vsel %vm2381, %v4281, %v4277
        %v4283 = vlaneseq
        %v4284 = vshrl.u32 %v4283, 7
        %v4285 = vsub.s32 %v2383, %v4284
        %v4286 = vrot.slane %v1547, %v4285
        %v4287 = vsel %vm2388, %v4286, %v4282
        %v4288 = vlaneseq
        %v4289 = vshrl.u32 %v4288, 7
        %v4290 = vsub.s32 %v2390, %v4289
        %v4291 = vrot.slane %v1549, %v4290
        %v4292 = vsel %vm2395, %v4291, %v4287
        %v4293 = vlaneseq
        %v4294 = vshrl.u32 %v4293, 7
        %v4295 = vsub.s32 %v2287, %v4294
        %v4296 = vrot.slane %v1551, %v4295
        %v4297 = vlaneseq
        %v4298 = vshrl.u32 %v4297, 7
        %v4299 = vsub.s32 %v2292, %v4298
        %v4300 = vrot.slane %v1553, %v4299
        %v4301 = vsel %vm2297, %v4300, %v4296
        %v4302 = vlaneseq
        %v4303 = vshrl.u32 %v4302, 7
        %v4304 = vsub.s32 %v2299, %v4303
        %v4305 = vrot.slane %v1555, %v4304
        %v4306 = vsel %vm2304, %v4305, %v4301
        %v4307 = vlaneseq
        %v4308 = vshrl.u32 %v4307, 7
        %v4309 = vsub.s32 %v2306, %v4308
        %v4310 = vrot.slane %v1557, %v4309
        %v4311 = vsel %vm2311, %v4310, %v4306
        %v4312 = vlaneseq
        %v4313 = vshrl.u32 %v4312, 7
        %v4314 = vsub.s32 %v2313, %v4313
        %v4315 = vrot.slane %v1559, %v4314
        %v4316 = vsel %vm2318, %v4315, %v4311
        %v4317 = vlaneseq
        %v4318 = vshrl.u32 %v4317, 7
        %v4319 = vsub.s32 %v2320, %v4318
        %v4320 = vrot.slane %v1561, %v4319
        %v4321 = vsel %vm2325, %v4320, %v4316
        %v4322 = vlaneseq
        %v4323 = vshrl.u32 %v4322, 7
        %v4324 = vsub.s32 %v2327, %v4323
        %v4325 = vrot.slane %v1563, %v4324
        %v4326 = vsel %vm2332, %v4325, %v4321
        %v4327 = vlaneseq
        %v4328 = vshrl.u32 %v4327, 7
        %v4329 = vsub.s32 %v2334, %v4328
        %v4330 = vrot.slane %v1565, %v4329
        %v4331 = vsel %vm2339, %v4330, %v4326
        %v4332 = vlaneseq
        %v4333 = vshrl.u32 %v4332, 7
        %v4334 = vsub.s32 %v2341, %v4333
        %v4335 = vrot.slane %v1567, %v4334
        %v4336 = vsel %vm2346, %v4335, %v4331
        %v4337 = vlaneseq
        %v4338 = vshrl.u32 %v4337, 7
        %v4339 = vsub.s32 %v2348, %v4338
        %v4340 = vrot.slane %v1569, %v4339
        %v4341 = vsel %vm2353, %v4340, %v4336
        %v4342 = vlaneseq
        %v4343 = vshrl.u32 %v4342, 7
        %v4344 = vsub.s32 %v2355, %v4343
        %v4345 = vrot.slane %v1571, %v4344
        %v4346 = vsel %vm2360, %v4345, %v4341
        %v4347 = vlaneseq
        %v4348 = vshrl.u32 %v4347, 7
        %v4349 = vsub.s32 %v2362, %v4348
        %v4350 = vrot.slane %v1573, %v4349
        %v4351 = vsel %vm2367, %v4350, %v4346
        %v4352 = vlaneseq
        %v4353 = vshrl.u32 %v4352, 7
        %v4354 = vsub.s32 %v2369, %v4353
        %v4355 = vrot.slane %v1575, %v4354
        %v4356 = vsel %vm2374, %v4355, %v4351
        %v4357 = vlaneseq
        %v4358 = vshrl.u32 %v4357, 7
        %v4359 = vsub.s32 %v2376, %v4358
        %v4360 = vrot.slane %v1577, %v4359
        %v4361 = vsel %vm2381, %v4360, %v4356
        %v4362 = vlaneseq
        %v4363 = vshrl.u32 %v4362, 7
        %v4364 = vsub.s32 %v2383, %v4363
        %v4365 = vrot.slane %v1579, %v4364
        %v4366 = vsel %vm2388, %v4365, %v4361
        %v4367 = vlaneseq
        %v4368 = vshrl.u32 %v4367, 7
        %v4369 = vsub.s32 %v2390, %v4368
        %v4370 = vrot.slane %v1581, %v4369
        %v4371 = vsel %vm2395, %v4370, %v4366
        %v4372 = vlaneseq
        %v4373 = vshrl.u32 %v4372, 7
        %v4374 = vsub.s32 %v2287, %v4373
        %v4375 = vrot.slane %v1583, %v4374
        %v4376 = vlaneseq
        %v4377 = vshrl.u32 %v4376, 7
        %v4378 = vsub.s32 %v2292, %v4377
        %v4379 = vrot.slane %v1585, %v4378
        %v4380 = vsel %vm2297, %v4379, %v4375
        %v4381 = vlaneseq
        %v4382 = vshrl.u32 %v4381, 7
        %v4383 = vsub.s32 %v2299, %v4382
        %v4384 = vrot.slane %v1587, %v4383
        %v4385 = vsel %vm2304, %v4384, %v4380
        %v4386 = vlaneseq
        %v4387 = vshrl.u32 %v4386, 7
        %v4388 = vsub.s32 %v2306, %v4387
        %v4389 = vrot.slane %v1589, %v4388
        %v4390 = vsel %vm2311, %v4389, %v4385
        %v4391 = vlaneseq
        %v4392 = vshrl.u32 %v4391, 7
        %v4393 = vsub.s32 %v2313, %v4392
        %v4394 = vrot.slane %v1591, %v4393
        %v4395 = vsel %vm2318, %v4394, %v4390
        %v4396 = vlaneseq
        %v4397 = vshrl.u32 %v4396, 7
        %v4398 = vsub.s32 %v2320, %v4397
        %v4399 = vrot.slane %v1593, %v4398
        %v4400 = vsel %vm2325, %v4399, %v4395
        %v4401 = vlaneseq
        %v4402 = vshrl.u32 %v4401, 7
        %v4403 = vsub.s32 %v2327, %v4402
        %v4404 = vrot.slane %v1595, %v4403
        %v4405 = vsel %vm2332, %v4404, %v4400
        %v4406 = vlaneseq
        %v4407 = vshrl.u32 %v4406, 7
        %v4408 = vsub.s32 %v2334, %v4407
        %v4409 = vrot.slane %v1597, %v4408
        %v4410 = vsel %vm2339, %v4409, %v4405
        %v4411 = vlaneseq
        %v4412 = vshrl.u32 %v4411, 7
        %v4413 = vsub.s32 %v2341, %v4412
        %v4414 = vrot.slane %v1599, %v4413
        %v4415 = vsel %vm2346, %v4414, %v4410
        %v4416 = vlaneseq
        %v4417 = vshrl.u32 %v4416, 7
        %v4418 = vsub.s32 %v2348, %v4417
        %v4419 = vrot.slane %v1601, %v4418
        %v4420 = vsel %vm2353, %v4419, %v4415
        %v4421 = vlaneseq
        %v4422 = vshrl.u32 %v4421, 7
        %v4423 = vsub.s32 %v2355, %v4422
        %v4424 = vrot.slane %v1603, %v4423
        %v4425 = vsel %vm2360, %v4424, %v4420
        %v4426 = vlaneseq
        %v4427 = vshrl.u32 %v4426, 7
        %v4428 = vsub.s32 %v2362, %v4427
        %v4429 = vrot.slane %v1605, %v4428
        %v4430 = vsel %vm2367, %v4429, %v4425
        %v4431 = vlaneseq
        %v4432 = vshrl.u32 %v4431, 7
        %v4433 = vsub.s32 %v2369, %v4432
        %v4434 = vrot.slane %v1607, %v4433
        %v4435 = vsel %vm2374, %v4434, %v4430
        %v4436 = vlaneseq
        %v4437 = vshrl.u32 %v4436, 7
        %v4438 = vsub.s32 %v2376, %v4437
        %v4439 = vrot.slane %v1609, %v4438
        %v4440 = vsel %vm2381, %v4439, %v4435
        %v4441 = vlaneseq
        %v4442 = vshrl.u32 %v4441, 7
        %v4443 = vsub.s32 %v2383, %v4442
        %v4444 = vrot.slane %v1611, %v4443
        %v4445 = vsel %vm2388, %v4444, %v4440
        %v4446 = vlaneseq
        %v4447 = vshrl.u32 %v4446, 7
        %v4448 = vsub.s32 %v2390, %v4447
        %v4449 = vrot.slane %v1613, %v4448
        %v4450 = vsel %vm2395, %v4449, %v4445
        %v4451 = vlaneseq
        %v4452 = vshrl.u32 %v4451, 7
        %v4453 = vsub.s32 %v2287, %v4452
        %v4454 = vrot.slane %v1615, %v4453
        %v4455 = vlaneseq
        %v4456 = vshrl.u32 %v4455, 7
        %v4457 = vsub.s32 %v2292, %v4456
        %v4458 = vrot.slane %v1617, %v4457
        %v4459 = vsel %vm2297, %v4458, %v4454
        %v4460 = vlaneseq
        %v4461 = vshrl.u32 %v4460, 7
        %v4462 = vsub.s32 %v2299, %v4461
        %v4463 = vrot.slane %v1619, %v4462
        %v4464 = vsel %vm2304, %v4463, %v4459
        %v4465 = vlaneseq
        %v4466 = vshrl.u32 %v4465, 7
        %v4467 = vsub.s32 %v2306, %v4466
        %v4468 = vrot.slane %v1621, %v4467
        %v4469 = vsel %vm2311, %v4468, %v4464
        %v4470 = vlaneseq
        %v4471 = vshrl.u32 %v4470, 7
        %v4472 = vsub.s32 %v2313, %v4471
        %v4473 = vrot.slane %v1623, %v4472
        %v4474 = vsel %vm2318, %v4473, %v4469
        %v4475 = vlaneseq
        %v4476 = vshrl.u32 %v4475, 7
        %v4477 = vsub.s32 %v2320, %v4476
        %v4478 = vrot.slane %v1625, %v4477
        %v4479 = vsel %vm2325, %v4478, %v4474
        %v4480 = vlaneseq
        %v4481 = vshrl.u32 %v4480, 7
        %v4482 = vsub.s32 %v2327, %v4481
        %v4483 = vrot.slane %v1627, %v4482
        %v4484 = vsel %vm2332, %v4483, %v4479
        %v4485 = vlaneseq
        %v4486 = vshrl.u32 %v4485, 7
        %v4487 = vsub.s32 %v2334, %v4486
        %v4488 = vrot.slane %v1629, %v4487
        %v4489 = vsel %vm2339, %v4488, %v4484
        %v4490 = vlaneseq
        %v4491 = vshrl.u32 %v4490, 7
        %v4492 = vsub.s32 %v2341, %v4491
        %v4493 = vrot.slane %v1631, %v4492
        %v4494 = vsel %vm2346, %v4493, %v4489
        %v4495 = vlaneseq
        %v4496 = vshrl.u32 %v4495, 7
        %v4497 = vsub.s32 %v2348, %v4496
        %v4498 = vrot.slane %v1633, %v4497
        %v4499 = vsel %vm2353, %v4498, %v4494
        %v4500 = vlaneseq
        %v4501 = vshrl.u32 %v4500, 7
        %v4502 = vsub.s32 %v2355, %v4501
        %v4503 = vrot.slane %v1635, %v4502
        %v4504 = vsel %vm2360, %v4503, %v4499
        %v4505 = vlaneseq
        %v4506 = vshrl.u32 %v4505, 7
        %v4507 = vsub.s32 %v2362, %v4506
        %v4508 = vrot.slane %v1637, %v4507
        %v4509 = vsel %vm2367, %v4508, %v4504
        %v4510 = vlaneseq
        %v4511 = vshrl.u32 %v4510, 7
        %v4512 = vsub.s32 %v2369, %v4511
        %v4513 = vrot.slane %v1639, %v4512
        %v4514 = vsel %vm2374, %v4513, %v4509
        %v4515 = vlaneseq
        %v4516 = vshrl.u32 %v4515, 7
        %v4517 = vsub.s32 %v2376, %v4516
        %v4518 = vrot.slane %v1641, %v4517
        %v4519 = vsel %vm2381, %v4518, %v4514
        %v4520 = vlaneseq
        %v4521 = vshrl.u32 %v4520, 7
        %v4522 = vsub.s32 %v2383, %v4521
        %v4523 = vrot.slane %v1643, %v4522
        %v4524 = vsel %vm2388, %v4523, %v4519
        %v4525 = vlaneseq
        %v4526 = vshrl.u32 %v4525, 7
        %v4527 = vsub.s32 %v2390, %v4526
        %v4528 = vrot.slane %v1645, %v4527
        %v4529 = vsel %vm2395, %v4528, %v4524
        %v4530 = vlaneseq
        %v4531 = vshrl.u32 %v4530, 7
        %v4532 = vsub.s32 %v2287, %v4531
        %v4533 = vrot.slane %v1647, %v4532
        %v4534 = vlaneseq
        %v4535 = vshrl.u32 %v4534, 7
        %v4536 = vsub.s32 %v2292, %v4535
        %v4537 = vrot.slane %v1649, %v4536
        %v4538 = vsel %vm2297, %v4537, %v4533
        %v4539 = vlaneseq
        %v4540 = vshrl.u32 %v4539, 7
        %v4541 = vsub.s32 %v2299, %v4540
        %v4542 = vrot.slane %v1651, %v4541
        %v4543 = vsel %vm2304, %v4542, %v4538
        %v4544 = vlaneseq
        %v4545 = vshrl.u32 %v4544, 7
        %v4546 = vsub.s32 %v2306, %v4545
        %v4547 = vrot.slane %v1653, %v4546
        %v4548 = vsel %vm2311, %v4547, %v4543
        %v4549 = vlaneseq
        %v4550 = vshrl.u32 %v4549, 7
        %v4551 = vsub.s32 %v2313, %v4550
        %v4552 = vrot.slane %v1655, %v4551
        %v4553 = vsel %vm2318, %v4552, %v4548
        %v4554 = vlaneseq
        %v4555 = vshrl.u32 %v4554, 7
        %v4556 = vsub.s32 %v2320, %v4555
        %v4557 = vrot.slane %v1657, %v4556
        %v4558 = vsel %vm2325, %v4557, %v4553
        %v4559 = vlaneseq
        %v4560 = vshrl.u32 %v4559, 7
        %v4561 = vsub.s32 %v2327, %v4560
        %v4562 = vrot.slane %v1659, %v4561
        %v4563 = vsel %vm2332, %v4562, %v4558
        %v4564 = vlaneseq
        %v4565 = vshrl.u32 %v4564, 7
        %v4566 = vsub.s32 %v2334, %v4565
        %v4567 = vrot.slane %v1661, %v4566
        %v4568 = vsel %vm2339, %v4567, %v4563
        %v4569 = vlaneseq
        %v4570 = vshrl.u32 %v4569, 7
        %v4571 = vsub.s32 %v2341, %v4570
        %v4572 = vrot.slane %v1663, %v4571
        %v4573 = vsel %vm2346, %v4572, %v4568
        %v4574 = vlaneseq
        %v4575 = vshrl.u32 %v4574, 7
        %v4576 = vsub.s32 %v2348, %v4575
        %v4577 = vrot.slane %v1665, %v4576
        %v4578 = vsel %vm2353, %v4577, %v4573
        %v4579 = vlaneseq
        %v4580 = vshrl.u32 %v4579, 7
        %v4581 = vsub.s32 %v2355, %v4580
        %v4582 = vrot.slane %v1667, %v4581
        %v4583 = vsel %vm2360, %v4582, %v4578
        %v4584 = vlaneseq
        %v4585 = vshrl.u32 %v4584, 7
        %v4586 = vsub.s32 %v2362, %v4585
        %v4587 = vrot.slane %v1669, %v4586
        %v4588 = vsel %vm2367, %v4587, %v4583
        %v4589 = vlaneseq
        %v4590 = vshrl.u32 %v4589, 7
        %v4591 = vsub.s32 %v2369, %v4590
        %v4592 = vrot.slane %v1671, %v4591
        %v4593 = vsel %vm2374, %v4592, %v4588
        %v4594 = vlaneseq
        %v4595 = vshrl.u32 %v4594, 7
        %v4596 = vsub.s32 %v2376, %v4595
        %v4597 = vrot.slane %v1673, %v4596
        %v4598 = vsel %vm2381, %v4597, %v4593
        %v4599 = vlaneseq
        %v4600 = vshrl.u32 %v4599, 7
        %v4601 = vsub.s32 %v2383, %v4600
        %v4602 = vrot.slane %v1675, %v4601
        %v4603 = vsel %vm2388, %v4602, %v4598
        %v4604 = vlaneseq
        %v4605 = vshrl.u32 %v4604, 7
        %v4606 = vsub.s32 %v2390, %v4605
        %v4607 = vrot.slane %v1677, %v4606
        %v4608 = vsel %vm2395, %v4607, %v4603
        %v4609 = vlaneseq
        %v4610 = vshrl.u32 %v4609, 7
        %v4611 = vsub.s32 %v2287, %v4610
        %v4612 = vrot.slane %v1679, %v4611
        %v4613 = vlaneseq
        %v4614 = vshrl.u32 %v4613, 7
        %v4615 = vsub.s32 %v2292, %v4614
        %v4616 = vrot.slane %v1681, %v4615
        %v4617 = vsel %vm2297, %v4616, %v4612
        %v4618 = vlaneseq
        %v4619 = vshrl.u32 %v4618, 7
        %v4620 = vsub.s32 %v2299, %v4619
        %v4621 = vrot.slane %v1683, %v4620
        %v4622 = vsel %vm2304, %v4621, %v4617
        %v4623 = vlaneseq
        %v4624 = vshrl.u32 %v4623, 7
        %v4625 = vsub.s32 %v2306, %v4624
        %v4626 = vrot.slane %v1685, %v4625
        %v4627 = vsel %vm2311, %v4626, %v4622
        %v4628 = vlaneseq
        %v4629 = vshrl.u32 %v4628, 7
        %v4630 = vsub.s32 %v2313, %v4629
        %v4631 = vrot.slane %v1687, %v4630
        %v4632 = vsel %vm2318, %v4631, %v4627
        %v4633 = vlaneseq
        %v4634 = vshrl.u32 %v4633, 7
        %v4635 = vsub.s32 %v2320, %v4634
        %v4636 = vrot.slane %v1689, %v4635
        %v4637 = vsel %vm2325, %v4636, %v4632
        %v4638 = vlaneseq
        %v4639 = vshrl.u32 %v4638, 7
        %v4640 = vsub.s32 %v2327, %v4639
        %v4641 = vrot.slane %v1691, %v4640
        %v4642 = vsel %vm2332, %v4641, %v4637
        %v4643 = vlaneseq
        %v4644 = vshrl.u32 %v4643, 7
        %v4645 = vsub.s32 %v2334, %v4644
        %v4646 = vrot.slane %v1693, %v4645
        %v4647 = vsel %vm2339, %v4646, %v4642
        %v4648 = vlaneseq
        %v4649 = vshrl.u32 %v4648, 7
        %v4650 = vsub.s32 %v2341, %v4649
        %v4651 = vrot.slane %v1695, %v4650
        %v4652 = vsel %vm2346, %v4651, %v4647
        %v4653 = vlaneseq
        %v4654 = vshrl.u32 %v4653, 7
        %v4655 = vsub.s32 %v2348, %v4654
        %v4656 = vrot.slane %v1697, %v4655
        %v4657 = vsel %vm2353, %v4656, %v4652
        %v4658 = vlaneseq
        %v4659 = vshrl.u32 %v4658, 7
        %v4660 = vsub.s32 %v2355, %v4659
        %v4661 = vrot.slane %v1699, %v4660
        %v4662 = vsel %vm2360, %v4661, %v4657
        %v4663 = vlaneseq
        %v4664 = vshrl.u32 %v4663, 7
        %v4665 = vsub.s32 %v2362, %v4664
        %v4666 = vrot.slane %v1701, %v4665
        %v4667 = vsel %vm2367, %v4666, %v4662
        %v4668 = vlaneseq
        %v4669 = vshrl.u32 %v4668, 7
        %v4670 = vsub.s32 %v2369, %v4669
        %v4671 = vrot.slane %v1703, %v4670
        %v4672 = vsel %vm2374, %v4671, %v4667
        %v4673 = vlaneseq
        %v4674 = vshrl.u32 %v4673, 7
        %v4675 = vsub.s32 %v2376, %v4674
        %v4676 = vrot.slane %v1705, %v4675
        %v4677 = vsel %vm2381, %v4676, %v4672
        %v4678 = vlaneseq
        %v4679 = vshrl.u32 %v4678, 7
        %v4680 = vsub.s32 %v2383, %v4679
        %v4681 = vrot.slane %v1707, %v4680
        %v4682 = vsel %vm2388, %v4681, %v4677
        %v4683 = vlaneseq
        %v4684 = vshrl.u32 %v4683, 7
        %v4685 = vsub.s32 %v2390, %v4684
        %v4686 = vrot.slane %v1709, %v4685
        %v4687 = vsel %vm2395, %v4686, %v4682
        %v4688 = vlaneseq
        %v4689 = vshrl.u32 %v4688, 7
        %v4690 = vsub.s32 %v2287, %v4689
        %v4691 = vrot.slane %v1711, %v4690
        %v4692 = vlaneseq
        %v4693 = vshrl.u32 %v4692, 7
        %v4694 = vsub.s32 %v2292, %v4693
        %v4695 = vrot.slane %v1713, %v4694
        %v4696 = vsel %vm2297, %v4695, %v4691
        %v4697 = vlaneseq
        %v4698 = vshrl.u32 %v4697, 7
        %v4699 = vsub.s32 %v2299, %v4698
        %v4700 = vrot.slane %v1715, %v4699
        %v4701 = vsel %vm2304, %v4700, %v4696
        %v4702 = vlaneseq
        %v4703 = vshrl.u32 %v4702, 7
        %v4704 = vsub.s32 %v2306, %v4703
        %v4705 = vrot.slane %v1717, %v4704
        %v4706 = vsel %vm2311, %v4705, %v4701
        %v4707 = vlaneseq
        %v4708 = vshrl.u32 %v4707, 7
        %v4709 = vsub.s32 %v2313, %v4708
        %v4710 = vrot.slane %v1719, %v4709
        %v4711 = vsel %vm2318, %v4710, %v4706
        %v4712 = vlaneseq
        %v4713 = vshrl.u32 %v4712, 7
        %v4714 = vsub.s32 %v2320, %v4713
        %v4715 = vrot.slane %v1721, %v4714
        %v4716 = vsel %vm2325, %v4715, %v4711
        %v4717 = vlaneseq
        %v4718 = vshrl.u32 %v4717, 7
        %v4719 = vsub.s32 %v2327, %v4718
        %v4720 = vrot.slane %v1723, %v4719
        %v4721 = vsel %vm2332, %v4720, %v4716
        %v4722 = vlaneseq
        %v4723 = vshrl.u32 %v4722, 7
        %v4724 = vsub.s32 %v2334, %v4723
        %v4725 = vrot.slane %v1725, %v4724
        %v4726 = vsel %vm2339, %v4725, %v4721
        %v4727 = vlaneseq
        %v4728 = vshrl.u32 %v4727, 7
        %v4729 = vsub.s32 %v2341, %v4728
        %v4730 = vrot.slane %v1727, %v4729
        %v4731 = vsel %vm2346, %v4730, %v4726
        %v4732 = vlaneseq
        %v4733 = vshrl.u32 %v4732, 7
        %v4734 = vsub.s32 %v2348, %v4733
        %v4735 = vrot.slane %v1729, %v4734
        %v4736 = vsel %vm2353, %v4735, %v4731
        %v4737 = vlaneseq
        %v4738 = vshrl.u32 %v4737, 7
        %v4739 = vsub.s32 %v2355, %v4738
        %v4740 = vrot.slane %v1731, %v4739
        %v4741 = vsel %vm2360, %v4740, %v4736
        %v4742 = vlaneseq
        %v4743 = vshrl.u32 %v4742, 7
        %v4744 = vsub.s32 %v2362, %v4743
        %v4745 = vrot.slane %v1733, %v4744
        %v4746 = vsel %vm2367, %v4745, %v4741
        %v4747 = vlaneseq
        %v4748 = vshrl.u32 %v4747, 7
        %v4749 = vsub.s32 %v2369, %v4748
        %v4750 = vrot.slane %v1735, %v4749
        %v4751 = vsel %vm2374, %v4750, %v4746
        %v4752 = vlaneseq
        %v4753 = vshrl.u32 %v4752, 7
        %v4754 = vsub.s32 %v2376, %v4753
        %v4755 = vrot.slane %v1737, %v4754
        %v4756 = vsel %vm2381, %v4755, %v4751
        %v4757 = vlaneseq
        %v4758 = vshrl.u32 %v4757, 7
        %v4759 = vsub.s32 %v2383, %v4758
        %v4760 = vrot.slane %v1739, %v4759
        %v4761 = vsel %vm2388, %v4760, %v4756
        %v4762 = vlaneseq
        %v4763 = vshrl.u32 %v4762, 7
        %v4764 = vsub.s32 %v2390, %v4763
        %v4765 = vrot.slane %v1741, %v4764
        %v4766 = vsel %vm2395, %v4765, %v4761
        %v4767 = vlaneseq
        %v4768 = vshrl.u32 %v4767, 7
        %v4769 = vsub.s32 %v2287, %v4768
        %v4770 = vrot.slane %v1743, %v4769
        %v4771 = vlaneseq
        %v4772 = vshrl.u32 %v4771, 7
        %v4773 = vsub.s32 %v2292, %v4772
        %v4774 = vrot.slane %v1745, %v4773
        %v4775 = vsel %vm2297, %v4774, %v4770
        %v4776 = vlaneseq
        %v4777 = vshrl.u32 %v4776, 7
        %v4778 = vsub.s32 %v2299, %v4777
        %v4779 = vrot.slane %v1747, %v4778
        %v4780 = vsel %vm2304, %v4779, %v4775
        %v4781 = vlaneseq
        %v4782 = vshrl.u32 %v4781, 7
        %v4783 = vsub.s32 %v2306, %v4782
        %v4784 = vrot.slane %v1749, %v4783
        %v4785 = vsel %vm2311, %v4784, %v4780
        %v4786 = vlaneseq
        %v4787 = vshrl.u32 %v4786, 7
        %v4788 = vsub.s32 %v2313, %v4787
        %v4789 = vrot.slane %v1751, %v4788
        %v4790 = vsel %vm2318, %v4789, %v4785
        %v4791 = vlaneseq
        %v4792 = vshrl.u32 %v4791, 7
        %v4793 = vsub.s32 %v2320, %v4792
        %v4794 = vrot.slane %v1753, %v4793
        %v4795 = vsel %vm2325, %v4794, %v4790
        %v4796 = vlaneseq
        %v4797 = vshrl.u32 %v4796, 7
        %v4798 = vsub.s32 %v2327, %v4797
        %v4799 = vrot.slane %v1755, %v4798
        %v4800 = vsel %vm2332, %v4799, %v4795
        %v4801 = vlaneseq
        %v4802 = vshrl.u32 %v4801, 7
        %v4803 = vsub.s32 %v2334, %v4802
        %v4804 = vrot.slane %v1757, %v4803
        %v4805 = vsel %vm2339, %v4804, %v4800
        %v4806 = vlaneseq
        %v4807 = vshrl.u32 %v4806, 7
        %v4808 = vsub.s32 %v2341, %v4807
        %v4809 = vrot.slane %v1759, %v4808
        %v4810 = vsel %vm2346, %v4809, %v4805
        %v4811 = vlaneseq
        %v4812 = vshrl.u32 %v4811, 7
        %v4813 = vsub.s32 %v2348, %v4812
        %v4814 = vrot.slane %v1761, %v4813
        %v4815 = vsel %vm2353, %v4814, %v4810
        %v4816 = vlaneseq
        %v4817 = vshrl.u32 %v4816, 7
        %v4818 = vsub.s32 %v2355, %v4817
        %v4819 = vrot.slane %v1763, %v4818
        %v4820 = vsel %vm2360, %v4819, %v4815
        %v4821 = vlaneseq
        %v4822 = vshrl.u32 %v4821, 7
        %v4823 = vsub.s32 %v2362, %v4822
        %v4824 = vrot.slane %v1765, %v4823
        %v4825 = vsel %vm2367, %v4824, %v4820
        %v4826 = vlaneseq
        %v4827 = vshrl.u32 %v4826, 7
        %v4828 = vsub.s32 %v2369, %v4827
        %v4829 = vrot.slane %v1767, %v4828
        %v4830 = vsel %vm2374, %v4829, %v4825
        %v4831 = vlaneseq
        %v4832 = vshrl.u32 %v4831, 7
        %v4833 = vsub.s32 %v2376, %v4832
        %v4834 = vrot.slane %v1769, %v4833
        %v4835 = vsel %vm2381, %v4834, %v4830
        %v4836 = vlaneseq
        %v4837 = vshrl.u32 %v4836, 7
        %v4838 = vsub.s32 %v2383, %v4837
        %v4839 = vrot.slane %v1771, %v4838
        %v4840 = vsel %vm2388, %v4839, %v4835
        %v4841 = vlaneseq
        %v4842 = vshrl.u32 %v4841, 7
        %v4843 = vsub.s32 %v2390, %v4842
        %v4844 = vrot.slane %v1773, %v4843
        %v4845 = vsel %vm2395, %v4844, %v4840
        %vm4846 = vcmask 1041409
        %v4847 = vsel %vm4846, %v2712, %v2396
        %vm4848 = vcmask 1042434
        %v4849 = vsel %vm4848, %v3028, %v4847
        %vm4850 = vcmask 1043459
        %v4851 = vsel %vm4850, %v3344, %v4849
        %vm4852 = vcmask 1044484
        %v4853 = vsel %vm4852, %v3660, %v4851
        %vm4854 = vcmask 1045509
        %v4855 = vsel %vm4854, %v3976, %v4853
        %vm4856 = vcmask 1046534
        %v4857 = vsel %vm4856, %v4292, %v4855
        %vm4858 = vcmask 1047559
        %v4859 = vsel %vm4858, %v4608, %v4857
        %v4860 = vsel %vm4846, %v2791, %v2475
        %v4861 = vsel %vm4848, %v3107, %v4860
        %v4862 = vsel %vm4850, %v3423, %v4861
        %v4863 = vsel %vm4852, %v3739, %v4862
        %v4864 = vsel %vm4854, %v4055, %v4863
        %v4865 = vsel %vm4856, %v4371, %v4864
        %v4866 = vsel %vm4858, %v4687, %v4865
        %v4867 = vsel %vm4846, %v2870, %v2554
        %v4868 = vsel %vm4848, %v3186, %v4867
        %v4869 = vsel %vm4850, %v3502, %v4868
        %v4870 = vsel %vm4852, %v3818, %v4869
        %v4871 = vsel %vm4854, %v4134, %v4870
        %v4872 = vsel %vm4856, %v4450, %v4871
        %v4873 = vsel %vm4858, %v4766, %v4872
        %v4874 = vsel %vm4846, %v2949, %v2633
        %v4875 = vsel %vm4848, %v3265, %v4874
        %v4876 = vsel %vm4850, %v3581, %v4875
        %v4877 = vsel %vm4852, %v3897, %v4876
        %v4878 = vsel %vm4854, %v4213, %v4877
        %v4879 = vsel %vm4856, %v4529, %v4878
        %v4880 = vsel %vm4858, %v4845, %v4879
        %v4885 = vadd.f32 %v234, %v4859
        %v4886 = vadd.f32 %v235, %v4866
        %v4887 = vadd.f32 %v236, %v4873
        %v4888 = vadd.f32 %v237, %v4880
        %4889 = vst [vmem:[#allocation2] sm:$0xff] %v4885
        %4890 = vst [vmem:[#allocation2 + $0x8] sm:$0xff] %v4886
        %4891 = vst [vmem:[#allocation2 + $0x10] sm:$0xff] %v4887
        %4892 = vst [vmem:[#allocation2 + $0x18] sm:$0xff] %v4888
        %p4893 = scmp.eq.s32.totalorder %s24, 1
        // Predicated region
        $region49: #{tpu_custom_call.1} parent=31 // pred_check
          %p4894 = pneg %p4893
        $region50: #{tpu_custom_call.1} parent=31 // pred_check_branch
          %4896 = sbr.rel (%p4894) target = $region52
        $region51: #{tpu_custom_call.1} parent=31 // pred_region
          %v4897 = vld [vmem:[#allocation2] sm:$0xff]
          %v4898 = vld [vmem:[#allocation2 + $0x8] sm:$0xff]
          %v4899 = vld [vmem:[#allocation2 + $0x10] sm:$0xff]
          %v4900 = vld [vmem:[#allocation2 + $0x18] sm:$0xff]
          %v4901 = vmul.f32 %v4897, 0.00390625
          %v4902 = vmul.f32 %v4898, 0.00390625
          %v4903 = vmul.f32 %v4899, 0.00390625
          %v4904 = vmul.f32 %v4900, 0.00390625
          %v4905 = vld [vmem:[#allocation6] sm:$0xff]
          %v4906 = vld [vmem:[#allocation6 + $0x8] sm:$0xff]
          %v4907 = vld [vmem:[#allocation6 + $0x10] sm:$0xff]
          %v4908 = vld [vmem:[#allocation6 + $0x18] sm:$0xff]
          %v4909 = vld [vmem:[#allocation6 + $0x20] sm:$0xff]
          %v4910 = vld [vmem:[#allocation6 + $0x28] sm:$0xff]
          %v4911 = vld [vmem:[#allocation6 + $0x30] sm:$0xff]
          %v4912 = vld [vmem:[#allocation6 + $0x38] sm:$0xff]
          %v4913 = vld [vmem:[#allocation6 + $0x40] sm:$0xff]
          %v4914 = vld [vmem:[#allocation6 + $0x48] sm:$0xff]
          %v4915 = vld [vmem:[#allocation6 + $0x50] sm:$0xff]
          %v4916 = vld [vmem:[#allocation6 + $0x58] sm:$0xff]
          %v4917 = vld [vmem:[#allocation6 + $0x60] sm:$0xff]
          %v4918 = vld [vmem:[#allocation6 + $0x68] sm:$0xff]
          %v4919 = vld [vmem:[#allocation6 + $0x70] sm:$0xff]
          %v4920 = vld [vmem:[#allocation6 + $0x78] sm:$0xff]
          %v4921 = vld [vmem:[#allocation6 + $0x80] sm:$0xff]
          %v4922 = vld [vmem:[#allocation6 + $0x88] sm:$0xff]
          %v4923 = vld [vmem:[#allocation6 + $0x90] sm:$0xff]
          %v4924 = vld [vmem:[#allocation6 + $0x98] sm:$0xff]
          %v4925 = vld [vmem:[#allocation6 + $0xa0] sm:$0xff]
          %v4926 = vld [vmem:[#allocation6 + $0xa8] sm:$0xff]
          %v4927 = vld [vmem:[#allocation6 + $0xb0] sm:$0xff]
          %v4928 = vld [vmem:[#allocation6 + $0xb8] sm:$0xff]
          %v4929 = vld [vmem:[#allocation6 + $0xc0] sm:$0xff]
          %v4930 = vld [vmem:[#allocation6 + $0xc8] sm:$0xff]
          %v4931 = vld [vmem:[#allocation6 + $0xd0] sm:$0xff]
          %v4932 = vld [vmem:[#allocation6 + $0xd8] sm:$0xff]
          %v4933 = vld [vmem:[#allocation6 + $0xe0] sm:$0xff]
          %v4934 = vld [vmem:[#allocation6 + $0xe8] sm:$0xff]
          %v4935 = vld [vmem:[#allocation6 + $0xf0] sm:$0xff]
          %v4936 = vld [vmem:[#allocation6 + $0xf8] sm:$0xff]
          %v4937 = vld [vmem:[#allocation6 + $0x100] sm:$0xff]
          %v4938 = vld [vmem:[#allocation6 + $0x108] sm:$0xff]
          %v4939 = vld [vmem:[#allocation6 + $0x110] sm:$0xff]
          %v4940 = vld [vmem:[#allocation6 + $0x118] sm:$0xff]
          %v4941 = vld [vmem:[#allocation6 + $0x120] sm:$0xff]
          %v4942 = vld [vmem:[#allocation6 + $0x128] sm:$0xff]
          %v4943 = vld [vmem:[#allocation6 + $0x130] sm:$0xff]
          %v4944 = vld [vmem:[#allocation6 + $0x138] sm:$0xff]
          %v4945 = vld [vmem:[#allocation6 + $0x140] sm:$0xff]
          %v4946 = vld [vmem:[#allocation6 + $0x148] sm:$0xff]
          %v4947 = vld [vmem:[#allocation6 + $0x150] sm:$0xff]
          %v4948 = vld [vmem:[#allocation6 + $0x158] sm:$0xff]
          %v4949 = vld [vmem:[#allocation6 + $0x160] sm:$0xff]
          %v4950 = vld [vmem:[#allocation6 + $0x168] sm:$0xff]
          %v4951 = vld [vmem:[#allocation6 + $0x170] sm:$0xff]
          %v4952 = vld [vmem:[#allocation6 + $0x178] sm:$0xff]
          %v4953 = vld [vmem:[#allocation6 + $0x180] sm:$0xff]
          %v4954 = vld [vmem:[#allocation6 + $0x188] sm:$0xff]
          %v4955 = vld [vmem:[#allocation6 + $0x190] sm:$0xff]
          %v4956 = vld [vmem:[#allocation6 + $0x198] sm:$0xff]
          %v4957 = vld [vmem:[#allocation6 + $0x1a0] sm:$0xff]
          %v4958 = vld [vmem:[#allocation6 + $0x1a8] sm:$0xff]
          %v4959 = vld [vmem:[#allocation6 + $0x1b0] sm:$0xff]
          %v4960 = vld [vmem:[#allocation6 + $0x1b8] sm:$0xff]
          %v4961 = vld [vmem:[#allocation6 + $0x1c0] sm:$0xff]
          %v4962 = vld [vmem:[#allocation6 + $0x1c8] sm:$0xff]
          %v4963 = vld [vmem:[#allocation6 + $0x1d0] sm:$0xff]
          %v4964 = vld [vmem:[#allocation6 + $0x1d8] sm:$0xff]
          %v4965 = vld [vmem:[#allocation6 + $0x1e0] sm:$0xff]
          %v4966 = vld [vmem:[#allocation6 + $0x1e8] sm:$0xff]
          %v4967 = vld [vmem:[#allocation6 + $0x1f0] sm:$0xff]
          %v4968 = vld [vmem:[#allocation6 + $0x1f8] sm:$0xff]
          %v4969 = vld [vmem:[#allocation8] sm:$0x1]
          %v4971 = vlaneseq
          %v4972 = vshrl.u32 %v4971, 7
          %v4973 = vsub.s32 0, %v4972
          %v4974 = vrot.slane %v4969, %v4973
          %4976 = vmatprep.subr.mxu0 0.0
          %4977 = vmatpush1.msra.mxu0 %v4905
          %4978 = vmatprep.subr.mxu0 0.0
          %4979 = vmatpush1.msra.mxu0 %v4906
          %4980 = vmatprep.subr.mxu0 0.0
          %4981 = vmatpush1.msra.mxu0 %v4907
          %4982 = vmatprep.subr.mxu0 0.0
          %4983 = vmatpush1.msra.mxu0 %v4908
          %4984 = vmatprep.subr.mxu0 0.0
          %4985 = vmatpush1.msra.mxu0 %v4909
          %4986 = vmatprep.subr.mxu0 0.0
          %4987 = vmatpush1.msra.mxu0 %v4910
          %4988 = vmatprep.subr.mxu0 0.0
          %4989 = vmatpush1.msra.mxu0 %v4911
          %4990 = vmatprep.subr.mxu0 0.0
          %4991 = vmatpush1.msra.mxu0 %v4912
          %4992 = vmatprep.subr.mxu0 0.0
          %4993 = vmatpush1.msra.mxu0 %v4913
          %4994 = vmatprep.subr.mxu0 0.0
          %4995 = vmatpush1.msra.mxu0 %v4914
          %4996 = vmatprep.subr.mxu0 0.0
          %4997 = vmatpush1.msra.mxu0 %v4915
          %4998 = vmatprep.subr.mxu0 0.0
          %4999 = vmatpush1.msra.mxu0 %v4916
          %5000 = vmatprep.subr.mxu0 0.0
          %5001 = vmatpush1.msra.mxu0 %v4917
          %5002 = vmatprep.subr.mxu0 0.0
          %5003 = vmatpush1.msra.mxu0 %v4918
          %5004 = vmatprep.subr.mxu0 0.0
          %5005 = vmatpush1.msra.mxu0 %v4919
          %5006 = vmatprep.subr.mxu0 0.0
          %5007 = vmatpush1.msra.mxu0 %v4920
          %5008 = vmatprep.subr.mxu0 0.0
          %5009 = vmatpush1.msra.mxu0 %v4921
          %5010 = vmatprep.subr.mxu0 0.0
          %5011 = vmatpush1.msra.mxu0 %v4922
          %5012 = vmatprep.subr.mxu0 0.0
          %5013 = vmatpush1.msra.mxu0 %v4923
          %5014 = vmatprep.subr.mxu0 0.0
          %5015 = vmatpush1.msra.mxu0 %v4924
          %5016 = vmatprep.subr.mxu0 0.0
          %5017 = vmatpush1.msra.mxu0 %v4925
          %5018 = vmatprep.subr.mxu0 0.0
          %5019 = vmatpush1.msra.mxu0 %v4926
          %5020 = vmatprep.subr.mxu0 0.0
          %5021 = vmatpush1.msra.mxu0 %v4927
          %5022 = vmatprep.subr.mxu0 0.0
          %5023 = vmatpush1.msra.mxu0 %v4928
          %5024 = vmatprep.subr.mxu0 0.0
          %5025 = vmatpush1.msra.mxu0 %v4929
          %5026 = vmatprep.subr.mxu0 0.0
          %5027 = vmatpush1.msra.mxu0 %v4930
          %5028 = vmatprep.subr.mxu0 0.0
          %5029 = vmatpush1.msra.mxu0 %v4931
          %5030 = vmatprep.subr.mxu0 0.0
          %5031 = vmatpush1.msra.mxu0 %v4932
          %5032 = vmatprep.subr.mxu0 0.0
          %5033 = vmatpush1.msra.mxu0 %v4933
          %5034 = vmatprep.subr.mxu0 0.0
          %5035 = vmatpush1.msra.mxu0 %v4934
          %5036 = vmatprep.subr.mxu0 0.0
          %5037 = vmatpush1.msra.mxu0 %v4935
          %5038 = vmatprep.subr.mxu0 0.0
          %5039 = vmatpush1.msra.mxu0 %v4936
          %5040 = vmatprep.mubr.f32.mxu0 %v4902
          %5041 = vmatmul.mubr.f32.gmra.mrb[0].mxu0 %v4901
          %v5042 = vpop.f32.mrb[0].mxu0
          %v5043 = vadd.f32 %v4974, %v5042
          %v5044 = vpop.f32.mrb[0].mxu0
          %5045 = vdwg.mxu0
          %5046 = vmatprep.subr.mxu0 0.0
          %5047 = vmatpush1.msra.mxu0 %v4937
          %5048 = vmatprep.subr.mxu0 0.0
          %5049 = vmatpush1.msra.mxu0 %v4938
          %5050 = vmatprep.subr.mxu0 0.0
          %5051 = vmatpush1.msra.mxu0 %v4939
          %5052 = vmatprep.subr.mxu0 0.0
          %5053 = vmatpush1.msra.mxu0 %v4940
          %5054 = vmatprep.subr.mxu0 0.0
          %5055 = vmatpush1.msra.mxu0 %v4941
          %5056 = vmatprep.subr.mxu0 0.0
          %5057 = vmatpush1.msra.mxu0 %v4942
          %5058 = vmatprep.subr.mxu0 0.0
          %5059 = vmatpush1.msra.mxu0 %v4943
          %5060 = vmatprep.subr.mxu0 0.0
          %5061 = vmatpush1.msra.mxu0 %v4944
          %5062 = vmatprep.subr.mxu0 0.0
          %5063 = vmatpush1.msra.mxu0 %v4945
          %5064 = vmatprep.subr.mxu0 0.0
          %5065 = vmatpush1.msra.mxu0 %v4946
          %5066 = vmatprep.subr.mxu0 0.0
          %5067 = vmatpush1.msra.mxu0 %v4947
          %5068 = vmatprep.subr.mxu0 0.0
          %5069 = vmatpush1.msra.mxu0 %v4948
          %5070 = vmatprep.subr.mxu0 0.0
          %5071 = vmatpush1.msra.mxu0 %v4949
          %5072 = vmatprep.subr.mxu0 0.0
          %5073 = vmatpush1.msra.mxu0 %v4950
          %5074 = vmatprep.subr.mxu0 0.0
          %5075 = vmatpush1.msra.mxu0 %v4951
          %5076 = vmatprep.subr.mxu0 0.0
          %5077 = vmatpush1.msra.mxu0 %v4952
          %5078 = vmatprep.subr.mxu0 0.0
          %5079 = vmatpush1.msra.mxu0 %v4953
          %5080 = vmatprep.subr.mxu0 0.0
          %5081 = vmatpush1.msra.mxu0 %v4954
          %5082 = vmatprep.subr.mxu0 0.0
          %5083 = vmatpush1.msra.mxu0 %v4955
          %5084 = vmatprep.subr.mxu0 0.0
          %5085 = vmatpush1.msra.mxu0 %v4956
          %5086 = vmatprep.subr.mxu0 0.0
          %5087 = vmatpush1.msra.mxu0 %v4957
          %5088 = vmatprep.subr.mxu0 0.0
          %5089 = vmatpush1.msra.mxu0 %v4958
          %5090 = vmatprep.subr.mxu0 0.0
          %5091 = vmatpush1.msra.mxu0 %v4959
          %5092 = vmatprep.subr.mxu0 0.0
          %5093 = vmatpush1.msra.mxu0 %v4960
          %5094 = vmatprep.subr.mxu0 0.0
          %5095 = vmatpush1.msra.mxu0 %v4961
          %5096 = vmatprep.subr.mxu0 0.0
          %5097 = vmatpush1.msra.mxu0 %v4962
          %5098 = vmatprep.subr.mxu0 0.0
          %5099 = vmatpush1.msra.mxu0 %v4963
          %5100 = vmatprep.subr.mxu0 0.0
          %5101 = vmatpush1.msra.mxu0 %v4964
          %5102 = vmatprep.subr.mxu0 0.0
          %5103 = vmatpush1.msra.mxu0 %v4965
          %5104 = vmatprep.subr.mxu0 0.0
          %5105 = vmatpush1.msra.mxu0 %v4966
          %5106 = vmatprep.subr.mxu0 0.0
          %5107 = vmatpush1.msra.mxu0 %v4967
          %5108 = vmatprep.subr.mxu0 0.0
          %5109 = vmatpush1.msra.mxu0 %v4968
          %5110 = vmatprep.mubr.f32.mxu0 %v4904
          %5111 = vmatmul.mubr.f32.gmra.mrb[0].mxu0 %v4903
          %v5112 = vpop.f32.mrb[0].mxu0
          %v5113 = vadd.f32 %v5043, %v5112
          %v5114 = vpop.f32.mrb[0].mxu0
          %5115 = vdwg.mxu0
          %5116 = vst [vmem:[#allocation9] sm:$0xff] %v5113
        $region52: #{tpu_custom_call.1} parent=31 // pred_fallthru
          _
        // Predicated region
        $region53: #{tpu_custom_call.1} parent=31 // pred_check
          %p5117 = pneg %p119
        $region54: #{tpu_custom_call.1} parent=31 // pred_check_branch
          %5119 = sbr.rel (%p5117) target = $region56
        $region55: #{tpu_custom_call.1} parent=31 // pred_region
          %s5121 = ssub.s32 128, 128
          %5122 = vsyncadd [#allocation5], %s5121
          %s5123 = smul.addr %s23, 128
          %s5124 = scalar_lea.hbm %s3, %s5123
          %s5126 = sshll.u32 [#allocation9], 4
          %s5127 = int_to_ptr.vmem [resolvable:$true] %s5126
          %5129 = dma.vmem_to_hbm [thread:$0]  %s5127, 128, %s5124, [#allocation5]
        $region56: #{tpu_custom_call.1} parent=31 // pred_fallthru
          _
        // Predicated region
        $region57: #{tpu_custom_call.1} parent=31 // pred_check
          %p5130 = pneg %p119
        $region58: #{tpu_custom_call.1} parent=31 // pred_check_branch
          %5132 = sbr.rel (%p5130) target = $region60
        $region59: #{tpu_custom_call.1} parent=31 // pred_region
          %5133 = dma.done [#allocation5], 128
        $region60: #{tpu_custom_call.1} parent=31 // pred_fallthru
          _
      $region32: #{tpu_custom_call.1} parent=5 // pred_fallthru
        _
      %p5134 = scmp.le.s32.totalorder 2, %s14
      // Predicated region
      $region61: #{tpu_custom_call.1} parent=5 // pred_check
        %p5135 = pneg %p5134
      $region62: #{tpu_custom_call.1} parent=5 // pred_check_branch
        %5137 = sbr.rel (%p5135) target = $region64
      $region63: #{tpu_custom_call.1} parent=5 // pred_region
        %s5138 = ssub.s32 %s14, 2
      $region64: #{tpu_custom_call.1} parent=5 // pred_fallthru
        _
    $region6: #{tpu_custom_call.1} parent=1 // loop_footer
      %s18 = sadd.s32 1, %s14
    $region7: #{tpu_custom_call.1} parent=1 // loop_footer_branch
      %13 = sbr.rel target = $region3
    $region8: #{tpu_custom_call.1} parent=1 // loop_exit
      _
    %5139 = vsyncpa [#allocation4], 1
    %s5140 = scalar_lea.sflag [#allocation4], 1
    %5141 = vsyncpa %s5140, 1
    %5142 = vsyncpa [#allocation7], 1
    %5143 = vsyncpa [#allocation5], 1
    %s5144 = scalar_lea.sflag [#allocation5], 1
    %5145 = vsyncpa %s5144, 1

</llo_original>
